<compile_context>
chip_gen: v5e
topology: v5e:2x2
jax: 0.10.0
libtpu: 0.0.40
codegen_flags: <defaults>
</compile_context>

<pallas_src>
import functools

import jax
import jax.numpy as jnp
from jax.experimental import pallas as pl
from jax.experimental.pallas import tpu as pltpu


# ---------------------------------------------------------------------------
# Kernel A: fused 1x1 qkv conv + 3x3 depthwise conv (stride 1, zero pad 1),
# channel-major.  One grid step per batch element.
#   x_ref   : (1, C,  HW)  f32   channel-major input (free NCHW reshape)
#   wq_ref  : (3C, C)      bf16  1x1 conv weight (out_ch, in_ch)
#   bq_ref  : (3C, 1)      f32
#   wd_ref  : (3C, 9)      f32   depthwise 3x3 weight, taps row-major (dy, dx)
#   bd_ref  : (3C, 1)      f32
#   m_ref   : (9, HW)      f32   precomputed zero-padding edge mask per tap
#   o_qk_ref: (1, 2C, HW)  bf16  q|k rows (consumed by the score kernel)
#   o_v_ref : (1, C,  HW)  bf16  v rows   (consumed by the tail kernel)
# ---------------------------------------------------------------------------
def _qkv_dw_kernel(x_ref, wq_ref, bq_ref, wd_ref, bd_ref, m_ref,
                   o_qk_ref, o_v_ref, *, H, W):
    HW = H * W
    C2 = o_qk_ref.shape[1]

    # 1x1 conv: (3C, C) @ (C, HW) -> (3C, HW).  bf16 MXU operands, f32 acc.
    qkv = jax.lax.dot_general(
        wq_ref[...], x_ref[0].astype(jnp.bfloat16),
        (((1,), (0,)), ((), ())),
        preferred_element_type=jnp.float32) + bq_ref[...]

    # 3x3 depthwise conv over the flattened HW (lane) axis: per-tap XLU roll
    # + precomputed edge mask (== the zero padding) + per-channel weight.
    acc = jnp.zeros_like(qkv)
    for dy in (-1, 0, 1):
        for dx in (-1, 0, 1):
            tap = (dy + 1) * 3 + (dx + 1)
            off = dy * W + dx                               # flat-index offset
            w_col = wd_ref[:, tap:tap + 1]                  # (3C, 1)
            if off == 0:
                acc = acc + w_col * qkv
            else:
                shifted = pltpu.roll(qkv, shift=(-off) % HW, axis=1)
                acc = acc + w_col * (shifted * m_ref[tap])
    acc = acc + bd_ref[...]

    # Split q|k from v (sublane-aligned slices); lane-dense bf16 stores.
    o_qk_ref[0] = acc[:C2].astype(o_qk_ref.dtype)
    o_v_ref[0] = acc[C2:].astype(o_v_ref.dtype)


# ---------------------------------------------------------------------------
# Kernel B: cross-stream channel-attention probabilities.
# Grid (B, n_hw_chunks); the HW-chunk axis is an 'arbitrary' reduction that
# accumulates raw (C, C) scores + q/k sums of squares in VMEM scratch; the
# last chunk applies l2-norm scaling, temperature, head mask and softmax.
# ---------------------------------------------------------------------------
def _score_kernel(qk1_ref, qk2_ref, t_ref, bias_ref, p_ref,
                  s1_ref, s2_ref, q1s_ref, q2s_ref, k1s_ref, k2s_ref):
    C = p_ref.shape[2]
    c = pl.program_id(1)

    @pl.when(c == 0)
    def _():
        s1_ref[...] = jnp.zeros_like(s1_ref)
        s2_ref[...] = jnp.zeros_like(s2_ref)
        q1s_ref[...] = jnp.zeros_like(q1s_ref)
        q2s_ref[...] = jnp.zeros_like(q2s_ref)
        k1s_ref[...] = jnp.zeros_like(k1s_ref)
        k2s_ref[...] = jnp.zeros_like(k2s_ref)

    qk1 = qk1_ref[0]                                        # (2C, hwt) bf16
    qk2 = qk2_ref[0]
    q1, k1 = qk1[:C], qk1[C:]
    q2, k2 = qk2[:C], qk2[C:]

    lane = (((1,), (1,)), ((), ()))                         # contract HW chunk
    s1_ref[...] += jax.lax.dot_general(q1, k2, lane,
                                       preferred_element_type=jnp.float32)
    s2_ref[...] += jax.lax.dot_general(q2, k1, lane,
                                       preferred_element_type=jnp.float32)

    def col_ssq(a):                                         # (C, 1) column
        af = a.astype(jnp.float32)
        return jnp.sum(af * af, axis=1, keepdims=True)

    def row_ssq(a):                                         # (1, C) row (via
        af = a.astype(jnp.float32)                          # a tiny matvec, no
        ones = jnp.ones((1, af.shape[1]), jnp.float32)      # in-kernel transpose)
        return jax.lax.dot_general(ones, af * af, lane,
                                   preferred_element_type=jnp.float32)

    q1s_ref[...] += col_ssq(q1)
    q2s_ref[...] += col_ssq(q2)
    k1s_ref[...] += row_ssq(k1)
    k2s_ref[...] += row_ssq(k2)

    @pl.when(c == pl.num_programs(1) - 1)
    def _():
        def inv(ss):                                        # 1 / max(||.||, 1e-12)
            return jax.lax.rsqrt(jnp.maximum(ss, 1e-24))

        def head_softmax(s_raw, inv_q_col, inv_k_row, temp_col):
            s = s_raw * (inv_q_col * temp_col) * inv_k_row + bias_ref[...]
            s = s - jnp.max(s, axis=-1, keepdims=True)
            e = jnp.exp(s)
            return e * pl.reciprocal(jnp.sum(e, axis=-1, keepdims=True),
                                     approx=True)

        p_ref[0, 0] = head_softmax(s1_ref[...], inv(q1s_ref[...]),
                                   inv(k2s_ref[...]), t_ref[0])
        p_ref[0, 1] = head_softmax(s2_ref[...], inv(q2s_ref[...]),
                                   inv(k1s_ref[...]), t_ref[1])


# ---------------------------------------------------------------------------
# Kernel C: P@V + project_out(+residual) for both streams + fused block_out.
# Grid (B, n_hw_chunks), both parallel; every store is a lane-dense (C, hwt).
# ---------------------------------------------------------------------------
def _tail_kernel(p_ref, v1_ref, v2_ref, x_ref, y_ref,
                 wp1_ref, bp1_ref, wp2_ref, bp2_ref, wb_ref, bb_ref, o_ref):
    cdim = (((1,), (0,)), ((), ()))

    p1 = p_ref[0, 0].astype(jnp.bfloat16)
    p2 = p_ref[0, 1].astype(jnp.bfloat16)
    out1 = jax.lax.dot_general(p1, v1_ref[0], cdim,
                               preferred_element_type=jnp.float32)
    out2 = jax.lax.dot_general(p2, v2_ref[0], cdim,
                               preferred_element_type=jnp.float32)

    o1 = (jax.lax.dot_general(wp1_ref[...], out1.astype(jnp.bfloat16), cdim,
                              preferred_element_type=jnp.float32)
          + bp1_ref[...] + x_ref[0])                        # project_out + x
    o2 = (jax.lax.dot_general(wp2_ref[...], out2.astype(jnp.bfloat16), cdim,
                              preferred_element_type=jnp.float32)
          + bp2_ref[...] + y_ref[0])                        # project_out2 + y

    # block_out on concat([o1, o2]) fused into one (C, 2C) x (2C, hwt) matmul.
    o12 = jnp.concatenate([o1, o2], axis=0).astype(jnp.bfloat16)
    out_f = jax.lax.dot_general(wb_ref[...], o12, cdim,
                                preferred_element_type=jnp.float32) + bb_ref[...]
    o_ref[0] = out_f.astype(o_ref.dtype)                    # lane-dense store


# ---------------------------------------------------------------------------
# Wrapper
# ---------------------------------------------------------------------------
def _dw_edge_masks(H, W):
    """(9, HW) f32 validity masks implementing the depthwise conv zero padding."""
    HW = H * W
    ii = jnp.arange(HW, dtype=jnp.int32)
    row, col = ii // W, ii % W
    masks = []
    for dy in (-1, 0, 1):
        for dx in (-1, 0, 1):
            ok = ((row + dy >= 0) & (row + dy < H) &
                  (col + dx >= 0) & (col + dx < W))
            masks.append(ok.astype(jnp.float32))
    return jnp.stack(masks, axis=0)


def _pick_hw_tile(HW):
    # Lane-dense HW chunks; prefer >= 2 chunks so the reduction path pipelines.
    # TODO(synk): sweep 512-1024 columns on v6e/v5e for large H*W.
    for t in (512, 256, 128):
        if HW % t == 0 and HW // t >= 2:
            return t
    return HW


def _qkv_stage(x_cm, wq, bq, wd, bd, dw_mask, *, H, W):
    B, C, HW = x_cm.shape
    C3 = 3 * C
    return pl.pallas_call(
        functools.partial(_qkv_dw_kernel, H=H, W=W),
        out_shape=(jax.ShapeDtypeStruct((B, 2 * C, HW), jnp.bfloat16),
                   jax.ShapeDtypeStruct((B, C, HW), jnp.bfloat16)),
        grid_spec=pltpu.PrefetchScalarGridSpec(
            num_scalar_prefetch=0,
            grid=(B,),
            in_specs=[
                pl.BlockSpec((1, C, HW), lambda b: (b, 0, 0)),
                pl.BlockSpec((C3, C), lambda b: (0, 0)),
                pl.BlockSpec((C3, 1), lambda b: (0, 0)),
                pl.BlockSpec((C3, 9), lambda b: (0, 0)),
                pl.BlockSpec((C3, 1), lambda b: (0, 0)),
                pl.BlockSpec((9, HW), lambda b: (0, 0)),
            ],
            out_specs=(pl.BlockSpec((1, 2 * C, HW), lambda b: (b, 0, 0)),
                       pl.BlockSpec((1, C, HW), lambda b: (b, 0, 0)))),
        compiler_params=pltpu.CompilerParams(dimension_semantics=("parallel",)),
    )(x_cm, wq, bq, wd, bd, dw_mask)


def dual_attention_forward(x, y, p, *, num_heads):
    B, C, H, W = x.shape
    assert C % num_heads == 0
    ch = C // num_heads
    HW = H * W
    bf16 = jnp.bfloat16

    x_cm = x.reshape(B, C, HW)                               # free NCHW reshape
    y_cm = y.reshape(B, C, HW)
    dw_mask = _dw_edge_masks(H, W)

    # ---- stage A: fused qkv 1x1 conv + depthwise conv, per stream ----------
    qk1, v1 = _qkv_stage(x_cm, p['w_qkv'].astype(bf16), p['b_qkv'],
                         p['w_dw'], p['b_dw'], dw_mask, H=H, W=W)
    qk2, v2 = _qkv_stage(y_cm, p['w_qkv2'].astype(bf16), p['b_qkv2'],
                         p['w_dw2'], p['b_dw2'], dw_mask, H=H, W=W)

    hwt = _pick_hw_tile(HW)
    n_hw = HW // hwt

    # Per-channel-row temperatures and resident block-diagonal head-mask bias.
    t_all = jnp.stack([jnp.repeat(p['temp1'].reshape(num_heads), ch)[:, None],
                       jnp.repeat(p['temp2'].reshape(num_heads), ch)[:, None]])
    head = jnp.arange(C, dtype=jnp.int32) // ch
    head_bias = jnp.where(head[:, None] == head[None, :],
                          0.0, -1e30).astype(jnp.float32)

    # ---- stage B: dual cross channel-attention probabilities ---------------
    probs = pl.pallas_call(
        _score_kernel,
        out_shape=jax.ShapeDtypeStruct((B, 2, C, C), jnp.float32),
        grid_spec=pltpu.PrefetchScalarGridSpec(
            num_scalar_prefetch=0,
            grid=(B, n_hw),
            in_specs=[
                pl.BlockSpec((1, 2 * C, hwt), lambda b, c: (b, 0, c)),
                pl.BlockSpec((1, 2 * C, hwt), lambda b, c: (b, 0, c)),
                pl.BlockSpec((2, C, 1), lambda b, c: (0, 0, 0)),
                pl.BlockSpec((C, C), lambda b, c: (0, 0)),
            ],
            out_specs=pl.BlockSpec((1, 2, C, C), lambda b, c: (b, 0, 0, 0)),
            scratch_shapes=[pltpu.VMEM((C, C), jnp.float32),
                            pltpu.VMEM((C, C), jnp.float32),
                            pltpu.VMEM((C, 1), jnp.float32),
                            pltpu.VMEM((C, 1), jnp.float32),
                            pltpu.VMEM((1, C), jnp.float32),
                            pltpu.VMEM((1, C), jnp.float32)]),
        compiler_params=pltpu.CompilerParams(
            dimension_semantics=("parallel", "arbitrary")),
    )(qk1, qk2, t_all, head_bias)

    # ---- stage C: P@V + project_out(+residual) + fused block_out ------------
    out_cm = pl.pallas_call(
        _tail_kernel,
        out_shape=jax.ShapeDtypeStruct((B, C, HW), x.dtype),
        grid_spec=pltpu.PrefetchScalarGridSpec(
            num_scalar_prefetch=0,
            grid=(B, n_hw),
            in_specs=[
                pl.BlockSpec((1, 2, C, C), lambda b, c: (b, 0, 0, 0)),
                pl.BlockSpec((1, C, hwt), lambda b, c: (b, 0, c)),
                pl.BlockSpec((1, C, hwt), lambda b, c: (b, 0, c)),
                pl.BlockSpec((1, C, hwt), lambda b, c: (b, 0, c)),
                pl.BlockSpec((1, C, hwt), lambda b, c: (b, 0, c)),
                pl.BlockSpec((C, C), lambda b, c: (0, 0)),
                pl.BlockSpec((C, 1), lambda b, c: (0, 0)),
                pl.BlockSpec((C, C), lambda b, c: (0, 0)),
                pl.BlockSpec((C, 1), lambda b, c: (0, 0)),
                pl.BlockSpec((C, 2 * C), lambda b, c: (0, 0)),
                pl.BlockSpec((C, 1), lambda b, c: (0, 0)),
            ],
            out_specs=pl.BlockSpec((1, C, hwt), lambda b, c: (b, 0, c))),
        compiler_params=pltpu.CompilerParams(
            dimension_semantics=("parallel", "parallel")),
    )(probs, v1, v2, x_cm, y_cm,
      p['w_proj'].astype(bf16), p['b_proj'],
      p['w_proj2'].astype(bf16), p['b_proj2'],
      p['w_block'].astype(bf16), p['b_block'])

    return out_cm.reshape(B, C, H, W)                        # free reshape


# ---------------------------------------------------------------------------
# Deterministic synthetic parameters in kernel-friendly layouts:
#   1x1 conv weights (out_ch, in_ch); depthwise weights (3C, 9) = PyTorch
#   (3C, 1, 3, 3) flattened row-major; biases as (C, 1) / (3C, 1) columns.
# ---------------------------------------------------------------------------
def init_params(key, dim, num_heads):
    ks = jax.random.split(key, 14)
    f32 = jnp.float32

    def w(k, *shape):
        return (0.05 * jax.random.normal(k, shape)).astype(f32)

    C3 = 3 * dim
    temp = 1.0 + 0.1 * jnp.arange(num_heads, dtype=f32)
    return {
        'w_qkv':  w(ks[0], C3, dim),   'b_qkv':  w(ks[1], C3, 1),
        'w_dw':   w(ks[2], C3, 9),     'b_dw':   w(ks[3], C3, 1),
        'w_qkv2': w(ks[4], C3, dim),   'b_qkv2': w(ks[5], C3, 1),
        'w_dw2':  w(ks[6], C3, 9),     'b_dw2':  w(ks[7], C3, 1),
        'w_proj':  w(ks[8], dim, dim),  'b_proj':  w(ks[9], dim, 1),
        'w_proj2': w(ks[10], dim, dim), 'b_proj2': w(ks[11], dim, 1),
        'w_block': w(ks[12], dim, 2 * dim), 'b_block': w(ks[13], dim, 1),
        'temp1': temp.reshape(num_heads, 1, 1),
        'temp2': (temp + 0.05).reshape(num_heads, 1, 1),
    }


if __name__ == "__main__":
    B, dim, H, W = 2, 16, 16, 16
    num_heads = 2

    key = jax.random.PRNGKey(0)
    kx, ky, kp = jax.random.split(key, 3)
    x = jax.random.normal(kx, (B, dim, H, W), jnp.float32)
    y = jax.random.normal(ky, (B, dim, H, W), jnp.float32)
    params = init_params(kp, dim, num_heads)

    fwd = jax.jit(functools.partial(dual_attention_forward, num_heads=num_heads))
    out = jax.block_until_ready(fwd(x, y, params))

    assert out.shape == (B, dim, H, W), out.shape
    assert bool(jnp.all(jnp.isfinite(out)))
    print("KERNEL_OK")
</pallas_src>

<mosaic_0001>
module attributes {stable_mosaic.version = 11 : i64} {
  func.func @_qkv_dw_kernel(%arg0: i32, %arg1: memref<1x16x256xf32, #tpu.memory_space<vmem>>, %arg2: memref<48x16xbf16, #tpu.memory_space<vmem>>, %arg3: memref<48x1xf32, #tpu.memory_space<vmem>>, %arg4: memref<48x9xf32, #tpu.memory_space<vmem>>, %arg5: memref<48x1xf32, #tpu.memory_space<vmem>>, %arg6: memref<9x256xf32, #tpu.memory_space<vmem>>, %arg7: memref<1x32x256xbf16, #tpu.memory_space<vmem>>, %arg8: memref<1x16x256xbf16, #tpu.memory_space<vmem>>) attributes {dimension_semantics = [#tpu.dimension_semantics<parallel>], iteration_bounds = array<i64: 2>, scalar_prefetch = 0 : i64, scratch_operands = 0 : i64, tpu.core_type = #tpu.core_type<tc>, window_params = [{transform_indices = @transform_0, window_bounds = array<i64: 1, 16, 256>}, {pipeline_mode = #tpu.pipeline_mode<synchronous>, transform_indices = @transform_1, window_bounds = array<i64: 48, 16>}, {pipeline_mode = #tpu.pipeline_mode<synchronous>, transform_indices = @transform_2, window_bounds = array<i64: 48, 1>}, {pipeline_mode = #tpu.pipeline_mode<synchronous>, transform_indices = @transform_3, window_bounds = array<i64: 48, 9>}, {pipeline_mode = #tpu.pipeline_mode<synchronous>, transform_indices = @transform_4, window_bounds = array<i64: 48, 1>}, {pipeline_mode = #tpu.pipeline_mode<synchronous>, transform_indices = @transform_5, window_bounds = array<i64: 9, 256>}, {transform_indices = @transform_6, window_bounds = array<i64: 1, 32, 256>}, {transform_indices = @transform_7, window_bounds = array<i64: 1, 16, 256>}]} {
    %c0 = arith.constant 0 : index
    %c0_0 = arith.constant 0 : index
    %0 = vector.load %arg2[%c0, %c0_0] : memref<48x16xbf16, #tpu.memory_space<vmem>>, vector<48x16xbf16>
    %c0_1 = arith.constant 0 : index
    %c0_2 = arith.constant 0 : index
    %c0_3 = arith.constant 0 : index
    %1 = vector.load %arg1[%c0_1, %c0_2, %c0_3] : memref<1x16x256xf32, #tpu.memory_space<vmem>>, vector<1x16x256xf32>
    %2 = vector.shape_cast %1 : vector<1x16x256xf32> to vector<16x256xf32>
    %3 = arith.truncf %2 : vector<16x256xf32> to vector<16x256xbf16>
    %cst = arith.constant dense<0.000000e+00> : vector<48x256xf32>
    %4 = tpu.matmul %0, %3, %cst {dimension_numbers = #tpu.dot_dimension_numbers<[1], [0], [0], [1], [0, 0, 1, 1], [], []>} : vector<48x16xbf16>, vector<16x256xbf16>, vector<48x256xf32> -> vector<48x256xf32>
    %c0_4 = arith.constant 0 : index
    %c0_5 = arith.constant 0 : index
    %5 = vector.load %arg3[%c0_4, %c0_5] : memref<48x1xf32, #tpu.memory_space<vmem>>, vector<48x1xf32>
    %6 = vector.broadcast %5 : vector<48x1xf32> to vector<48x256xf32>
    %7 = arith.addf %4, %6 : vector<48x256xf32>
    %cst_6 = arith.constant 0.000000e+00 : f32
    %8 = vector.broadcast %cst_6 : f32 to vector<48x256xf32>
    %c0_7 = arith.constant 0 : index
    %c0_8 = arith.constant 0 : index
    %9 = vector.load %arg4[%c0_7, %c0_8] : memref<48x9xf32, #tpu.memory_space<vmem>>, vector<48x1xf32>
    %c17_i32 = arith.constant 17 : i32
    %10 = tpu.dynamic_rotate %7 by %c17_i32 dim 1 : vector<48x256xf32>, i32 -> vector<48x256xf32>
    %c0_9 = arith.constant 0 : index
    %c0_10 = arith.constant 0 : index
    %11 = vector.load %arg6[%c0_9, %c0_10] : memref<9x256xf32, #tpu.memory_space<vmem>>, vector<1x256xf32>
    %12 = vector.shape_cast %11 : vector<1x256xf32> to vector<256xf32>
    %13 = vector.shape_cast %12 : vector<256xf32> to vector<1x256xf32>
    %14 = vector.broadcast %13 : vector<1x256xf32> to vector<48x256xf32>
    %15 = arith.mulf %10, %14 : vector<48x256xf32>
    %16 = vector.broadcast %9 : vector<48x1xf32> to vector<48x256xf32>
    %17 = arith.mulf %16, %15 : vector<48x256xf32>
    %18 = arith.addf %8, %17 : vector<48x256xf32>
    %c0_11 = arith.constant 0 : index
    %c1 = arith.constant 1 : index
    %19 = vector.load %arg4[%c0_11, %c1] : memref<48x9xf32, #tpu.memory_space<vmem>>, vector<48x1xf32>
    %c16_i32 = arith.constant 16 : i32
    %20 = tpu.dynamic_rotate %7 by %c16_i32 dim 1 : vector<48x256xf32>, i32 -> vector<48x256xf32>
    %c1_12 = arith.constant 1 : index
    %c0_13 = arith.constant 0 : index
    %21 = vector.load %arg6[%c1_12, %c0_13] : memref<9x256xf32, #tpu.memory_space<vmem>>, vector<1x256xf32>
    %22 = vector.shape_cast %21 : vector<1x256xf32> to vector<256xf32>
    %23 = vector.shape_cast %22 : vector<256xf32> to vector<1x256xf32>
    %24 = vector.broadcast %23 : vector<1x256xf32> to vector<48x256xf32>
    %25 = arith.mulf %20, %24 : vector<48x256xf32>
    %26 = vector.broadcast %19 : vector<48x1xf32> to vector<48x256xf32>
    %27 = arith.mulf %26, %25 : vector<48x256xf32>
    %28 = arith.addf %18, %27 : vector<48x256xf32>
    %c0_14 = arith.constant 0 : index
    %c2 = arith.constant 2 : index
    %29 = vector.load %arg4[%c0_14, %c2] : memref<48x9xf32, #tpu.memory_space<vmem>>, vector<48x1xf32>
    %c15_i32 = arith.constant 15 : i32
    %30 = tpu.dynamic_rotate %7 by %c15_i32 dim 1 : vector<48x256xf32>, i32 -> vector<48x256xf32>
    %c2_15 = arith.constant 2 : index
    %c0_16 = arith.constant 0 : index
    %31 = vector.load %arg6[%c2_15, %c0_16] : memref<9x256xf32, #tpu.memory_space<vmem>>, vector<1x256xf32>
    %32 = vector.shape_cast %31 : vector<1x256xf32> to vector<256xf32>
    %33 = vector.shape_cast %32 : vector<256xf32> to vector<1x256xf32>
    %34 = vector.broadcast %33 : vector<1x256xf32> to vector<48x256xf32>
    %35 = arith.mulf %30, %34 : vector<48x256xf32>
    %36 = vector.broadcast %29 : vector<48x1xf32> to vector<48x256xf32>
    %37 = arith.mulf %36, %35 : vector<48x256xf32>
    %38 = arith.addf %28, %37 : vector<48x256xf32>
    %c0_17 = arith.constant 0 : index
    %c3 = arith.constant 3 : index
    %39 = vector.load %arg4[%c0_17, %c3] : memref<48x9xf32, #tpu.memory_space<vmem>>, vector<48x1xf32>
    %c1_i32 = arith.constant 1 : i32
    %40 = tpu.dynamic_rotate %7 by %c1_i32 dim 1 : vector<48x256xf32>, i32 -> vector<48x256xf32>
    %c3_18 = arith.constant 3 : index
    %c0_19 = arith.constant 0 : index
    %41 = vector.load %arg6[%c3_18, %c0_19] : memref<9x256xf32, #tpu.memory_space<vmem>>, vector<1x256xf32>
    %42 = vector.shape_cast %41 : vector<1x256xf32> to vector<256xf32>
    %43 = vector.shape_cast %42 : vector<256xf32> to vector<1x256xf32>
    %44 = vector.broadcast %43 : vector<1x256xf32> to vector<48x256xf32>
    %45 = arith.mulf %40, %44 : vector<48x256xf32>
    %46 = vector.broadcast %39 : vector<48x1xf32> to vector<48x256xf32>
    %47 = arith.mulf %46, %45 : vector<48x256xf32>
    %48 = arith.addf %38, %47 : vector<48x256xf32>
    %c0_20 = arith.constant 0 : index
    %c4 = arith.constant 4 : index
    %49 = vector.load %arg4[%c0_20, %c4] : memref<48x9xf32, #tpu.memory_space<vmem>>, vector<48x1xf32>
    %50 = vector.broadcast %49 : vector<48x1xf32> to vector<48x256xf32>
    %51 = arith.mulf %50, %7 : vector<48x256xf32>
    %52 = arith.addf %48, %51 : vector<48x256xf32>
    %c0_21 = arith.constant 0 : index
    %c5 = arith.constant 5 : index
    %53 = vector.load %arg4[%c0_21, %c5] : memref<48x9xf32, #tpu.memory_space<vmem>>, vector<48x1xf32>
    %c255_i32 = arith.constant 255 : i32
    %54 = tpu.dynamic_rotate %7 by %c255_i32 dim 1 : vector<48x256xf32>, i32 -> vector<48x256xf32>
    %c5_22 = arith.constant 5 : index
    %c0_23 = arith.constant 0 : index
    %55 = vector.load %arg6[%c5_22, %c0_23] : memref<9x256xf32, #tpu.memory_space<vmem>>, vector<1x256xf32>
    %56 = vector.shape_cast %55 : vector<1x256xf32> to vector<256xf32>
    %57 = vector.shape_cast %56 : vector<256xf32> to vector<1x256xf32>
    %58 = vector.broadcast %57 : vector<1x256xf32> to vector<48x256xf32>
    %59 = arith.mulf %54, %58 : vector<48x256xf32>
    %60 = vector.broadcast %53 : vector<48x1xf32> to vector<48x256xf32>
    %61 = arith.mulf %60, %59 : vector<48x256xf32>
    %62 = arith.addf %52, %61 : vector<48x256xf32>
    %c0_24 = arith.constant 0 : index
    %c6 = arith.constant 6 : index
    %63 = vector.load %arg4[%c0_24, %c6] : memref<48x9xf32, #tpu.memory_space<vmem>>, vector<48x1xf32>
    %c241_i32 = arith.constant 241 : i32
    %64 = tpu.dynamic_rotate %7 by %c241_i32 dim 1 : vector<48x256xf32>, i32 -> vector<48x256xf32>
    %c6_25 = arith.constant 6 : index
    %c0_26 = arith.constant 0 : index
    %65 = vector.load %arg6[%c6_25, %c0_26] : memref<9x256xf32, #tpu.memory_space<vmem>>, vector<1x256xf32>
    %66 = vector.shape_cast %65 : vector<1x256xf32> to vector<256xf32>
    %67 = vector.shape_cast %66 : vector<256xf32> to vector<1x256xf32>
    %68 = vector.broadcast %67 : vector<1x256xf32> to vector<48x256xf32>
    %69 = arith.mulf %64, %68 : vector<48x256xf32>
    %70 = vector.broadcast %63 : vector<48x1xf32> to vector<48x256xf32>
    %71 = arith.mulf %70, %69 : vector<48x256xf32>
    %72 = arith.addf %62, %71 : vector<48x256xf32>
    %c0_27 = arith.constant 0 : index
    %c7 = arith.constant 7 : index
    %73 = vector.load %arg4[%c0_27, %c7] : memref<48x9xf32, #tpu.memory_space<vmem>>, vector<48x1xf32>
    %c240_i32 = arith.constant 240 : i32
    %74 = tpu.dynamic_rotate %7 by %c240_i32 dim 1 : vector<48x256xf32>, i32 -> vector<48x256xf32>
    %c7_28 = arith.constant 7 : index
    %c0_29 = arith.constant 0 : index
    %75 = vector.load %arg6[%c7_28, %c0_29] : memref<9x256xf32, #tpu.memory_space<vmem>>, vector<1x256xf32>
    %76 = vector.shape_cast %75 : vector<1x256xf32> to vector<256xf32>
    %77 = vector.shape_cast %76 : vector<256xf32> to vector<1x256xf32>
    %78 = vector.broadcast %77 : vector<1x256xf32> to vector<48x256xf32>
    %79 = arith.mulf %74, %78 : vector<48x256xf32>
    %80 = vector.broadcast %73 : vector<48x1xf32> to vector<48x256xf32>
    %81 = arith.mulf %80, %79 : vector<48x256xf32>
    %82 = arith.addf %72, %81 : vector<48x256xf32>
    %c0_30 = arith.constant 0 : index
    %c8 = arith.constant 8 : index
    %83 = vector.load %arg4[%c0_30, %c8] : memref<48x9xf32, #tpu.memory_space<vmem>>, vector<48x1xf32>
    %c239_i32 = arith.constant 239 : i32
    %84 = tpu.dynamic_rotate %7 by %c239_i32 dim 1 : vector<48x256xf32>, i32 -> vector<48x256xf32>
    %c8_31 = arith.constant 8 : index
    %c0_32 = arith.constant 0 : index
    %85 = vector.load %arg6[%c8_31, %c0_32] : memref<9x256xf32, #tpu.memory_space<vmem>>, vector<1x256xf32>
    %86 = vector.shape_cast %85 : vector<1x256xf32> to vector<256xf32>
    %87 = vector.shape_cast %86 : vector<256xf32> to vector<1x256xf32>
    %88 = vector.broadcast %87 : vector<1x256xf32> to vector<48x256xf32>
    %89 = arith.mulf %84, %88 : vector<48x256xf32>
    %90 = vector.broadcast %83 : vector<48x1xf32> to vector<48x256xf32>
    %91 = arith.mulf %90, %89 : vector<48x256xf32>
    %92 = arith.addf %82, %91 : vector<48x256xf32>
    %c0_33 = arith.constant 0 : index
    %c0_34 = arith.constant 0 : index
    %93 = vector.load %arg5[%c0_33, %c0_34] : memref<48x1xf32, #tpu.memory_space<vmem>>, vector<48x1xf32>
    %94 = vector.broadcast %93 : vector<48x1xf32> to vector<48x256xf32>
    %95 = arith.addf %92, %94 : vector<48x256xf32>
    %96 = vector.extract_strided_slice %95 {offsets = [0, 0], sizes = [32, 256], strides = [1, 1]} : vector<48x256xf32> to vector<32x256xf32>
    %97 = arith.truncf %96 : vector<32x256xf32> to vector<32x256xbf16>
    %c0_35 = arith.constant 0 : index
    %c0_36 = arith.constant 0 : index
    %c0_37 = arith.constant 0 : index
    %98 = vector.load %arg7[%c0_35, %c0_36, %c0_37] : memref<1x32x256xbf16, #tpu.memory_space<vmem>>, vector<1x32x256xbf16>
    %99 = vector.shape_cast %98 : vector<1x32x256xbf16> to vector<32x256xbf16>
    %100 = vector.shape_cast %97 : vector<32x256xbf16> to vector<1x32x256xbf16>
    tpu.vector_store %arg7[%c0_35, %c0_36, %c0_37], %100 {strides = array<i32>} : memref<1x32x256xbf16, #tpu.memory_space<vmem>>, vector<1x32x256xbf16>,
    %101 = vector.extract_strided_slice %95 {offsets = [32, 0], sizes = [16, 256], strides = [1, 1]} : vector<48x256xf32> to vector<16x256xf32>
    %102 = arith.truncf %101 : vector<16x256xf32> to vector<16x256xbf16>
    %c0_38 = arith.constant 0 : index
    %c0_39 = arith.constant 0 : index
    %c0_40 = arith.constant 0 : index
    %103 = vector.load %arg8[%c0_38, %c0_39, %c0_40] : memref<1x16x256xbf16, #tpu.memory_space<vmem>>, vector<1x16x256xbf16>
    %104 = vector.shape_cast %103 : vector<1x16x256xbf16> to vector<16x256xbf16>
    %105 = vector.shape_cast %102 : vector<16x256xbf16> to vector<1x16x256xbf16>
    tpu.vector_store %arg8[%c0_38, %c0_39, %c0_40], %105 {strides = array<i32>} : memref<1x16x256xbf16, #tpu.memory_space<vmem>>, vector<1x16x256xbf16>,
    return
  }
  func.func @transform_0(%arg0: i32) -> (i32, i32, i32) {
    %c0_i32 = arith.constant 0 : i32
    %c0_i32_0 = arith.constant 0 : i32
    %c0_i32_1 = arith.constant 0 : i32
    return %arg0, %c0_i32, %c0_i32_0 : i32, i32, i32
  }
  func.func @transform_1(%arg0: i32) -> (i32, i32) {
    %c0_i32 = arith.constant 0 : i32
    %c0_i32_0 = arith.constant 0 : i32
    %c0_i32_1 = arith.constant 0 : i32
    return %c0_i32, %c0_i32_0 : i32, i32
  }
  func.func @transform_2(%arg0: i32) -> (i32, i32) {
    %c0_i32 = arith.constant 0 : i32
    %c0_i32_0 = arith.constant 0 : i32
    %c0_i32_1 = arith.constant 0 : i32
    return %c0_i32, %c0_i32_0 : i32, i32
  }
  func.func @transform_3(%arg0: i32) -> (i32, i32) {
    %c0_i32 = arith.constant 0 : i32
    %c0_i32_0 = arith.constant 0 : i32
    %c0_i32_1 = arith.constant 0 : i32
    return %c0_i32, %c0_i32_0 : i32, i32
  }
  func.func @transform_4(%arg0: i32) -> (i32, i32) {
    %c0_i32 = arith.constant 0 : i32
    %c0_i32_0 = arith.constant 0 : i32
    %c0_i32_1 = arith.constant 0 : i32
    return %c0_i32, %c0_i32_0 : i32, i32
  }
  func.func @transform_5(%arg0: i32) -> (i32, i32) {
    %c0_i32 = arith.constant 0 : i32
    %c0_i32_0 = arith.constant 0 : i32
    %c0_i32_1 = arith.constant 0 : i32
    return %c0_i32, %c0_i32_0 : i32, i32
  }
  func.func @transform_6(%arg0: i32) -> (i32, i32, i32) {
    %c0_i32 = arith.constant 0 : i32
    %c0_i32_0 = arith.constant 0 : i32
    %c0_i32_1 = arith.constant 0 : i32
    return %arg0, %c0_i32, %c0_i32_0 : i32, i32, i32
  }
  func.func @transform_7(%arg0: i32) -> (i32, i32, i32) {
    %c0_i32 = arith.constant 0 : i32
    %c0_i32_0 = arith.constant 0 : i32
    %c0_i32_1 = arith.constant 0 : i32
    return %arg0, %c0_i32, %c0_i32_0 : i32, i32, i32
  }
}

module attributes {stable_mosaic.version = 11 : i64} {
  func.func @_score_kernel(%arg0: i32, %arg1: i32, %arg2: memref<1x32x128xbf16, #tpu.memory_space<vmem>>, %arg3: memref<1x32x128xbf16, #tpu.memory_space<vmem>>, %arg4: memref<2x16x1xf32, #tpu.memory_space<vmem>>, %arg5: memref<16x16xf32, #tpu.memory_space<vmem>>, %arg6: memref<1x2x16x16xf32, #tpu.memory_space<vmem>>, %arg7: memref<16x16xf32, #tpu.memory_space<vmem>>, %arg8: memref<16x16xf32, #tpu.memory_space<vmem>>, %arg9: memref<16x1xf32, #tpu.memory_space<vmem>>, %arg10: memref<16x1xf32, #tpu.memory_space<vmem>>, %arg11: memref<1x16xf32, #tpu.memory_space<vmem>>, %arg12: memref<1x16xf32, #tpu.memory_space<vmem>>) attributes {dimension_semantics = [#tpu.dimension_semantics<parallel>, #tpu.dimension_semantics<arbitrary>], iteration_bounds = array<i64: 2, 2>, scalar_prefetch = 0 : i64, scratch_operands = 6 : i64, tpu.core_type = #tpu.core_type<tc>, window_params = [{transform_indices = @transform_0, window_bounds = array<i64: 1, 32, 128>}, {transform_indices = @transform_1, window_bounds = array<i64: 1, 32, 128>}, {pipeline_mode = #tpu.pipeline_mode<synchronous>, transform_indices = @transform_2, window_bounds = array<i64: 2, 16, 1>}, {pipeline_mode = #tpu.pipeline_mode<synchronous>, transform_indices = @transform_3, window_bounds = array<i64: 16, 16>}, {transform_indices = @transform_4, window_bounds = array<i64: 1, 2, 16, 16>}]} {
    %c0_i32 = arith.constant 0 : i32
    %0 = arith.cmpi eq, %arg1, %c0_i32 : i32
    %1 = arith.extui %0 : i1 to i32
    %c0_i32_0 = arith.constant 0 : i32
    %2 = arith.cmpi ne, %1, %c0_i32_0 : i32
    scf.if %2 {
      %cst_38 = arith.constant 0.000000e+00 : f32
      %50 = vector.broadcast %cst_38 : f32 to vector<16x16xf32>
      %c0_39 = arith.constant 0 : index
      %c0_40 = arith.constant 0 : index
      %51 = vector.load %arg7[%c0_39, %c0_40] : memref<16x16xf32, #tpu.memory_space<vmem>>, vector<16x16xf32>
      tpu.vector_store %arg7[%c0_39, %c0_40], %50 {strides = array<i32>} : memref<16x16xf32, #tpu.memory_space<vmem>>, vector<16x16xf32>,
      %cst_41 = arith.constant 0.000000e+00 : f32
      %52 = vector.broadcast %cst_41 : f32 to vector<16x16xf32>
      %c0_42 = arith.constant 0 : index
      %c0_43 = arith.constant 0 : index
      %53 = vector.load %arg8[%c0_42, %c0_43] : memref<16x16xf32, #tpu.memory_space<vmem>>, vector<16x16xf32>
      tpu.vector_store %arg8[%c0_42, %c0_43], %52 {strides = array<i32>} : memref<16x16xf32, #tpu.memory_space<vmem>>, vector<16x16xf32>,
      %cst_44 = arith.constant 0.000000e+00 : f32
      %54 = vector.broadcast %cst_44 : f32 to vector<16x1xf32>
      %c0_45 = arith.constant 0 : index
      %c0_46 = arith.constant 0 : index
      %55 = vector.load %arg9[%c0_45, %c0_46] : memref<16x1xf32, #tpu.memory_space<vmem>>, vector<16x1xf32>
      tpu.vector_store %arg9[%c0_45, %c0_46], %54 {strides = array<i32>} : memref<16x1xf32, #tpu.memory_space<vmem>>, vector<16x1xf32>,
      %cst_47 = arith.constant 0.000000e+00 : f32
      %56 = vector.broadcast %cst_47 : f32 to vector<16x1xf32>
      %c0_48 = arith.constant 0 : index
      %c0_49 = arith.constant 0 : index
      %57 = vector.load %arg10[%c0_48, %c0_49] : memref<16x1xf32, #tpu.memory_space<vmem>>, vector<16x1xf32>
      tpu.vector_store %arg10[%c0_48, %c0_49], %56 {strides = array<i32>} : memref<16x1xf32, #tpu.memory_space<vmem>>, vector<16x1xf32>,
      %cst_50 = arith.constant 0.000000e+00 : f32
      %58 = vector.broadcast %cst_50 : f32 to vector<1x16xf32>
      %c0_51 = arith.constant 0 : index
      %c0_52 = arith.constant 0 : index
      %59 = vector.load %arg11[%c0_51, %c0_52] : memref<1x16xf32, #tpu.memory_space<vmem>>, vector<1x16xf32>
      tpu.vector_store %arg11[%c0_51, %c0_52], %58 {strides = array<i32>} : memref<1x16xf32, #tpu.memory_space<vmem>>, vector<1x16xf32>,
      %cst_53 = arith.constant 0.000000e+00 : f32
      %60 = vector.broadcast %cst_53 : f32 to vector<1x16xf32>
      %c0_54 = arith.constant 0 : index
      %c0_55 = arith.constant 0 : index
      %61 = vector.load %arg12[%c0_54, %c0_55] : memref<1x16xf32, #tpu.memory_space<vmem>>, vector<1x16xf32>
      tpu.vector_store %arg12[%c0_54, %c0_55], %60 {strides = array<i32>} : memref<1x16xf32, #tpu.memory_space<vmem>>, vector<1x16xf32>,
    } else {
    }
    %c0 = arith.constant 0 : index
    %c0_1 = arith.constant 0 : index
    %c0_2 = arith.constant 0 : index
    %3 = vector.load %arg2[%c0, %c0_1, %c0_2] : memref<1x32x128xbf16, #tpu.memory_space<vmem>>, vector<1x32x128xbf16>
    %4 = vector.shape_cast %3 : vector<1x32x128xbf16> to vector<32x128xbf16>
    %c0_3 = arith.constant 0 : index
    %c0_4 = arith.constant 0 : index
    %c0_5 = arith.constant 0 : index
    %5 = vector.load %arg3[%c0_3, %c0_4, %c0_5] : memref<1x32x128xbf16, #tpu.memory_space<vmem>>, vector<1x32x128xbf16>
    %6 = vector.shape_cast %5 : vector<1x32x128xbf16> to vector<32x128xbf16>
    %7 = vector.extract_strided_slice %4 {offsets = [0, 0], sizes = [16, 128], strides = [1, 1]} : vector<32x128xbf16> to vector<16x128xbf16>
    %8 = vector.extract_strided_slice %4 {offsets = [16, 0], sizes = [16, 128], strides = [1, 1]} : vector<32x128xbf16> to vector<16x128xbf16>
    %9 = vector.extract_strided_slice %6 {offsets = [0, 0], sizes = [16, 128], strides = [1, 1]} : vector<32x128xbf16> to vector<16x128xbf16>
    %10 = vector.extract_strided_slice %6 {offsets = [16, 0], sizes = [16, 128], strides = [1, 1]} : vector<32x128xbf16> to vector<16x128xbf16>
    %c0_6 = arith.constant 0 : index
    %c0_7 = arith.constant 0 : index
    %11 = vector.load %arg7[%c0_6, %c0_7] : memref<16x16xf32, #tpu.memory_space<vmem>>, vector<16x16xf32>
    %cst = arith.constant dense<0.000000e+00> : vector<16x16xf32>
    %12 = tpu.matmul %7, %10, %cst {dimension_numbers = #tpu.dot_dimension_numbers<[1], [1], [0], [0], [0, 0, 1, 0], [], []>} : vector<16x128xbf16>, vector<16x128xbf16>, vector<16x16xf32> -> vector<16x16xf32>
    %13 = arith.addf %11, %12 : vector<16x16xf32>
    %c0_8 = arith.constant 0 : index
    %c0_9 = arith.constant 0 : index
    %14 = vector.load %arg7[%c0_8, %c0_9] : memref<16x16xf32, #tpu.memory_space<vmem>>, vector<16x16xf32>
    tpu.vector_store %arg7[%c0_8, %c0_9], %13 {strides = array<i32>} : memref<16x16xf32, #tpu.memory_space<vmem>>, vector<16x16xf32>,
    %c0_10 = arith.constant 0 : index
    %c0_11 = arith.constant 0 : index
    %15 = vector.load %arg8[%c0_10, %c0_11] : memref<16x16xf32, #tpu.memory_space<vmem>>, vector<16x16xf32>
    %cst_12 = arith.constant dense<0.000000e+00> : vector<16x16xf32>
    %16 = tpu.matmul %9, %8, %cst_12 {dimension_numbers = #tpu.dot_dimension_numbers<[1], [1], [0], [0], [0, 0, 1, 0], [], []>} : vector<16x128xbf16>, vector<16x128xbf16>, vector<16x16xf32> -> vector<16x16xf32>
    %17 = arith.addf %15, %16 : vector<16x16xf32>
    %c0_13 = arith.constant 0 : index
    %c0_14 = arith.constant 0 : index
    %18 = vector.load %arg8[%c0_13, %c0_14] : memref<16x16xf32, #tpu.memory_space<vmem>>, vector<16x16xf32>
    tpu.vector_store %arg8[%c0_13, %c0_14], %17 {strides = array<i32>} : memref<16x16xf32, #tpu.memory_space<vmem>>, vector<16x16xf32>,
    %c0_15 = arith.constant 0 : index
    %c0_16 = arith.constant 0 : index
    %19 = vector.load %arg9[%c0_15, %c0_16] : memref<16x1xf32, #tpu.memory_space<vmem>>, vector<16x1xf32>
    %20 = arith.extf %7 : vector<16x128xbf16> to vector<16x128xf32>
    %21 = arith.mulf %20, %20 : vector<16x128xf32>
    %cst_17 = arith.constant dense<0.000000e+00> : vector<16xf32>
    %22 = vector.multi_reduction <add>, %21, %cst_17 [1] : vector<16x128xf32> to vector<16xf32>
    %23 = vector.shape_cast %22 : vector<16xf32> to vector<16x1xf32>
    %24 = arith.addf %19, %23 : vector<16x1xf32>
    %c0_18 = arith.constant 0 : index
    %c0_19 = arith.constant 0 : index
    %25 = vector.load %arg9[%c0_18, %c0_19] : memref<16x1xf32, #tpu.memory_space<vmem>>, vector<16x1xf32>
    tpu.vector_store %arg9[%c0_18, %c0_19], %24 {strides = array<i32>} : memref<16x1xf32, #tpu.memory_space<vmem>>, vector<16x1xf32>,
    %c0_20 = arith.constant 0 : index
    %c0_21 = arith.constant 0 : index
    %26 = vector.load %arg10[%c0_20, %c0_21] : memref<16x1xf32, #tpu.memory_space<vmem>>, vector<16x1xf32>
    %27 = arith.extf %9 : vector<16x128xbf16> to vector<16x128xf32>
    %28 = arith.mulf %27, %27 : vector<16x128xf32>
    %cst_22 = arith.constant dense<0.000000e+00> : vector<16xf32>
    %29 = vector.multi_reduction <add>, %28, %cst_22 [1] : vector<16x128xf32> to vector<16xf32>
    %30 = vector.shape_cast %29 : vector<16xf32> to vector<16x1xf32>
    %31 = arith.addf %26, %30 : vector<16x1xf32>
    %c0_23 = arith.constant 0 : index
    %c0_24 = arith.constant 0 : index
    %32 = vector.load %arg10[%c0_23, %c0_24] : memref<16x1xf32, #tpu.memory_space<vmem>>, vector<16x1xf32>
    tpu.vector_store %arg10[%c0_23, %c0_24], %31 {strides = array<i32>} : memref<16x1xf32, #tpu.memory_space<vmem>>, vector<16x1xf32>,
    %c0_25 = arith.constant 0 : index
    %c0_26 = arith.constant 0 : index
    %33 = vector.load %arg11[%c0_25, %c0_26] : memref<1x16xf32, #tpu.memory_space<vmem>>, vector<1x16xf32>
    %34 = arith.extf %8 : vector<16x128xbf16> to vector<16x128xf32>
    %cst_27 = arith.constant 1.000000e+00 : f32
    %35 = vector.broadcast %cst_27 : f32 to vector<1x128xf32>
    %36 = arith.mulf %34, %34 : vector<16x128xf32>
    %cst_28 = arith.constant dense<0.000000e+00> : vector<1x16xf32>
    %37 = tpu.matmul %35, %36, %cst_28 {dimension_numbers = #tpu.dot_dimension_numbers<[1], [1], [0], [0], [0, 0, 1, 0], [], []>} : vector<1x128xf32>, vector<16x128xf32>, vector<1x16xf32> -> vector<1x16xf32>
    %38 = arith.addf %33, %37 : vector<1x16xf32>
    %c0_29 = arith.constant 0 : index
    %c0_30 = arith.constant 0 : index
    %39 = vector.load %arg11[%c0_29, %c0_30] : memref<1x16xf32, #tpu.memory_space<vmem>>, vector<1x16xf32>
    tpu.vector_store %arg11[%c0_29, %c0_30], %38 {strides = array<i32>} : memref<1x16xf32, #tpu.memory_space<vmem>>, vector<1x16xf32>,
    %c0_31 = arith.constant 0 : index
    %c0_32 = arith.constant 0 : index
    %40 = vector.load %arg12[%c0_31, %c0_32] : memref<1x16xf32, #tpu.memory_space<vmem>>, vector<1x16xf32>
    %41 = arith.extf %10 : vector<16x128xbf16> to vector<16x128xf32>
    %cst_33 = arith.constant 1.000000e+00 : f32
    %42 = vector.broadcast %cst_33 : f32 to vector<1x128xf32>
    %43 = arith.mulf %41, %41 : vector<16x128xf32>
    %cst_34 = arith.constant dense<0.000000e+00> : vector<1x16xf32>
    %44 = tpu.matmul %42, %43, %cst_34 {dimension_numbers = #tpu.dot_dimension_numbers<[1], [1], [0], [0], [0, 0, 1, 0], [], []>} : vector<1x128xf32>, vector<16x128xf32>, vector<1x16xf32> -> vector<1x16xf32>
    %45 = arith.addf %40, %44 : vector<1x16xf32>
    %c0_35 = arith.constant 0 : index
    %c0_36 = arith.constant 0 : index
    %46 = vector.load %arg12[%c0_35, %c0_36] : memref<1x16xf32, #tpu.memory_space<vmem>>, vector<1x16xf32>
    tpu.vector_store %arg12[%c0_35, %c0_36], %45 {strides = array<i32>} : memref<1x16xf32, #tpu.memory_space<vmem>>, vector<1x16xf32>,
    %c1_i32 = arith.constant 1 : i32
    %47 = arith.cmpi eq, %arg1, %c1_i32 : i32
    %48 = arith.extui %47 : i1 to i32
    %c0_i32_37 = arith.constant 0 : i32
    %49 = arith.cmpi ne, %48, %c0_i32_37 : i32
    scf.if %49 {
      %c0_38 = arith.constant 0 : index
      %c0_39 = arith.constant 0 : index
      %50 = vector.load %arg7[%c0_38, %c0_39] : memref<16x16xf32, #tpu.memory_space<vmem>>, vector<16x16xf32>
      %c0_40 = arith.constant 0 : index
      %c0_41 = arith.constant 0 : index
      %51 = vector.load %arg9[%c0_40, %c0_41] : memref<16x1xf32, #tpu.memory_space<vmem>>, vector<16x1xf32>
      %cst_42 = arith.constant 1.000000e-24 : f32
      %52 = vector.broadcast %cst_42 : f32 to vector<16x1xf32>
      %53 = arith.maximumf %51, %52 : vector<16x1xf32>
      %54 = math.rsqrt %53 : vector<16x1xf32>
      %c0_43 = arith.constant 0 : index
      %c0_44 = arith.constant 0 : index
      %55 = vector.load %arg12[%c0_43, %c0_44] : memref<1x16xf32, #tpu.memory_space<vmem>>, vector<1x16xf32>
      %cst_45 = arith.constant 1.000000e-24 : f32
      %56 = vector.broadcast %cst_45 : f32 to vector<1x16xf32>
      %57 = arith.maximumf %55, %56 : vector<1x16xf32>
      %58 = math.rsqrt %57 : vector<1x16xf32>
      %c0_46 = arith.constant 0 : index
      %c0_47 = arith.constant 0 : index
      %c0_48 = arith.constant 0 : index
      %59 = vector.load %arg4[%c0_46, %c0_47, %c0_48] : memref<2x16x1xf32, #tpu.memory_space<vmem>>, vector<1x16x1xf32>
      %60 = vector.shape_cast %59 : vector<1x16x1xf32> to vector<16x1xf32>
      %61 = arith.mulf %54, %60 : vector<16x1xf32>
      %62 = vector.broadcast %61 : vector<16x1xf32> to vector<16x16xf32>
      %63 = arith.mulf %50, %62 : vector<16x16xf32>
      %64 = vector.broadcast %58 : vector<1x16xf32> to vector<16x16xf32>
      %65 = arith.mulf %63, %64 : vector<16x16xf32>
      %c0_49 = arith.constant 0 : index
      %c0_50 = arith.constant 0 : index
      %66 = vector.load %arg5[%c0_49, %c0_50] : memref<16x16xf32, #tpu.memory_space<vmem>>, vector<16x16xf32>
      %67 = arith.addf %65, %66 : vector<16x16xf32>
      %cst_51 = arith.constant dense<0xFF800000> : vector<16xf32>
      %68 = vector.multi_reduction <maximumf>, %67, %cst_51 [1] : vector<16x16xf32> to vector<16xf32>
      %69 = vector.shape_cast %68 : vector<16xf32> to vector<16x1xf32>
      %70 = vector.broadcast %69 : vector<16x1xf32> to vector<16x16xf32>
      %71 = arith.subf %67, %70 : vector<16x16xf32>
      %72 = math.exp %71 : vector<16x16xf32>
      %cst_52 = arith.constant dense<0.000000e+00> : vector<16xf32>
      %73 = vector.multi_reduction <add>, %72, %cst_52 [1] : vector<16x16xf32> to vector<16xf32>
      %74 = vector.shape_cast %73 : vector<16xf32> to vector<16x1xf32>
      %75 = tpu.reciprocal %74 {approx = true} : vector<16x1xf32> -> vector<16x1xf32>
      %76 = vector.broadcast %75 : vector<16x1xf32> to vector<16x16xf32>
      %77 = arith.mulf %72, %76 : vector<16x16xf32>
      %c0_53 = arith.constant 0 : index
      %c0_54 = arith.constant 0 : index
      %c0_55 = arith.constant 0 : index
      %c0_56 = arith.constant 0 : index
      %78 = vector.load %arg6[%c0_53, %c0_54, %c0_55, %c0_56] : memref<1x2x16x16xf32, #tpu.memory_space<vmem>>, vector<1x1x16x16xf32>
      %79 = vector.shape_cast %78 : vector<1x1x16x16xf32> to vector<16x16xf32>
      %80 = vector.shape_cast %77 : vector<16x16xf32> to vector<1x1x16x16xf32>
      tpu.vector_store %arg6[%c0_53, %c0_54, %c0_55, %c0_56], %80 {strides = array<i32>} : memref<1x2x16x16xf32, #tpu.memory_space<vmem>>, vector<1x1x16x16xf32>,
      %c0_57 = arith.constant 0 : index
      %c0_58 = arith.constant 0 : index
      %81 = vector.load %arg8[%c0_57, %c0_58] : memref<16x16xf32, #tpu.memory_space<vmem>>, vector<16x16xf32>
      %c0_59 = arith.constant 0 : index
      %c0_60 = arith.constant 0 : index
      %82 = vector.load %arg10[%c0_59, %c0_60] : memref<16x1xf32, #tpu.memory_space<vmem>>, vector<16x1xf32>
      %cst_61 = arith.constant 1.000000e-24 : f32
      %83 = vector.broadcast %cst_61 : f32 to vector<16x1xf32>
      %84 = arith.maximumf %82, %83 : vector<16x1xf32>
      %85 = math.rsqrt %84 : vector<16x1xf32>
      %c0_62 = arith.constant 0 : index
      %c0_63 = arith.constant 0 : index
      %86 = vector.load %arg11[%c0_62, %c0_63] : memref<1x16xf32, #tpu.memory_space<vmem>>, vector<1x16xf32>
      %cst_64 = arith.constant 1.000000e-24 : f32
      %87 = vector.broadcast %cst_64 : f32 to vector<1x16xf32>
      %88 = arith.maximumf %86, %87 : vector<1x16xf32>
      %89 = math.rsqrt %88 : vector<1x16xf32>
      %c1 = arith.constant 1 : index
      %c0_65 = arith.constant 0 : index
      %c0_66 = arith.constant 0 : index
      %90 = vector.load %arg4[%c1, %c0_65, %c0_66] : memref<2x16x1xf32, #tpu.memory_space<vmem>>, vector<1x16x1xf32>
      %91 = vector.shape_cast %90 : vector<1x16x1xf32> to vector<16x1xf32>
      %92 = arith.mulf %85, %91 : vector<16x1xf32>
      %93 = vector.broadcast %92 : vector<16x1xf32> to vector<16x16xf32>
      %94 = arith.mulf %81, %93 : vector<16x16xf32>
      %95 = vector.broadcast %89 : vector<1x16xf32> to vector<16x16xf32>
      %96 = arith.mulf %94, %95 : vector<16x16xf32>
      %c0_67 = arith.constant 0 : index
      %c0_68 = arith.constant 0 : index
      %97 = vector.load %arg5[%c0_67, %c0_68] : memref<16x16xf32, #tpu.memory_space<vmem>>, vector<16x16xf32>
      %98 = arith.addf %96, %97 : vector<16x16xf32>
      %cst_69 = arith.constant dense<0xFF800000> : vector<16xf32>
      %99 = vector.multi_reduction <maximumf>, %98, %cst_69 [1] : vector<16x16xf32> to vector<16xf32>
      %100 = vector.shape_cast %99 : vector<16xf32> to vector<16x1xf32>
      %101 = vector.broadcast %100 : vector<16x1xf32> to vector<16x16xf32>
      %102 = arith.subf %98, %101 : vector<16x16xf32>
      %103 = math.exp %102 : vector<16x16xf32>
      %cst_70 = arith.constant dense<0.000000e+00> : vector<16xf32>
      %104 = vector.multi_reduction <add>, %103, %cst_70 [1] : vector<16x16xf32> to vector<16xf32>
      %105 = vector.shape_cast %104 : vector<16xf32> to vector<16x1xf32>
      %106 = tpu.reciprocal %105 {approx = true} : vector<16x1xf32> -> vector<16x1xf32>
      %107 = vector.broadcast %106 : vector<16x1xf32> to vector<16x16xf32>
      %108 = arith.mulf %103, %107 : vector<16x16xf32>
      %c0_71 = arith.constant 0 : index
      %c1_72 = arith.constant 1 : index
      %c0_73 = arith.constant 0 : index
      %c0_74 = arith.constant 0 : index
      %109 = vector.load %arg6[%c0_71, %c1_72, %c0_73, %c0_74] : memref<1x2x16x16xf32, #tpu.memory_space<vmem>>, vector<1x1x16x16xf32>
      %110 = vector.shape_cast %109 : vector<1x1x16x16xf32> to vector<16x16xf32>
      %111 = vector.shape_cast %108 : vector<16x16xf32> to vector<1x1x16x16xf32>
      tpu.vector_store %arg6[%c0_71, %c1_72, %c0_73, %c0_74], %111 {strides = array<i32>} : memref<1x2x16x16xf32, #tpu.memory_space<vmem>>, vector<1x1x16x16xf32>,
    } else {
    }
    return
  }
  func.func @transform_0(%arg0: i32, %arg1: i32) -> (i32, i32, i32) {
    %c0_i32 = arith.constant 0 : i32
    %c0_i32_0 = arith.constant 0 : i32
    return %arg0, %c0_i32, %arg1 : i32, i32, i32
  }
  func.func @transform_1(%arg0: i32, %arg1: i32) -> (i32, i32, i32) {
    %c0_i32 = arith.constant 0 : i32
    %c0_i32_0 = arith.constant 0 : i32
    return %arg0, %c0_i32, %arg1 : i32, i32, i32
  }
  func.func @transform_2(%arg0: i32, %arg1: i32) -> (i32, i32, i32) {
    %c0_i32 = arith.constant 0 : i32
    %c0_i32_0 = arith.constant 0 : i32
    %c0_i32_1 = arith.constant 0 : i32
    %c0_i32_2 = arith.constant 0 : i32
    return %c0_i32, %c0_i32_0, %c0_i32_1 : i32, i32, i32
  }
  func.func @transform_3(%arg0: i32, %arg1: i32) -> (i32, i32) {
    %c0_i32 = arith.constant 0 : i32
    %c0_i32_0 = arith.constant 0 : i32
    %c0_i32_1 = arith.constant 0 : i32
    return %c0_i32, %c0_i32_0 : i32, i32
  }
  func.func @transform_4(%arg0: i32, %arg1: i32) -> (i32, i32, i32, i32) {
    %c0_i32 = arith.constant 0 : i32
    %c0_i32_0 = arith.constant 0 : i32
    %c0_i32_1 = arith.constant 0 : i32
    %c0_i32_2 = arith.constant 0 : i32
    return %arg0, %c0_i32, %c0_i32_0, %c0_i32_1 : i32, i32, i32, i32
  }
}

module attributes {stable_mosaic.version = 11 : i64} {
  func.func @_tail_kernel(%arg0: i32, %arg1: i32, %arg2: memref<1x2x16x16xf32, #tpu.memory_space<vmem>>, %arg3: memref<1x16x128xbf16, #tpu.memory_space<vmem>>, %arg4: memref<1x16x128xbf16, #tpu.memory_space<vmem>>, %arg5: memref<1x16x128xf32, #tpu.memory_space<vmem>>, %arg6: memref<1x16x128xf32, #tpu.memory_space<vmem>>, %arg7: memref<16x16xbf16, #tpu.memory_space<vmem>>, %arg8: memref<16x1xf32, #tpu.memory_space<vmem>>, %arg9: memref<16x16xbf16, #tpu.memory_space<vmem>>, %arg10: memref<16x1xf32, #tpu.memory_space<vmem>>, %arg11: memref<16x32xbf16, #tpu.memory_space<vmem>>, %arg12: memref<16x1xf32, #tpu.memory_space<vmem>>, %arg13: memref<1x16x128xf32, #tpu.memory_space<vmem>>) attributes {dimension_semantics = [#tpu.dimension_semantics<parallel>, #tpu.dimension_semantics<parallel>], iteration_bounds = array<i64: 2, 2>, scalar_prefetch = 0 : i64, scratch_operands = 0 : i64, tpu.core_type = #tpu.core_type<tc>, window_params = [{transform_indices = @transform_0, window_bounds = array<i64: 1, 2, 16, 16>}, {transform_indices = @transform_1, window_bounds = array<i64: 1, 16, 128>}, {transform_indices = @transform_2, window_bounds = array<i64: 1, 16, 128>}, {transform_indices = @transform_3, window_bounds = array<i64: 1, 16, 128>}, {transform_indices = @transform_4, window_bounds = array<i64: 1, 16, 128>}, {pipeline_mode = #tpu.pipeline_mode<synchronous>, transform_indices = @transform_5, window_bounds = array<i64: 16, 16>}, {pipeline_mode = #tpu.pipeline_mode<synchronous>, transform_indices = @transform_6, window_bounds = array<i64: 16, 1>}, {pipeline_mode = #tpu.pipeline_mode<synchronous>, transform_indices = @transform_7, window_bounds = array<i64: 16, 16>}, {pipeline_mode = #tpu.pipeline_mode<synchronous>, transform_indices = @transform_8, window_bounds = array<i64: 16, 1>}, {pipeline_mode = #tpu.pipeline_mode<synchronous>, transform_indices = @transform_9, window_bounds = array<i64: 16, 32>}, {pipeline_mode = #tpu.pipeline_mode<synchronous>, transform_indices = @transform_10, window_bounds = array<i64: 16, 1>}, {transform_indices = @transform_11, window_bounds = array<i64: 1, 16, 128>}]} {
    %c0 = arith.constant 0 : index
    %c0_0 = arith.constant 0 : index
    %c0_1 = arith.constant 0 : index
    %c0_2 = arith.constant 0 : index
    %0 = vector.load %arg2[%c0, %c0_0, %c0_1, %c0_2] : memref<1x2x16x16xf32, #tpu.memory_space<vmem>>, vector<1x1x16x16xf32>
    %1 = vector.shape_cast %0 : vector<1x1x16x16xf32> to vector<16x16xf32>
    %2 = arith.truncf %1 : vector<16x16xf32> to vector<16x16xbf16>
    %c0_3 = arith.constant 0 : index
    %c1 = arith.constant 1 : index
    %c0_4 = arith.constant 0 : index
    %c0_5 = arith.constant 0 : index
    %3 = vector.load %arg2[%c0_3, %c1, %c0_4, %c0_5] : memref<1x2x16x16xf32, #tpu.memory_space<vmem>>, vector<1x1x16x16xf32>
    %4 = vector.shape_cast %3 : vector<1x1x16x16xf32> to vector<16x16xf32>
    %5 = arith.truncf %4 : vector<16x16xf32> to vector<16x16xbf16>
    %c0_6 = arith.constant 0 : index
    %c0_7 = arith.constant 0 : index
    %c0_8 = arith.constant 0 : index
    %6 = vector.load %arg3[%c0_6, %c0_7, %c0_8] : memref<1x16x128xbf16, #tpu.memory_space<vmem>>, vector<1x16x128xbf16>
    %7 = vector.shape_cast %6 : vector<1x16x128xbf16> to vector<16x128xbf16>
    %cst = arith.constant dense<0.000000e+00> : vector<16x128xf32>
    %8 = tpu.matmul %2, %7, %cst {dimension_numbers = #tpu.dot_dimension_numbers<[1], [0], [0], [1], [0, 0, 1, 1], [], []>} : vector<16x16xbf16>, vector<16x128xbf16>, vector<16x128xf32> -> vector<16x128xf32>
    %c0_9 = arith.constant 0 : index
    %c0_10 = arith.constant 0 : index
    %c0_11 = arith.constant 0 : index
    %9 = vector.load %arg4[%c0_9, %c0_10, %c0_11] : memref<1x16x128xbf16, #tpu.memory_space<vmem>>, vector<1x16x128xbf16>
    %10 = vector.shape_cast %9 : vector<1x16x128xbf16> to vector<16x128xbf16>
    %cst_12 = arith.constant dense<0.000000e+00> : vector<16x128xf32>
    %11 = tpu.matmul %5, %10, %cst_12 {dimension_numbers = #tpu.dot_dimension_numbers<[1], [0], [0], [1], [0, 0, 1, 1], [], []>} : vector<16x16xbf16>, vector<16x128xbf16>, vector<16x128xf32> -> vector<16x128xf32>
    %c0_13 = arith.constant 0 : index
    %c0_14 = arith.constant 0 : index
    %12 = vector.load %arg7[%c0_13, %c0_14] : memref<16x16xbf16, #tpu.memory_space<vmem>>, vector<16x16xbf16>
    %13 = arith.truncf %8 : vector<16x128xf32> to vector<16x128xbf16>
    %cst_15 = arith.constant dense<0.000000e+00> : vector<16x128xf32>
    %14 = tpu.matmul %12, %13, %cst_15 {dimension_numbers = #tpu.dot_dimension_numbers<[1], [0], [0], [1], [0, 0, 1, 1], [], []>} : vector<16x16xbf16>, vector<16x128xbf16>, vector<16x128xf32> -> vector<16x128xf32>
    %c0_16 = arith.constant 0 : index
    %c0_17 = arith.constant 0 : index
    %15 = vector.load %arg8[%c0_16, %c0_17] : memref<16x1xf32, #tpu.memory_space<vmem>>, vector<16x1xf32>
    %16 = vector.broadcast %15 : vector<16x1xf32> to vector<16x128xf32>
    %17 = arith.addf %14, %16 : vector<16x128xf32>
    %c0_18 = arith.constant 0 : index
    %c0_19 = arith.constant 0 : index
    %c0_20 = arith.constant 0 : index
    %18 = vector.load %arg5[%c0_18, %c0_19, %c0_20] : memref<1x16x128xf32, #tpu.memory_space<vmem>>, vector<1x16x128xf32>
    %19 = vector.shape_cast %18 : vector<1x16x128xf32> to vector<16x128xf32>
    %20 = arith.addf %17, %19 : vector<16x128xf32>
    %c0_21 = arith.constant 0 : index
    %c0_22 = arith.constant 0 : index
    %21 = vector.load %arg9[%c0_21, %c0_22] : memref<16x16xbf16, #tpu.memory_space<vmem>>, vector<16x16xbf16>
    %22 = arith.truncf %11 : vector<16x128xf32> to vector<16x128xbf16>
    %cst_23 = arith.constant dense<0.000000e+00> : vector<16x128xf32>
    %23 = tpu.matmul %21, %22, %cst_23 {dimension_numbers = #tpu.dot_dimension_numbers<[1], [0], [0], [1], [0, 0, 1, 1], [], []>} : vector<16x16xbf16>, vector<16x128xbf16>, vector<16x128xf32> -> vector<16x128xf32>
    %c0_24 = arith.constant 0 : index
    %c0_25 = arith.constant 0 : index
    %24 = vector.load %arg10[%c0_24, %c0_25] : memref<16x1xf32, #tpu.memory_space<vmem>>, vector<16x1xf32>
    %25 = vector.broadcast %24 : vector<16x1xf32> to vector<16x128xf32>
    %26 = arith.addf %23, %25 : vector<16x128xf32>
    %c0_26 = arith.constant 0 : index
    %c0_27 = arith.constant 0 : index
    %c0_28 = arith.constant 0 : index
    %27 = vector.load %arg6[%c0_26, %c0_27, %c0_28] : memref<1x16x128xf32, #tpu.memory_space<vmem>>, vector<1x16x128xf32>
    %28 = vector.shape_cast %27 : vector<1x16x128xf32> to vector<16x128xf32>
    %29 = arith.addf %26, %28 : vector<16x128xf32>
    %30 = tpu.concatenate %20, %29 in 0 : vector<16x128xf32>, vector<16x128xf32> -> vector<32x128xf32>
    %31 = arith.truncf %30 : vector<32x128xf32> to vector<32x128xbf16>
    %c0_29 = arith.constant 0 : index
    %c0_30 = arith.constant 0 : index
    %32 = vector.load %arg11[%c0_29, %c0_30] : memref<16x32xbf16, #tpu.memory_space<vmem>>, vector<16x32xbf16>
    %cst_31 = arith.constant dense<0.000000e+00> : vector<16x128xf32>
    %33 = tpu.matmul %32, %31, %cst_31 {dimension_numbers = #tpu.dot_dimension_numbers<[1], [0], [0], [1], [0, 0, 1, 1], [], []>} : vector<16x32xbf16>, vector<32x128xbf16>, vector<16x128xf32> -> vector<16x128xf32>
    %c0_32 = arith.constant 0 : index
    %c0_33 = arith.constant 0 : index
    %34 = vector.load %arg12[%c0_32, %c0_33] : memref<16x1xf32, #tpu.memory_space<vmem>>, vector<16x1xf32>
    %35 = vector.broadcast %34 : vector<16x1xf32> to vector<16x128xf32>
    %36 = arith.addf %33, %35 : vector<16x128xf32>
    %c0_34 = arith.constant 0 : index
    %c0_35 = arith.constant 0 : index
    %c0_36 = arith.constant 0 : index
    %37 = vector.load %arg13[%c0_34, %c0_35, %c0_36] : memref<1x16x128xf32, #tpu.memory_space<vmem>>, vector<1x16x128xf32>
    %38 = vector.shape_cast %37 : vector<1x16x128xf32> to vector<16x128xf32>
    %39 = vector.shape_cast %36 : vector<16x128xf32> to vector<1x16x128xf32>
    tpu.vector_store %arg13[%c0_34, %c0_35, %c0_36], %39 {strides = array<i32>} : memref<1x16x128xf32, #tpu.memory_space<vmem>>, vector<1x16x128xf32>,
    return
  }
  func.func @transform_0(%arg0: i32, %arg1: i32) -> (i32, i32, i32, i32) {
    %c0_i32 = arith.constant 0 : i32
    %c0_i32_0 = arith.constant 0 : i32
    %c0_i32_1 = arith.constant 0 : i32
    %c0_i32_2 = arith.constant 0 : i32
    return %arg0, %c0_i32, %c0_i32_0, %c0_i32_1 : i32, i32, i32, i32
  }
  func.func @transform_1(%arg0: i32, %arg1: i32) -> (i32, i32, i32) {
    %c0_i32 = arith.constant 0 : i32
    %c0_i32_0 = arith.constant 0 : i32
    return %arg0, %c0_i32, %arg1 : i32, i32, i32
  }
  func.func @transform_2(%arg0: i32, %arg1: i32) -> (i32, i32, i32) {
    %c0_i32 = arith.constant 0 : i32
    %c0_i32_0 = arith.constant 0 : i32
    return %arg0, %c0_i32, %arg1 : i32, i32, i32
  }
  func.func @transform_3(%arg0: i32, %arg1: i32) -> (i32, i32, i32) {
    %c0_i32 = arith.constant 0 : i32
    %c0_i32_0 = arith.constant 0 : i32
    return %arg0, %c0_i32, %arg1 : i32, i32, i32
  }
  func.func @transform_4(%arg0: i32, %arg1: i32) -> (i32, i32, i32) {
    %c0_i32 = arith.constant 0 : i32
    %c0_i32_0 = arith.constant 0 : i32
    return %arg0, %c0_i32, %arg1 : i32, i32, i32
  }
  func.func @transform_5(%arg0: i32, %arg1: i32) -> (i32, i32) {
    %c0_i32 = arith.constant 0 : i32
    %c0_i32_0 = arith.constant 0 : i32
    %c0_i32_1 = arith.constant 0 : i32
    return %c0_i32, %c0_i32_0 : i32, i32
  }
  func.func @transform_6(%arg0: i32, %arg1: i32) -> (i32, i32) {
    %c0_i32 = arith.constant 0 : i32
    %c0_i32_0 = arith.constant 0 : i32
    %c0_i32_1 = arith.constant 0 : i32
    return %c0_i32, %c0_i32_0 : i32, i32
  }
  func.func @transform_7(%arg0: i32, %arg1: i32) -> (i32, i32) {
    %c0_i32 = arith.constant 0 : i32
    %c0_i32_0 = arith.constant 0 : i32
    %c0_i32_1 = arith.constant 0 : i32
    return %c0_i32, %c0_i32_0 : i32, i32
  }
  func.func @transform_8(%arg0: i32, %arg1: i32) -> (i32, i32) {
    %c0_i32 = arith.constant 0 : i32
    %c0_i32_0 = arith.constant 0 : i32
    %c0_i32_1 = arith.constant 0 : i32
    return %c0_i32, %c0_i32_0 : i32, i32
  }
  func.func @transform_9(%arg0: i32, %arg1: i32) -> (i32, i32) {
    %c0_i32 = arith.constant 0 : i32
    %c0_i32_0 = arith.constant 0 : i32
    %c0_i32_1 = arith.constant 0 : i32
    return %c0_i32, %c0_i32_0 : i32, i32
  }
  func.func @transform_10(%arg0: i32, %arg1: i32) -> (i32, i32) {
    %c0_i32 = arith.constant 0 : i32
    %c0_i32_0 = arith.constant 0 : i32
    %c0_i32_1 = arith.constant 0 : i32
    return %c0_i32, %c0_i32_0 : i32, i32
  }
  func.func @transform_11(%arg0: i32, %arg1: i32) -> (i32, i32, i32) {
    %c0_i32 = arith.constant 0 : i32
    %c0_i32_0 = arith.constant 0 : i32
    return %arg0, %c0_i32, %arg1 : i32, i32, i32
  }
}

</mosaic_0001>

<llo_original>
// kernel: dual_attention_forward.7
$region0: #{dual_attention_forward.7}
  #allocation0 [shape = 'u32[]', space=smem, size = 0x4, offset = 0x4, fixed_abs, tag = 'smem constant byte address 0x4 - core index']
  #allocation1 [shape = 'u32[72,128]{1,0:T(1,128)}', space=vmem, size = 0x9000, scoped, tag = 'internal scratch']
  %s0 = inlined_call_operand.vmem [shape: f32[2,2,16,16], index: 0, kind: input, shape index: {}]
  %s1 = inlined_call_operand.vmem [shape: bf16[2,16,256], index: 1, kind: input, shape index: {}]
  %s2 = inlined_call_operand.vmem [shape: bf16[2,16,256], index: 2, kind: input, shape index: {}]
  %s3 = inlined_call_operand.vmem [shape: f32[2,16,256], index: 3, kind: input, shape index: {}]
  %s4 = inlined_call_operand.vmem [shape: f32[2,16,256], index: 4, kind: input, shape index: {}]
  %s5 = inlined_call_operand.vmem [shape: bf16[16,16], index: 5, kind: input, shape index: {}]
  %s6 = inlined_call_operand.vmem [shape: f32[16,1], index: 6, kind: input, shape index: {}]
  %s7 = inlined_call_operand.vmem [shape: bf16[16,16], index: 7, kind: input, shape index: {}]
  %s8 = inlined_call_operand.vmem [shape: f32[16,1], index: 8, kind: input, shape index: {}]
  %s9 = inlined_call_operand.vmem [shape: bf16[16,32], index: 9, kind: input, shape index: {}]
  %s10 = inlined_call_operand.vmem [shape: f32[16,1], index: 10, kind: input, shape index: {}]
  %s11 = inlined_call_operand.vmem [shape: f32[2,16,256], index: 11, kind: output, shape index: {}]
  %s12 = sld [smem:[#allocation0]]
  $region269: #{dual_attention_forward.7} parent=0
    _
  %s14 = ssub.s32 1, %s12
  %s15 = scalar_select 0, %s14, %s12
  $region1: #{dual_attention_forward.7} parent=0
    #allocation2 [shape = 'u8[8192]{0}', space=vmem, size = 0x2000, scoped, tag = 'input window, operand 1']
    #allocation3 [shape = 'u8[8192]{0}', space=vmem, size = 0x2000, scoped, tag = 'input window, operand 2']
    #allocation4 [shape = 'u8[16384]{0}', space=vmem, size = 0x4000, scoped, tag = 'input window, operand 3']
    #allocation5 [shape = 'u8[16384]{0}', space=vmem, size = 0x4000, scoped, tag = 'input window, operand 4']
    #allocation6 [shape = 'u8[16384]{0}', space=vmem, size = 0x4000, scoped, tag = 'output window, operand 0']
    loop: start=0, step=1, limit=6
    $region2: #{dual_attention_forward.7} parent=1 // loop_pre_header
      _
    $region3: #{dual_attention_forward.7} parent=1 // loop_header
      %s17 = sphi 0, %s21
      %p18 = scmp.ge.s32.totalorder %s17, 6
      %s24 = sphi 0, %s36
      %s25 = sphi 0, %s32
      %s26 = sphi 0, %s24
      %s27 = sphi 0, %s25
      %s28 = sphi 0, %s26
      %s29 = sphi 0, %s27
      %s39 = sphi 0, %s41
      %s42 = sphi 0, %s39
      %s43 = sphi 0, %s42
      %s59 = sphi 0, %s43
      %s67 = sphi 0, %s69
      %s70 = sphi 0, %s67
      %s71 = sphi 0, %s70
      %s87 = sphi 0, %s71
      %s95 = sphi 0, %s97
      %s98 = sphi 0, %s95
      %s99 = sphi 0, %s98
      %s115 = sphi 0, %s99
      %s123 = sphi 0, %s125
      %s126 = sphi 0, %s123
      %s127 = sphi 0, %s126
      %s143 = sphi 0, %s127
      %s151 = sphi 0, %s153
      %s154 = sphi 0, %s151
      %s155 = sphi 0, %s154
      %s171 = sphi 0, %s155
      %s175 = sphi 0, %s175
      %s177 = sphi 0, %s175
      %s178 = sphi 0, %s177
      %s192 = sphi 0, %s178
      %s196 = sphi 0, %s196
      %s198 = sphi 0, %s196
      %s199 = sphi 0, %s198
      %s213 = sphi 0, %s199
      %s217 = sphi 0, %s217
      %s219 = sphi 0, %s217
      %s220 = sphi 0, %s219
      %s234 = sphi 0, %s220
      %s238 = sphi 0, %s238
      %s240 = sphi 0, %s238
      %s241 = sphi 0, %s240
      %s255 = sphi 0, %s241
      %s259 = sphi 0, %s259
      %s261 = sphi 0, %s259
      %s262 = sphi 0, %s261
      %s276 = sphi 0, %s262
      %s280 = sphi 0, %s280
      %s282 = sphi 0, %s280
      %s283 = sphi 0, %s282
      %s297 = sphi 0, %s283
      %s305 = sphi 0, %s307
      %s308 = sphi 0, %s305
      %s309 = sphi 0, %s308
      %s325 = sphi 0, %s309
    $region4: #{dual_attention_forward.7} parent=1 // loop_header_branch
      %20 = sbr.rel (%p18) target = $region8
    $region5: #{dual_attention_forward.7} parent=1 // loop_body
      %s22 = ssub.s32 %s17, 1
      %s23 = ssub.s32 %s17, 2
      %s30 = sadd.s32 1, %s25
      %p31 = scmp.ge.s32.totalorder %s30, 2
      %s32 = scalar_select %p31, 0, %s30
      %s33 = sadd.s32 1, %s24
      %s34 = scalar_select %p31, %s33, %s24
      %p35 = scmp.ge.s32.totalorder %s34, 2
      %s36 = scalar_select %p35, 0, %s34
      %s37 = ssub.s32 %s24, %s36
      %p38 = scmp.eq.s32.totalorder %s37, 0
      %s40 = sadd.s32 %s39, 1
      %s41 = scalar_select %p38, %s39, %s40
      %p44 = pneg %p38
      %p45 = scmp.eq.s32.totalorder %s17, 3
      %p46 = por %p44, %p45
      %p47 = scmp.ne.s32.totalorder %s39, %s42
      %p48 = scmp.eq.s32.totalorder %s17, 0
      %p49 = por %p47, %p48
      %p50 = scmp.ne.s32.totalorder %s39, %s42
      %p51 = scmp.eq.s32.totalorder %s22, 3
      %p52 = por %p50, %p51
      %p53 = scmp.ne.s32.totalorder %s42, %s43
      %p54 = scmp.eq.s32.totalorder %s22, 0
      %p55 = por %p53, %p54
      %p56 = scmp.ne.s32.totalorder %s42, %s43
      %p57 = scmp.eq.s32.totalorder %s23, 3
      %p58 = por %p56, %p57
      %p60 = scmp.ne.s32.totalorder %s43, %s59
      %p61 = scmp.eq.s32.totalorder %s23, 0
      %p62 = por %p60, %p61
      %s63 = ssub.s32 %s24, %s36
      %s64 = ssub.s32 %s25, %s32
      %s65 = sor.u32 %s63, %s64
      %p66 = scmp.eq.s32.totalorder %s65, 0
      %s68 = sadd.s32 %s67, 1
      %s69 = scalar_select %p66, %s67, %s68
      %p72 = pneg %p66
      %p73 = scmp.eq.s32.totalorder %s17, 3
      %p74 = por %p72, %p73
      %p75 = scmp.ne.s32.totalorder %s67, %s70
      %p76 = scmp.eq.s32.totalorder %s17, 0
      %p77 = por %p75, %p76
      %p78 = scmp.ne.s32.totalorder %s67, %s70
      %p79 = scmp.eq.s32.totalorder %s22, 3
      %p80 = por %p78, %p79
      %p81 = scmp.ne.s32.totalorder %s70, %s71
      %p82 = scmp.eq.s32.totalorder %s22, 0
      %p83 = por %p81, %p82
      %p84 = scmp.ne.s32.totalorder %s70, %s71
      %p85 = scmp.eq.s32.totalorder %s23, 3
      %p86 = por %p84, %p85
      %p88 = scmp.ne.s32.totalorder %s71, %s87
      %p89 = scmp.eq.s32.totalorder %s23, 0
      %p90 = por %p88, %p89
      %s91 = ssub.s32 %s24, %s36
      %s92 = ssub.s32 %s25, %s32
      %s93 = sor.u32 %s91, %s92
      %p94 = scmp.eq.s32.totalorder %s93, 0
      %s96 = sadd.s32 %s95, 1
      %s97 = scalar_select %p94, %s95, %s96
      %p100 = pneg %p94
      %p101 = scmp.eq.s32.totalorder %s17, 3
      %p102 = por %p100, %p101
      %p103 = scmp.ne.s32.totalorder %s95, %s98
      %p104 = scmp.eq.s32.totalorder %s17, 0
      %p105 = por %p103, %p104
      %p106 = scmp.ne.s32.totalorder %s95, %s98
      %p107 = scmp.eq.s32.totalorder %s22, 3
      %p108 = por %p106, %p107
      %p109 = scmp.ne.s32.totalorder %s98, %s99
      %p110 = scmp.eq.s32.totalorder %s22, 0
      %p111 = por %p109, %p110
      %p112 = scmp.ne.s32.totalorder %s98, %s99
      %p113 = scmp.eq.s32.totalorder %s23, 3
      %p114 = por %p112, %p113
      %p116 = scmp.ne.s32.totalorder %s99, %s115
      %p117 = scmp.eq.s32.totalorder %s23, 0
      %p118 = por %p116, %p117
      %s119 = ssub.s32 %s24, %s36
      %s120 = ssub.s32 %s25, %s32
      %s121 = sor.u32 %s119, %s120
      %p122 = scmp.eq.s32.totalorder %s121, 0
      %s124 = sadd.s32 %s123, 1
      %s125 = scalar_select %p122, %s123, %s124
      %p128 = pneg %p122
      %p129 = scmp.eq.s32.totalorder %s17, 3
      %p130 = por %p128, %p129
      %p131 = scmp.ne.s32.totalorder %s123, %s126
      %p132 = scmp.eq.s32.totalorder %s17, 0
      %p133 = por %p131, %p132
      %p134 = scmp.ne.s32.totalorder %s123, %s126
      %p135 = scmp.eq.s32.totalorder %s22, 3
      %p136 = por %p134, %p135
      %p137 = scmp.ne.s32.totalorder %s126, %s127
      %p138 = scmp.eq.s32.totalorder %s22, 0
      %p139 = por %p137, %p138
      %p140 = scmp.ne.s32.totalorder %s126, %s127
      %p141 = scmp.eq.s32.totalorder %s23, 3
      %p142 = por %p140, %p141
      %p144 = scmp.ne.s32.totalorder %s127, %s143
      %p145 = scmp.eq.s32.totalorder %s23, 0
      %p146 = por %p144, %p145
      %s147 = ssub.s32 %s24, %s36
      %s148 = ssub.s32 %s25, %s32
      %s149 = sor.u32 %s147, %s148
      %p150 = scmp.eq.s32.totalorder %s149, 0
      %s152 = sadd.s32 %s151, 1
      %s153 = scalar_select %p150, %s151, %s152
      %p156 = pneg %p150
      %p157 = scmp.eq.s32.totalorder %s17, 3
      %p158 = por %p156, %p157
      %p159 = scmp.ne.s32.totalorder %s151, %s154
      %p160 = scmp.eq.s32.totalorder %s17, 0
      %p161 = por %p159, %p160
      %p162 = scmp.ne.s32.totalorder %s151, %s154
      %p163 = scmp.eq.s32.totalorder %s22, 3
      %p164 = por %p162, %p163
      %p165 = scmp.ne.s32.totalorder %s154, %s155
      %p166 = scmp.eq.s32.totalorder %s22, 0
      %p167 = por %p165, %p166
      %p168 = scmp.ne.s32.totalorder %s154, %s155
      %p169 = scmp.eq.s32.totalorder %s23, 3
      %p170 = por %p168, %p169
      %p172 = scmp.ne.s32.totalorder %s155, %s171
      %p173 = scmp.eq.s32.totalorder %s23, 0
      %p174 = por %p172, %p173
      %s176 = sadd.s32 %s175, 1
      %p179 = scmp.eq.s32.totalorder %s17, 3
      %p180 = scmp.ne.s32.totalorder %s175, %s177
      %p181 = scmp.eq.s32.totalorder %s17, 0
      %p182 = por %p180, %p181
      %p183 = scmp.ne.s32.totalorder %s175, %s177
      %p184 = scmp.eq.s32.totalorder %s22, 3
      %p185 = por %p183, %p184
      %p186 = scmp.ne.s32.totalorder %s177, %s178
      %p187 = scmp.eq.s32.totalorder %s22, 0
      %p188 = por %p186, %p187
      %p189 = scmp.ne.s32.totalorder %s177, %s178
      %p190 = scmp.eq.s32.totalorder %s23, 3
      %p191 = por %p189, %p190
      %p193 = scmp.ne.s32.totalorder %s178, %s192
      %p194 = scmp.eq.s32.totalorder %s23, 0
      %p195 = por %p193, %p194
      %s197 = sadd.s32 %s196, 1
      %p200 = scmp.eq.s32.totalorder %s17, 3
      %p201 = scmp.ne.s32.totalorder %s196, %s198
      %p202 = scmp.eq.s32.totalorder %s17, 0
      %p203 = por %p201, %p202
      %p204 = scmp.ne.s32.totalorder %s196, %s198
      %p205 = scmp.eq.s32.totalorder %s22, 3
      %p206 = por %p204, %p205
      %p207 = scmp.ne.s32.totalorder %s198, %s199
      %p208 = scmp.eq.s32.totalorder %s22, 0
      %p209 = por %p207, %p208
      %p210 = scmp.ne.s32.totalorder %s198, %s199
      %p211 = scmp.eq.s32.totalorder %s23, 3
      %p212 = por %p210, %p211
      %p214 = scmp.ne.s32.totalorder %s199, %s213
      %p215 = scmp.eq.s32.totalorder %s23, 0
      %p216 = por %p214, %p215
      %s218 = sadd.s32 %s217, 1
      %p221 = scmp.eq.s32.totalorder %s17, 3
      %p222 = scmp.ne.s32.totalorder %s217, %s219
      %p223 = scmp.eq.s32.totalorder %s17, 0
      %p224 = por %p222, %p223
      %p225 = scmp.ne.s32.totalorder %s217, %s219
      %p226 = scmp.eq.s32.totalorder %s22, 3
      %p227 = por %p225, %p226
      %p228 = scmp.ne.s32.totalorder %s219, %s220
      %p229 = scmp.eq.s32.totalorder %s22, 0
      %p230 = por %p228, %p229
      %p231 = scmp.ne.s32.totalorder %s219, %s220
      %p232 = scmp.eq.s32.totalorder %s23, 3
      %p233 = por %p231, %p232
      %p235 = scmp.ne.s32.totalorder %s220, %s234
      %p236 = scmp.eq.s32.totalorder %s23, 0
      %p237 = por %p235, %p236
      %s239 = sadd.s32 %s238, 1
      %p242 = scmp.eq.s32.totalorder %s17, 3
      %p243 = scmp.ne.s32.totalorder %s238, %s240
      %p244 = scmp.eq.s32.totalorder %s17, 0
      %p245 = por %p243, %p244
      %p246 = scmp.ne.s32.totalorder %s238, %s240
      %p247 = scmp.eq.s32.totalorder %s22, 3
      %p248 = por %p246, %p247
      %p249 = scmp.ne.s32.totalorder %s240, %s241
      %p250 = scmp.eq.s32.totalorder %s22, 0
      %p251 = por %p249, %p250
      %p252 = scmp.ne.s32.totalorder %s240, %s241
      %p253 = scmp.eq.s32.totalorder %s23, 3
      %p254 = por %p252, %p253
      %p256 = scmp.ne.s32.totalorder %s241, %s255
      %p257 = scmp.eq.s32.totalorder %s23, 0
      %p258 = por %p256, %p257
      %s260 = sadd.s32 %s259, 1
      %p263 = scmp.eq.s32.totalorder %s17, 3
      %p264 = scmp.ne.s32.totalorder %s259, %s261
      %p265 = scmp.eq.s32.totalorder %s17, 0
      %p266 = por %p264, %p265
      %p267 = scmp.ne.s32.totalorder %s259, %s261
      %p268 = scmp.eq.s32.totalorder %s22, 3
      %p269 = por %p267, %p268
      %p270 = scmp.ne.s32.totalorder %s261, %s262
      %p271 = scmp.eq.s32.totalorder %s22, 0
      %p272 = por %p270, %p271
      %p273 = scmp.ne.s32.totalorder %s261, %s262
      %p274 = scmp.eq.s32.totalorder %s23, 3
      %p275 = por %p273, %p274
      %p277 = scmp.ne.s32.totalorder %s262, %s276
      %p278 = scmp.eq.s32.totalorder %s23, 0
      %p279 = por %p277, %p278
      %s281 = sadd.s32 %s280, 1
      %p284 = scmp.eq.s32.totalorder %s17, 3
      %p285 = scmp.ne.s32.totalorder %s280, %s282
      %p286 = scmp.eq.s32.totalorder %s17, 0
      %p287 = por %p285, %p286
      %p288 = scmp.ne.s32.totalorder %s280, %s282
      %p289 = scmp.eq.s32.totalorder %s22, 3
      %p290 = por %p288, %p289
      %p291 = scmp.ne.s32.totalorder %s282, %s283
      %p292 = scmp.eq.s32.totalorder %s22, 0
      %p293 = por %p291, %p292
      %p294 = scmp.ne.s32.totalorder %s282, %s283
      %p295 = scmp.eq.s32.totalorder %s23, 3
      %p296 = por %p294, %p295
      %p298 = scmp.ne.s32.totalorder %s283, %s297
      %p299 = scmp.eq.s32.totalorder %s23, 0
      %p300 = por %p298, %p299
      %s301 = ssub.s32 %s24, %s36
      %s302 = ssub.s32 %s25, %s32
      %s303 = sor.u32 %s301, %s302
      %p304 = scmp.eq.s32.totalorder %s303, 0
      %s306 = sadd.s32 %s305, 1
      %s307 = scalar_select %p304, %s305, %s306
      %p310 = pneg %p304
      %p311 = scmp.eq.s32.totalorder %s17, 3
      %p312 = por %p310, %p311
      %p313 = scmp.ne.s32.totalorder %s305, %s308
      %p314 = scmp.eq.s32.totalorder %s17, 0
      %p315 = por %p313, %p314
      %p316 = scmp.ne.s32.totalorder %s305, %s308
      %p317 = scmp.eq.s32.totalorder %s22, 3
      %p318 = por %p316, %p317
      %p319 = scmp.ne.s32.totalorder %s308, %s309
      %p320 = scmp.eq.s32.totalorder %s22, 0
      %p321 = por %p319, %p320
      %p322 = scmp.ne.s32.totalorder %s308, %s309
      %p323 = scmp.eq.s32.totalorder %s23, 3
      %p324 = por %p322, %p323
      %p326 = scmp.ne.s32.totalorder %s309, %s325
      %p327 = scmp.eq.s32.totalorder %s23, 0
      %p328 = por %p326, %p327
      %p329 = scmp.le.s32.totalorder 1, %s17
      %p330 = scmp.lt.s32.totalorder %s17, 5
      %p331 = pnand %p329, %p330
      %p332 = pneg %p331
      // Predicated region
      $region9: #{dual_attention_forward.7} parent=5 // pred_check
        _
      $region10: #{dual_attention_forward.7} parent=5 // pred_check_branch
        %334 = sbr.rel (%p331) target = $region12
      $region11: #{dual_attention_forward.7} parent=5 // pred_region
        %s335 = ssub.s32 %s17, 1
        // Predicated region
        $region13: #{dual_attention_forward.7} parent=11 // pred_check
          %p336 = pneg %p188
        $region14: #{dual_attention_forward.7} parent=11 // pred_check_branch
          %338 = sbr.rel (%p336) target = $region16
        $region15: #{dual_attention_forward.7} parent=11 // pred_region
          _
        $region16: #{dual_attention_forward.7} parent=11 // pred_fallthru
          _
        // Predicated region
        $region17: #{dual_attention_forward.7} parent=11 // pred_check
          %p339 = pneg %p209
        $region18: #{dual_attention_forward.7} parent=11 // pred_check_branch
          %341 = sbr.rel (%p339) target = $region20
        $region19: #{dual_attention_forward.7} parent=11 // pred_region
          _
        $region20: #{dual_attention_forward.7} parent=11 // pred_fallthru
          _
        // Predicated region
        $region21: #{dual_attention_forward.7} parent=11 // pred_check
          %p342 = pneg %p230
        $region22: #{dual_attention_forward.7} parent=11 // pred_check_branch
          %344 = sbr.rel (%p342) target = $region24
        $region23: #{dual_attention_forward.7} parent=11 // pred_region
          _
        $region24: #{dual_attention_forward.7} parent=11 // pred_fallthru
          _
        // Predicated region
        $region25: #{dual_attention_forward.7} parent=11 // pred_check
          %p345 = pneg %p251
        $region26: #{dual_attention_forward.7} parent=11 // pred_check_branch
          %347 = sbr.rel (%p345) target = $region28
        $region27: #{dual_attention_forward.7} parent=11 // pred_region
          _
        $region28: #{dual_attention_forward.7} parent=11 // pred_fallthru
          _
        // Predicated region
        $region29: #{dual_attention_forward.7} parent=11 // pred_check
          %p348 = pneg %p272
        $region30: #{dual_attention_forward.7} parent=11 // pred_check_branch
          %350 = sbr.rel (%p348) target = $region32
        $region31: #{dual_attention_forward.7} parent=11 // pred_region
          _
        $region32: #{dual_attention_forward.7} parent=11 // pred_fallthru
          _
        // Predicated region
        $region33: #{dual_attention_forward.7} parent=11 // pred_check
          %p351 = pneg %p293
        $region34: #{dual_attention_forward.7} parent=11 // pred_check_branch
          %353 = sbr.rel (%p351) target = $region36
        $region35: #{dual_attention_forward.7} parent=11 // pred_region
          _
        $region36: #{dual_attention_forward.7} parent=11 // pred_fallthru
          _
      $region12: #{dual_attention_forward.7} parent=5 // pred_fallthru
        _
      %p354 = scmp.lt.s32.totalorder %s17, 4
      // Predicated region
      $region37: #{dual_attention_forward.7} parent=5 // pred_check
        %p355 = pneg %p354
      $region38: #{dual_attention_forward.7} parent=5 // pred_check_branch
        %357 = sbr.rel (%p355) target = $region40
      $region39: #{dual_attention_forward.7} parent=5 // pred_region
        // Predicated region
        $region41: #{dual_attention_forward.7} parent=39 // pred_check
          %p358 = pneg %p49
        $region42: #{dual_attention_forward.7} parent=39 // pred_check_branch
          %360 = sbr.rel (%p358) target = $region44
        $region43: #{dual_attention_forward.7} parent=39 // pred_region
          %p361 = scmp.lt.s32.totalorder %s24, 1
          %s362 = scalar_select %p361, %s24, 1
          %s363 = smul.addr %s362, 4
          %s364 = smul.addr %s363, 8
          %s365 = scalar_lea.vmem %s0, %s364
        $region44: #{dual_attention_forward.7} parent=39 // pred_fallthru
          _
        // Predicated region
        $region45: #{dual_attention_forward.7} parent=39 // pred_check
          %p366 = pneg %p77
        $region46: #{dual_attention_forward.7} parent=39 // pred_check_branch
          %368 = sbr.rel (%p366) target = $region48
        $region47: #{dual_attention_forward.7} parent=39 // pred_region
          %s369 = sand.u32 %s67, 1
          %s370 = sand.u32 %s67, 1
          %s371 = smul.addr %s370, 8
          %s372 = scalar_lea.vmem [#allocation2], %s371
          %s373 = smul.addr %s24, 4
          %s374 = sadd.s32 %s25, %s373
          %s375 = smul.addr %s374, 4
          %s376 = scalar_lea.vmem %s1, %s375
          // Predicated region
          $region49: #{dual_attention_forward.7} parent=47 // pred_check
            _
          $region50: #{dual_attention_forward.7} parent=47 // pred_check_branch
            %378 = sbr.rel (0) target = $region52
          $region51: #{dual_attention_forward.7} parent=47 // pred_region
            // Predicated region
            $region53: #{dual_attention_forward.7} parent=51 // pred_check
              _
            $region54: #{dual_attention_forward.7} parent=51 // pred_check_branch
              %380 = sbr.rel target = $region56
            $region55: #{dual_attention_forward.7} parent=51 // pred_region
              // Predicated region
              $region68: #{dual_attention_forward.7} parent=55 // pred_check
                _
              $region69: #{dual_attention_forward.7} parent=55 // pred_check_branch
                %398 = sbr.rel (0) target = $region71
              $region70: #{dual_attention_forward.7} parent=55 // pred_region
                loop: start=0, step=1, limit=1
                $region72: #{dual_attention_forward.7} parent=70 // loop_pre_header
                  _
                $region73: #{dual_attention_forward.7} parent=70 // loop_header
                  %s400 = sphi 0, %s404
                  %p401 = scmp.ge.s32.totalorder %s400, 1
                  %s405 = sphi %s376, %s376
                  %s406 = sphi %s372, %s372
                $region74: #{dual_attention_forward.7} parent=70 // loop_header_branch
                  %403 = sbr.rel (%p401) target = $region78
                $region75: #{dual_attention_forward.7} parent=70 // loop_body
                  _
                $region76: #{dual_attention_forward.7} parent=70 // loop_footer
                  %s404 = sadd.s32 1, %s400
                $region77: #{dual_attention_forward.7} parent=70 // loop_footer_branch
                  %399 = sbr.rel target = $region73
                $region78: #{dual_attention_forward.7} parent=70 // loop_exit
                  _
                %s408 = ssub.s32 16, 1
                loop: start=0, step=1, limit=1
                $region79: #{dual_attention_forward.7} parent=70 // loop_pre_header
                  _
                $region80: #{dual_attention_forward.7} parent=70 // loop_header
                  %s410 = sphi 0, %s414
                  %p411 = scmp.ge.s32.totalorder %s410, 1
                  %s415 = sphi %s376, %s376
                  %s416 = sphi %s372, %s372
                $region81: #{dual_attention_forward.7} parent=70 // loop_header_branch
                  %413 = sbr.rel (%p411) target = $region85
                $region82: #{dual_attention_forward.7} parent=70 // loop_body
                  %v417 = vld [vmem:[%s415] sm:%s408]
                  %418 = vst [vmem:[%s416] sm:%s408] %v417
                  %v419 = vld [vmem:[%s415 + $0x8] sm:%s408]
                  %420 = vst [vmem:[%s416 + $0x4] sm:%s408] %v419
                $region83: #{dual_attention_forward.7} parent=70 // loop_footer
                  %s414 = sadd.s32 1, %s410
                $region84: #{dual_attention_forward.7} parent=70 // loop_footer_branch
                  %409 = sbr.rel target = $region80
                $region85: #{dual_attention_forward.7} parent=70 // loop_exit
                  _
              $region71: #{dual_attention_forward.7} parent=55 // pred_fallthru
                _
            $region56: #{dual_attention_forward.7} parent=51 // pred_fallthru
              _
            // Predicated region
            $region57: #{dual_attention_forward.7} parent=51 // pred_check
              _
            $region58: #{dual_attention_forward.7} parent=51 // pred_check_branch
              %382 = sbr.rel (0) target = $region60
            $region59: #{dual_attention_forward.7} parent=51 // pred_region
              %s384 = ssub.s32 16, 1
              loop: start=0, step=1, limit=1
              $region61: #{dual_attention_forward.7} parent=59 // loop_pre_header
                _
              $region62: #{dual_attention_forward.7} parent=59 // loop_header
                %s386 = sphi 0, %s390
                %p387 = scmp.ge.s32.totalorder %s386, 1
                %s391 = sphi %s376, %s376
                %s392 = sphi %s372, %s372
              $region63: #{dual_attention_forward.7} parent=59 // loop_header_branch
                %389 = sbr.rel (%p387) target = $region67
              $region64: #{dual_attention_forward.7} parent=59 // loop_body
                %v393 = vld [vmem:[%s391] sm:%s384]
                %394 = vst [vmem:[%s392] sm:%s384] %v393
                %v395 = vld [vmem:[%s391 + $0x8] sm:%s384]
                %396 = vst [vmem:[%s392 + $0x4] sm:%s384] %v395
              $region65: #{dual_attention_forward.7} parent=59 // loop_footer
                %s390 = sadd.s32 1, %s386
              $region66: #{dual_attention_forward.7} parent=59 // loop_footer_branch
                %385 = sbr.rel target = $region62
              $region67: #{dual_attention_forward.7} parent=59 // loop_exit
                _
            $region60: #{dual_attention_forward.7} parent=51 // pred_fallthru
              _
          $region52: #{dual_attention_forward.7} parent=47 // pred_fallthru
            _
          %421 = vnop
        $region48: #{dual_attention_forward.7} parent=39 // pred_fallthru
          _
        // Predicated region
        $region86: #{dual_attention_forward.7} parent=39 // pred_check
          %p422 = pneg %p105
        $region87: #{dual_attention_forward.7} parent=39 // pred_check_branch
          %424 = sbr.rel (%p422) target = $region89
        $region88: #{dual_attention_forward.7} parent=39 // pred_region
          %s425 = sand.u32 %s95, 1
          %s426 = sand.u32 %s95, 1
          %s427 = smul.addr %s426, 8
          %s428 = scalar_lea.vmem [#allocation3], %s427
          %s429 = smul.addr %s24, 4
          %s430 = sadd.s32 %s25, %s429
          %s431 = smul.addr %s430, 4
          %s432 = scalar_lea.vmem %s2, %s431
          // Predicated region
          $region90: #{dual_attention_forward.7} parent=88 // pred_check
            _
          $region91: #{dual_attention_forward.7} parent=88 // pred_check_branch
            %434 = sbr.rel (0) target = $region93
          $region92: #{dual_attention_forward.7} parent=88 // pred_region
            // Predicated region
            $region94: #{dual_attention_forward.7} parent=92 // pred_check
              _
            $region95: #{dual_attention_forward.7} parent=92 // pred_check_branch
              %436 = sbr.rel target = $region97
            $region96: #{dual_attention_forward.7} parent=92 // pred_region
              // Predicated region
              $region109: #{dual_attention_forward.7} parent=96 // pred_check
                _
              $region110: #{dual_attention_forward.7} parent=96 // pred_check_branch
                %454 = sbr.rel (0) target = $region112
              $region111: #{dual_attention_forward.7} parent=96 // pred_region
                loop: start=0, step=1, limit=1
                $region113: #{dual_attention_forward.7} parent=111 // loop_pre_header
                  _
                $region114: #{dual_attention_forward.7} parent=111 // loop_header
                  %s456 = sphi 0, %s460
                  %p457 = scmp.ge.s32.totalorder %s456, 1
                  %s461 = sphi %s432, %s432
                  %s462 = sphi %s428, %s428
                $region115: #{dual_attention_forward.7} parent=111 // loop_header_branch
                  %459 = sbr.rel (%p457) target = $region119
                $region116: #{dual_attention_forward.7} parent=111 // loop_body
                  _
                $region117: #{dual_attention_forward.7} parent=111 // loop_footer
                  %s460 = sadd.s32 1, %s456
                $region118: #{dual_attention_forward.7} parent=111 // loop_footer_branch
                  %455 = sbr.rel target = $region114
                $region119: #{dual_attention_forward.7} parent=111 // loop_exit
                  _
                %s464 = ssub.s32 16, 1
                loop: start=0, step=1, limit=1
                $region120: #{dual_attention_forward.7} parent=111 // loop_pre_header
                  _
                $region121: #{dual_attention_forward.7} parent=111 // loop_header
                  %s466 = sphi 0, %s470
                  %p467 = scmp.ge.s32.totalorder %s466, 1
                  %s471 = sphi %s432, %s432
                  %s472 = sphi %s428, %s428
                $region122: #{dual_attention_forward.7} parent=111 // loop_header_branch
                  %469 = sbr.rel (%p467) target = $region126
                $region123: #{dual_attention_forward.7} parent=111 // loop_body
                  %v473 = vld [vmem:[%s471] sm:%s464]
                  %474 = vst [vmem:[%s472] sm:%s464] %v473
                  %v475 = vld [vmem:[%s471 + $0x8] sm:%s464]
                  %476 = vst [vmem:[%s472 + $0x4] sm:%s464] %v475
                $region124: #{dual_attention_forward.7} parent=111 // loop_footer
                  %s470 = sadd.s32 1, %s466
                $region125: #{dual_attention_forward.7} parent=111 // loop_footer_branch
                  %465 = sbr.rel target = $region121
                $region126: #{dual_attention_forward.7} parent=111 // loop_exit
                  _
              $region112: #{dual_attention_forward.7} parent=96 // pred_fallthru
                _
            $region97: #{dual_attention_forward.7} parent=92 // pred_fallthru
              _
            // Predicated region
            $region98: #{dual_attention_forward.7} parent=92 // pred_check
              _
            $region99: #{dual_attention_forward.7} parent=92 // pred_check_branch
              %438 = sbr.rel (0) target = $region101
            $region100: #{dual_attention_forward.7} parent=92 // pred_region
              %s440 = ssub.s32 16, 1
              loop: start=0, step=1, limit=1
              $region102: #{dual_attention_forward.7} parent=100 // loop_pre_header
                _
              $region103: #{dual_attention_forward.7} parent=100 // loop_header
                %s442 = sphi 0, %s446
                %p443 = scmp.ge.s32.totalorder %s442, 1
                %s447 = sphi %s432, %s432
                %s448 = sphi %s428, %s428
              $region104: #{dual_attention_forward.7} parent=100 // loop_header_branch
                %445 = sbr.rel (%p443) target = $region108
              $region105: #{dual_attention_forward.7} parent=100 // loop_body
                %v449 = vld [vmem:[%s447] sm:%s440]
                %450 = vst [vmem:[%s448] sm:%s440] %v449
                %v451 = vld [vmem:[%s447 + $0x8] sm:%s440]
                %452 = vst [vmem:[%s448 + $0x4] sm:%s440] %v451
              $region106: #{dual_attention_forward.7} parent=100 // loop_footer
                %s446 = sadd.s32 1, %s442
              $region107: #{dual_attention_forward.7} parent=100 // loop_footer_branch
                %441 = sbr.rel target = $region103
              $region108: #{dual_attention_forward.7} parent=100 // loop_exit
                _
            $region101: #{dual_attention_forward.7} parent=92 // pred_fallthru
              _
          $region93: #{dual_attention_forward.7} parent=88 // pred_fallthru
            _
          %477 = vnop
        $region89: #{dual_attention_forward.7} parent=39 // pred_fallthru
          _
        // Predicated region
        $region127: #{dual_attention_forward.7} parent=39 // pred_check
          %p478 = pneg %p133
        $region128: #{dual_attention_forward.7} parent=39 // pred_check_branch
          %480 = sbr.rel (%p478) target = $region130
        $region129: #{dual_attention_forward.7} parent=39 // pred_region
          %s481 = sand.u32 %s123, 1
          %s482 = sand.u32 %s123, 1
          %s483 = smul.addr %s482, 16
          %s484 = scalar_lea.vmem [#allocation4], %s483
          %s485 = smul.addr %s24, 4
          %s486 = sadd.s32 %s25, %s485
          %s487 = smul.addr %s486, 8
          %s488 = scalar_lea.vmem %s3, %s487
          // Predicated region
          $region131: #{dual_attention_forward.7} parent=129 // pred_check
            _
          $region132: #{dual_attention_forward.7} parent=129 // pred_check_branch
            %490 = sbr.rel (0) target = $region134
          $region133: #{dual_attention_forward.7} parent=129 // pred_region
            // Predicated region
            $region135: #{dual_attention_forward.7} parent=133 // pred_check
              _
            $region136: #{dual_attention_forward.7} parent=133 // pred_check_branch
              %492 = sbr.rel (0) target = $region138
            $region137: #{dual_attention_forward.7} parent=133 // pred_region
              // Predicated region
              $region150: #{dual_attention_forward.7} parent=137 // pred_check
                _
              $region151: #{dual_attention_forward.7} parent=137 // pred_check_branch
                %510 = sbr.rel (0) target = $region153
              $region152: #{dual_attention_forward.7} parent=137 // pred_region
                loop: start=0, step=1, limit=1
                $region154: #{dual_attention_forward.7} parent=152 // loop_pre_header
                  _
                $region155: #{dual_attention_forward.7} parent=152 // loop_header
                  %s512 = sphi 0, %s516
                  %p513 = scmp.ge.s32.totalorder %s512, 1
                  %s517 = sphi %s488, %s488
                  %s518 = sphi %s484, %s484
                $region156: #{dual_attention_forward.7} parent=152 // loop_header_branch
                  %515 = sbr.rel (%p513) target = $region160
                $region157: #{dual_attention_forward.7} parent=152 // loop_body
                  %v519 = vld [vmem:[%s517] sm:$0xff]
                  %520 = vst [vmem:[%s518] sm:$0xff] %v519
                  %v521 = vld [vmem:[%s517 + $0x10] sm:$0xff]
                  %522 = vst [vmem:[%s518 + $0x8] sm:$0xff] %v521
                $region158: #{dual_attention_forward.7} parent=152 // loop_footer
                  %s516 = sadd.s32 1, %s512
                $region159: #{dual_attention_forward.7} parent=152 // loop_footer_branch
                  %511 = sbr.rel target = $region155
                $region160: #{dual_attention_forward.7} parent=152 // loop_exit
                  _
              $region153: #{dual_attention_forward.7} parent=137 // pred_fallthru
                _
              // Predicated region
              $region161: #{dual_attention_forward.7} parent=137 // pred_check
                _
              $region162: #{dual_attention_forward.7} parent=137 // pred_check_branch
                %524 = sbr.rel target = $region164
              $region163: #{dual_attention_forward.7} parent=137 // pred_region
                _
              $region164: #{dual_attention_forward.7} parent=137 // pred_fallthru
                _
            $region138: #{dual_attention_forward.7} parent=133 // pred_fallthru
              _
            // Predicated region
            $region139: #{dual_attention_forward.7} parent=133 // pred_check
              _
            $region140: #{dual_attention_forward.7} parent=133 // pred_check_branch
              %494 = sbr.rel target = $region142
            $region141: #{dual_attention_forward.7} parent=133 // pred_region
              %s496 = ssub.s32 256, 1
              loop: start=0, step=1, limit=1
              $region143: #{dual_attention_forward.7} parent=141 // loop_pre_header
                _
              $region144: #{dual_attention_forward.7} parent=141 // loop_header
                %s498 = sphi 0, %s502
                %p499 = scmp.ge.s32.totalorder %s498, 1
                %s503 = sphi %s488, %s488
                %s504 = sphi %s484, %s484
              $region145: #{dual_attention_forward.7} parent=141 // loop_header_branch
                %501 = sbr.rel (%p499) target = $region149
              $region146: #{dual_attention_forward.7} parent=141 // loop_body
                %v505 = vld [vmem:[%s503] sm:%s496]
                %506 = vst [vmem:[%s504] sm:%s496] %v505
                %v507 = vld [vmem:[%s503 + $0x10] sm:%s496]
                %508 = vst [vmem:[%s504 + $0x8] sm:%s496] %v507
              $region147: #{dual_attention_forward.7} parent=141 // loop_footer
                %s502 = sadd.s32 1, %s498
              $region148: #{dual_attention_forward.7} parent=141 // loop_footer_branch
                %497 = sbr.rel target = $region144
              $region149: #{dual_attention_forward.7} parent=141 // loop_exit
                _
            $region142: #{dual_attention_forward.7} parent=133 // pred_fallthru
              _
          $region134: #{dual_attention_forward.7} parent=129 // pred_fallthru
            _
          %525 = vnop
        $region130: #{dual_attention_forward.7} parent=39 // pred_fallthru
          _
        // Predicated region
        $region165: #{dual_attention_forward.7} parent=39 // pred_check
          %p526 = pneg %p161
        $region166: #{dual_attention_forward.7} parent=39 // pred_check_branch
          %528 = sbr.rel (%p526) target = $region168
        $region167: #{dual_attention_forward.7} parent=39 // pred_region
          %s529 = sand.u32 %s151, 1
          %s530 = sand.u32 %s151, 1
          %s531 = smul.addr %s530, 16
          %s532 = scalar_lea.vmem [#allocation5], %s531
          %s533 = smul.addr %s24, 4
          %s534 = sadd.s32 %s25, %s533
          %s535 = smul.addr %s534, 8
          %s536 = scalar_lea.vmem %s4, %s535
          // Predicated region
          $region169: #{dual_attention_forward.7} parent=167 // pred_check
            _
          $region170: #{dual_attention_forward.7} parent=167 // pred_check_branch
            %538 = sbr.rel (0) target = $region172
          $region171: #{dual_attention_forward.7} parent=167 // pred_region
            // Predicated region
            $region173: #{dual_attention_forward.7} parent=171 // pred_check
              _
            $region174: #{dual_attention_forward.7} parent=171 // pred_check_branch
              %540 = sbr.rel (0) target = $region176
            $region175: #{dual_attention_forward.7} parent=171 // pred_region
              // Predicated region
              $region188: #{dual_attention_forward.7} parent=175 // pred_check
                _
              $region189: #{dual_attention_forward.7} parent=175 // pred_check_branch
                %558 = sbr.rel (0) target = $region191
              $region190: #{dual_attention_forward.7} parent=175 // pred_region
                loop: start=0, step=1, limit=1
                $region192: #{dual_attention_forward.7} parent=190 // loop_pre_header
                  _
                $region193: #{dual_attention_forward.7} parent=190 // loop_header
                  %s560 = sphi 0, %s564
                  %p561 = scmp.ge.s32.totalorder %s560, 1
                  %s565 = sphi %s536, %s536
                  %s566 = sphi %s532, %s532
                $region194: #{dual_attention_forward.7} parent=190 // loop_header_branch
                  %563 = sbr.rel (%p561) target = $region198
                $region195: #{dual_attention_forward.7} parent=190 // loop_body
                  %v567 = vld [vmem:[%s565] sm:$0xff]
                  %568 = vst [vmem:[%s566] sm:$0xff] %v567
                  %v569 = vld [vmem:[%s565 + $0x10] sm:$0xff]
                  %570 = vst [vmem:[%s566 + $0x8] sm:$0xff] %v569
                $region196: #{dual_attention_forward.7} parent=190 // loop_footer
                  %s564 = sadd.s32 1, %s560
                $region197: #{dual_attention_forward.7} parent=190 // loop_footer_branch
                  %559 = sbr.rel target = $region193
                $region198: #{dual_attention_forward.7} parent=190 // loop_exit
                  _
              $region191: #{dual_attention_forward.7} parent=175 // pred_fallthru
                _
              // Predicated region
              $region199: #{dual_attention_forward.7} parent=175 // pred_check
                _
              $region200: #{dual_attention_forward.7} parent=175 // pred_check_branch
                %572 = sbr.rel target = $region202
              $region201: #{dual_attention_forward.7} parent=175 // pred_region
                _
              $region202: #{dual_attention_forward.7} parent=175 // pred_fallthru
                _
            $region176: #{dual_attention_forward.7} parent=171 // pred_fallthru
              _
            // Predicated region
            $region177: #{dual_attention_forward.7} parent=171 // pred_check
              _
            $region178: #{dual_attention_forward.7} parent=171 // pred_check_branch
              %542 = sbr.rel target = $region180
            $region179: #{dual_attention_forward.7} parent=171 // pred_region
              %s544 = ssub.s32 256, 1
              loop: start=0, step=1, limit=1
              $region181: #{dual_attention_forward.7} parent=179 // loop_pre_header
                _
              $region182: #{dual_attention_forward.7} parent=179 // loop_header
                %s546 = sphi 0, %s550
                %p547 = scmp.ge.s32.totalorder %s546, 1
                %s551 = sphi %s536, %s536
                %s552 = sphi %s532, %s532
              $region183: #{dual_attention_forward.7} parent=179 // loop_header_branch
                %549 = sbr.rel (%p547) target = $region187
              $region184: #{dual_attention_forward.7} parent=179 // loop_body
                %v553 = vld [vmem:[%s551] sm:%s544]
                %554 = vst [vmem:[%s552] sm:%s544] %v553
                %v555 = vld [vmem:[%s551 + $0x10] sm:%s544]
                %556 = vst [vmem:[%s552 + $0x8] sm:%s544] %v555
              $region185: #{dual_attention_forward.7} parent=179 // loop_footer
                %s550 = sadd.s32 1, %s546
              $region186: #{dual_attention_forward.7} parent=179 // loop_footer_branch
                %545 = sbr.rel target = $region182
              $region187: #{dual_attention_forward.7} parent=179 // loop_exit
                _
            $region180: #{dual_attention_forward.7} parent=171 // pred_fallthru
              _
          $region172: #{dual_attention_forward.7} parent=167 // pred_fallthru
            _
          %573 = vnop
        $region168: #{dual_attention_forward.7} parent=39 // pred_fallthru
          _
      $region40: #{dual_attention_forward.7} parent=5 // pred_fallthru
        _
      %p574 = scmp.le.s32.totalorder 1, %s17
      %p575 = scmp.lt.s32.totalorder %s17, 5
      %p576 = pnand %p574, %p575
      %p577 = pneg %p576
      // Predicated region
      $region203: #{dual_attention_forward.7} parent=5 // pred_check
        _
      $region204: #{dual_attention_forward.7} parent=5 // pred_check_branch
        %579 = sbr.rel (%p576) target = $region206
      $region205: #{dual_attention_forward.7} parent=5 // pred_region
        %s580 = ssub.s32 %s17, 1
        %s581 = sand.u32 %s70, 1
        %s582 = sand.u32 %s70, 1
        %s583 = smul.addr %s582, 8
        %s584 = scalar_lea.vmem [#allocation2], %s583
        // Predicated region
        $region207: #{dual_attention_forward.7} parent=205 // pred_check
          %p585 = pneg %p83
        $region208: #{dual_attention_forward.7} parent=205 // pred_check_branch
          %587 = sbr.rel (%p585) target = $region210
        $region209: #{dual_attention_forward.7} parent=205 // pred_region
          _
        $region210: #{dual_attention_forward.7} parent=205 // pred_fallthru
          _
        %s588 = sand.u32 %s98, 1
        %s589 = sand.u32 %s98, 1
        %s590 = smul.addr %s589, 8
        %s591 = scalar_lea.vmem [#allocation3], %s590
        // Predicated region
        $region211: #{dual_attention_forward.7} parent=205 // pred_check
          %p592 = pneg %p111
        $region212: #{dual_attention_forward.7} parent=205 // pred_check_branch
          %594 = sbr.rel (%p592) target = $region214
        $region213: #{dual_attention_forward.7} parent=205 // pred_region
          _
        $region214: #{dual_attention_forward.7} parent=205 // pred_fallthru
          _
        %s595 = sand.u32 %s126, 1
        %s596 = sand.u32 %s126, 1
        %s597 = smul.addr %s596, 16
        %s598 = scalar_lea.vmem [#allocation4], %s597
        // Predicated region
        $region215: #{dual_attention_forward.7} parent=205 // pred_check
          %p599 = pneg %p139
        $region216: #{dual_attention_forward.7} parent=205 // pred_check_branch
          %601 = sbr.rel (%p599) target = $region218
        $region217: #{dual_attention_forward.7} parent=205 // pred_region
          _
        $region218: #{dual_attention_forward.7} parent=205 // pred_fallthru
          _
        %s602 = sand.u32 %s154, 1
        %s603 = sand.u32 %s154, 1
        %s604 = smul.addr %s603, 16
        %s605 = scalar_lea.vmem [#allocation5], %s604
        // Predicated region
        $region219: #{dual_attention_forward.7} parent=205 // pred_check
          %p606 = pneg %p167
        $region220: #{dual_attention_forward.7} parent=205 // pred_check_branch
          %608 = sbr.rel (%p606) target = $region222
        $region221: #{dual_attention_forward.7} parent=205 // pred_region
          _
        $region222: #{dual_attention_forward.7} parent=205 // pred_fallthru
          _
        %p609 = scmp.lt.s32.totalorder %s26, 1
        %s610 = scalar_select %p609, %s26, 1
        %s611 = smul.addr %s610, 4
        %s612 = smul.addr %s611, 8
        %s613 = scalar_lea.vmem %s0, %s612
        %p614 = pneg %p55
        %p615 = pneg %p52
        %s616 = sand.u32 %s70, 1
        %s617 = sand.u32 %s70, 1
        %s618 = smul.addr %s617, 8
        %s619 = scalar_lea.vmem [#allocation2], %s618
        %p620 = pneg %p83
        %p621 = pneg %p80
        %s622 = sand.u32 %s98, 1
        %s623 = sand.u32 %s98, 1
        %s624 = smul.addr %s623, 8
        %s625 = scalar_lea.vmem [#allocation3], %s624
        %p626 = pneg %p111
        %p627 = pneg %p108
        %s628 = sand.u32 %s126, 1
        %s629 = sand.u32 %s126, 1
        %s630 = smul.addr %s629, 16
        %s631 = scalar_lea.vmem [#allocation4], %s630
        %p632 = pneg %p139
        %p633 = pneg %p136
        %s634 = sand.u32 %s154, 1
        %s635 = sand.u32 %s154, 1
        %s636 = smul.addr %s635, 16
        %s637 = scalar_lea.vmem [#allocation5], %s636
        %p638 = pneg %p167
        %p639 = pneg %p164
        %p640 = pneg %p188
        %p641 = pneg %p185
        %p642 = pneg %p209
        %p643 = pneg %p206
        %p644 = pneg %p230
        %p645 = pneg %p227
        %p646 = pneg %p251
        %p647 = pneg %p248
        %p648 = pneg %p272
        %p649 = pneg %p269
        %p650 = pneg %p293
        %p651 = pneg %p290
        %p652 = pneg %p321
        %p653 = pneg %p318
        %s654 = sand.u32 %s308, 1
        %s655 = sand.u32 %s308, 1
        %s656 = smul.addr %s655, 16
        %s657 = scalar_lea.vmem [#allocation6], %s656
        %p658 = scmp.lt.s32.totalorder %s26, 1
        %s659 = scalar_select %p658, %s26, 1
        %s660 = smul.addr %s659, 4
        %s661 = smul.addr %s660, 8
        %s662 = scalar_lea.vmem %s0, %s661
        %v664 = vld [vmem:[%s662] sm:$0xff]
        %v665 = vld [vmem:[%s662 + $0x8] sm:$0xff]
        %v666 = vpack.c.bf16 %v665, %v664
        %s667 = scalar_lea.vmem %s662, 16
        %v668 = vld [vmem:[%s667] sm:$0xff]
        %v669 = vld [vmem:[%s667 + $0x8] sm:$0xff]
        %v670 = vpack.c.bf16 %v669, %v668
        %v671 = vld [vmem:[%s584] sm:$0xf]
        %v672 = vld [vmem:[%s584 + $0x4] sm:$0xf]
        %v675 = vunpack.c.l.b16 %v671
        %v676 = vunpack.c.l.b16 %v672
        %v677 = vpack.c.b16 %v676, %v675
        %vm679 = vcmask 130048
        %v681 = vsel %vm679, %v666, 0
        %683 = vmatpush.bf16.msra.mxu0 0
        %684 = vmatpush.bf16.msra.mxu0 0
        %685 = vmatpush.bf16.msra.mxu0 0
        %686 = vmatpush.bf16.msra.mxu0 0
        %687 = vmatpush.bf16.msra.mxu0 0
        %688 = vmatpush.bf16.msra.mxu0 0
        %689 = vmatpush.bf16.msra.mxu0 0
        %690 = vmatpush.bf16.msra.mxu0 %v677
        %691 = vmatmul.bf16.gmra.mxu0 %v681
        %v692 = vpop.f32.mrf.mxu0
        %v693 = vadd.f32 0.0, %v692
        %v694 = vpop.f32.mrf.mxu0
        %v695 = vadd.f32 0.0, %v694
        %696 = vdwg.mxu0
        %v697 = vld [vmem:[%s591] sm:$0xf]
        %v698 = vld [vmem:[%s591 + $0x4] sm:$0xf]
        %v701 = vunpack.c.l.b16 %v697
        %v702 = vunpack.c.l.b16 %v698
        %v703 = vpack.c.b16 %v702, %v701
        %v706 = vsel %vm679, %v670, 0
        %708 = vmatpush.bf16.msra.mxu0 0
        %709 = vmatpush.bf16.msra.mxu0 0
        %710 = vmatpush.bf16.msra.mxu0 0
        %711 = vmatpush.bf16.msra.mxu0 0
        %712 = vmatpush.bf16.msra.mxu0 0
        %713 = vmatpush.bf16.msra.mxu0 0
        %714 = vmatpush.bf16.msra.mxu0 0
        %715 = vmatpush.bf16.msra.mxu0 %v703
        %716 = vmatmul.bf16.gmra.mxu0 %v706
        %v717 = vpop.f32.mrf.mxu0
        %v718 = vadd.f32 0.0, %v717
        %v719 = vpop.f32.mrf.mxu0
        %v720 = vadd.f32 0.0, %v719
        %721 = vdwg.mxu0
        %v722 = vld [vmem:[%s5] sm:$0xf]
        %v723 = vld [vmem:[%s5 + $0x4] sm:$0xf]
        %v724 = vpack.c.bf16 %v695, %v693
        %v725 = vld [vmem:[%s6] sm:$0xff]
        %v726 = vld [vmem:[%s6 + $0x8] sm:$0xff]
        %728 = vset.pattern.permute.xlu0 0
        %729 = vperm.xlu0 %728, %v725
        %v730 = vpop.permute.xlu0 %729
        %733 = vset.pattern.permute.xlu0 0
        %734 = vperm.xlu0 %733, %v726
        %v735 = vpop.permute.xlu0 %734
        %v739 = vunpack.c.l.b16 %v722
        %v740 = vunpack.c.l.b16 %v723
        %v741 = vpack.c.b16 %v740, %v739
        %v743 = vsel %vm679, %v741, 0
        %745 = vmatpush.bf16.msra.mxu0 0
        %746 = vmatpush.bf16.msra.mxu0 0
        %747 = vmatpush.bf16.msra.mxu0 0
        %748 = vmatpush.bf16.msra.mxu0 0
        %749 = vmatpush.bf16.msra.mxu0 0
        %750 = vmatpush.bf16.msra.mxu0 0
        %751 = vmatpush.bf16.msra.mxu0 0
        %752 = vmatpush.bf16.msra.mxu0 %v724
        %753 = vmatmul.bf16.gmra.mxu0 %v743
        %v754 = vpop.f32.mrf.mxu0
        %v755 = vadd.f32 %v730, %v754
        %v756 = vpop.f32.mrf.mxu0
        %v757 = vadd.f32 %v735, %v756
        %758 = vdwg.mxu0
        %v759 = vld [vmem:[%s598] sm:$0xff]
        %v760 = vld [vmem:[%s598 + $0x8] sm:$0xff]
        %v761 = vadd.f32 %v755, %v759
        %v762 = vadd.f32 %v757, %v760
        %v763 = vld [vmem:[%s7] sm:$0xf]
        %v764 = vld [vmem:[%s7 + $0x4] sm:$0xf]
        %v765 = vpack.c.bf16 %v720, %v718
        %v766 = vld [vmem:[%s8] sm:$0xff]
        %v767 = vld [vmem:[%s8 + $0x8] sm:$0xff]
        %769 = vset.pattern.permute.xlu0 0
        %770 = vperm.xlu0 %769, %v766
        %v771 = vpop.permute.xlu0 %770
        %774 = vset.pattern.permute.xlu0 0
        %775 = vperm.xlu0 %774, %v767
        %v776 = vpop.permute.xlu0 %775
        %v780 = vunpack.c.l.b16 %v763
        %v781 = vunpack.c.l.b16 %v764
        %v782 = vpack.c.b16 %v781, %v780
        %v784 = vsel %vm679, %v782, 0
        %786 = vmatpush.bf16.msra.mxu0 0
        %787 = vmatpush.bf16.msra.mxu0 0
        %788 = vmatpush.bf16.msra.mxu0 0
        %789 = vmatpush.bf16.msra.mxu0 0
        %790 = vmatpush.bf16.msra.mxu0 0
        %791 = vmatpush.bf16.msra.mxu0 0
        %792 = vmatpush.bf16.msra.mxu0 0
        %793 = vmatpush.bf16.msra.mxu0 %v765
        %794 = vmatmul.bf16.gmra.mxu0 %v784
        %v795 = vpop.f32.mrf.mxu0
        %v796 = vadd.f32 %v771, %v795
        %v797 = vpop.f32.mrf.mxu0
        %v798 = vadd.f32 %v776, %v797
        %799 = vdwg.mxu0
        %v800 = vld [vmem:[%s605] sm:$0xff]
        %v801 = vld [vmem:[%s605 + $0x8] sm:$0xff]
        %v802 = vadd.f32 %v796, %v800
        %v803 = vadd.f32 %v798, %v801
        %v804 = vpack.c.bf16 %v762, %v761
        %v805 = vpack.c.bf16 %v803, %v802
        %v806 = vld [vmem:[%s9] sm:$0xf]
        %v807 = vld [vmem:[%s9 + $0x4] sm:$0xf]
        %v808 = vld [vmem:[%s10] sm:$0xff]
        %v809 = vld [vmem:[%s10 + $0x8] sm:$0xff]
        %811 = vset.pattern.permute.xlu0 0
        %812 = vperm.xlu0 %811, %v808
        %v813 = vpop.permute.xlu0 %812
        %816 = vset.pattern.permute.xlu0 0
        %817 = vperm.xlu0 %816, %v809
        %v818 = vpop.permute.xlu0 %817
        %v822 = vunpack.c.l.b16 %v806
        %v823 = vunpack.c.l.b16 %v807
        %v824 = vpack.c.b16 %v823, %v822
        %vm825 = vcmask 261120
        %v827 = vsel %vm825, %v824, 0
        %829 = vmatpush.bf16.msra.mxu0 0
        %830 = vmatpush.bf16.msra.mxu0 0
        %831 = vmatpush.bf16.msra.mxu0 0
        %832 = vmatpush.bf16.msra.mxu0 0
        %833 = vmatpush.bf16.msra.mxu0 0
        %834 = vmatpush.bf16.msra.mxu0 0
        %835 = vmatpush.bf16.msra.mxu0 %v805
        %836 = vmatpush.bf16.msra.mxu0 %v804
        %837 = vmatmul.bf16.gmra.mxu0 %v827
        %v838 = vpop.f32.mrf.mxu0
        %v839 = vadd.f32 %v813, %v838
        %v840 = vpop.f32.mrf.mxu0
        %v841 = vadd.f32 %v818, %v840
        %842 = vdwg.mxu0
        %843 = vst [vmem:[%s657] sm:$0xff] %v839
        %844 = vst [vmem:[%s657 + $0x8] sm:$0xff] %v841
        %s845 = sand.u32 %s308, 1
        %s846 = sand.u32 %s308, 1
        %s847 = smul.addr %s846, 16
        %s848 = scalar_lea.vmem [#allocation6], %s847
        // Predicated region
        $region223: #{dual_attention_forward.7} parent=205 // pred_check
          %p849 = pneg %p318
        $region224: #{dual_attention_forward.7} parent=205 // pred_check_branch
          %851 = sbr.rel (%p849) target = $region226
        $region225: #{dual_attention_forward.7} parent=205 // pred_region
          %s852 = smul.addr %s26, 4
          %s853 = sadd.s32 %s27, %s852
          %s854 = smul.addr %s853, 8
          %s855 = scalar_lea.vmem %s11, %s854
          // Predicated region
          $region227: #{dual_attention_forward.7} parent=225 // pred_check
            _
          $region228: #{dual_attention_forward.7} parent=225 // pred_check_branch
            %857 = sbr.rel (0) target = $region230
          $region229: #{dual_attention_forward.7} parent=225 // pred_region
            // Predicated region
            $region231: #{dual_attention_forward.7} parent=229 // pred_check
              _
            $region232: #{dual_attention_forward.7} parent=229 // pred_check_branch
              %859 = sbr.rel (0) target = $region234
            $region233: #{dual_attention_forward.7} parent=229 // pred_region
              // Predicated region
              $region246: #{dual_attention_forward.7} parent=233 // pred_check
                _
              $region247: #{dual_attention_forward.7} parent=233 // pred_check_branch
                %877 = sbr.rel (0) target = $region249
              $region248: #{dual_attention_forward.7} parent=233 // pred_region
                loop: start=0, step=1, limit=1
                $region250: #{dual_attention_forward.7} parent=248 // loop_pre_header
                  _
                $region251: #{dual_attention_forward.7} parent=248 // loop_header
                  %s879 = sphi 0, %s883
                  %p880 = scmp.ge.s32.totalorder %s879, 1
                  %s884 = sphi %s848, %s848
                  %s885 = sphi %s855, %s855
                $region252: #{dual_attention_forward.7} parent=248 // loop_header_branch
                  %882 = sbr.rel (%p880) target = $region256
                $region253: #{dual_attention_forward.7} parent=248 // loop_body
                  %v886 = vld [vmem:[%s884] sm:$0xff]
                  %887 = vst [vmem:[%s885] sm:$0xff] %v886
                  %v888 = vld [vmem:[%s884 + $0x8] sm:$0xff]
                  %889 = vst [vmem:[%s885 + $0x10] sm:$0xff] %v888
                $region254: #{dual_attention_forward.7} parent=248 // loop_footer
                  %s883 = sadd.s32 1, %s879
                $region255: #{dual_attention_forward.7} parent=248 // loop_footer_branch
                  %878 = sbr.rel target = $region251
                $region256: #{dual_attention_forward.7} parent=248 // loop_exit
                  _
              $region249: #{dual_attention_forward.7} parent=233 // pred_fallthru
                _
              // Predicated region
              $region257: #{dual_attention_forward.7} parent=233 // pred_check
                _
              $region258: #{dual_attention_forward.7} parent=233 // pred_check_branch
                %891 = sbr.rel target = $region260
              $region259: #{dual_attention_forward.7} parent=233 // pred_region
                _
              $region260: #{dual_attention_forward.7} parent=233 // pred_fallthru
                _
            $region234: #{dual_attention_forward.7} parent=229 // pred_fallthru
              _
            // Predicated region
            $region235: #{dual_attention_forward.7} parent=229 // pred_check
              _
            $region236: #{dual_attention_forward.7} parent=229 // pred_check_branch
              %861 = sbr.rel target = $region238
            $region237: #{dual_attention_forward.7} parent=229 // pred_region
              %s863 = ssub.s32 256, 1
              loop: start=0, step=1, limit=1
              $region239: #{dual_attention_forward.7} parent=237 // loop_pre_header
                _
              $region240: #{dual_attention_forward.7} parent=237 // loop_header
                %s865 = sphi 0, %s869
                %p866 = scmp.ge.s32.totalorder %s865, 1
                %s870 = sphi %s848, %s848
                %s871 = sphi %s855, %s855
              $region241: #{dual_attention_forward.7} parent=237 // loop_header_branch
                %868 = sbr.rel (%p866) target = $region245
              $region242: #{dual_attention_forward.7} parent=237 // loop_body
                %v872 = vld [vmem:[%s870] sm:%s863]
                %873 = vst [vmem:[%s871] sm:%s863] %v872
                %v874 = vld [vmem:[%s870 + $0x8] sm:%s863]
                %875 = vst [vmem:[%s871 + $0x10] sm:%s863] %v874
              $region243: #{dual_attention_forward.7} parent=237 // loop_footer
                %s869 = sadd.s32 1, %s865
              $region244: #{dual_attention_forward.7} parent=237 // loop_footer_branch
                %864 = sbr.rel target = $region240
              $region245: #{dual_attention_forward.7} parent=237 // loop_exit
                _
            $region238: #{dual_attention_forward.7} parent=229 // pred_fallthru
              _
          $region230: #{dual_attention_forward.7} parent=225 // pred_fallthru
            _
          %892 = vnop
        $region226: #{dual_attention_forward.7} parent=205 // pred_fallthru
          _
      $region206: #{dual_attention_forward.7} parent=5 // pred_fallthru
        _
      %p893 = scmp.le.s32.totalorder 2, %s17
      // Predicated region
      $region261: #{dual_attention_forward.7} parent=5 // pred_check
        %p894 = pneg %p893
      $region262: #{dual_attention_forward.7} parent=5 // pred_check_branch
        %896 = sbr.rel (%p894) target = $region264
      $region263: #{dual_attention_forward.7} parent=5 // pred_region
        %s897 = ssub.s32 %s17, 2
        // Predicated region
        $region265: #{dual_attention_forward.7} parent=263 // pred_check
          %p898 = pneg %p324
        $region266: #{dual_attention_forward.7} parent=263 // pred_check_branch
          %900 = sbr.rel (%p898) target = $region268
        $region267: #{dual_attention_forward.7} parent=263 // pred_region
          %s901 = sand.u32 %s309, 1
          %s902 = sand.u32 %s309, 1
          %s903 = smul.addr %s902, 16
          %s904 = scalar_lea.vmem [#allocation6], %s903
        $region268: #{dual_attention_forward.7} parent=263 // pred_fallthru
          _
      $region264: #{dual_attention_forward.7} parent=5 // pred_fallthru
        _
    $region6: #{dual_attention_forward.7} parent=1 // loop_footer
      %s21 = sadd.s32 1, %s17
    $region7: #{dual_attention_forward.7} parent=1 // loop_footer_branch
      %16 = sbr.rel target = $region3
    $region8: #{dual_attention_forward.7} parent=1 // loop_exit
      _

// kernel: dual_attention_forward.6
$region0: #{dual_attention_forward.6}
  #allocation0 [shape = 'u32[]', space=smem, size = 0x4, offset = 0x4, fixed_abs, tag = 'smem constant byte address 0x4 - core index']
  #allocation1 [shape = 'u32[72,128]{1,0:T(1,128)}', space=vmem, size = 0x9000, scoped, tag = 'internal scratch']
  #allocation2 [shape = 'f32[16,16]{1,0:T(8,128)}', space=vmem, size = 0x2000, scoped, tag = 'scratch operand']
  #allocation3 [shape = 'f32[16,16]{1,0:T(8,128)}', space=vmem, size = 0x2000, scoped, tag = 'scratch operand']
  #allocation4 [shape = 'f32[16,1]{1,0:T(8,128)}', space=vmem, size = 0x2000, scoped, tag = 'scratch operand']
  #allocation5 [shape = 'f32[16,1]{1,0:T(8,128)}', space=vmem, size = 0x2000, scoped, tag = 'scratch operand']
  #allocation6 [shape = 'f32[1,16]{1,0:T(1,128)}', space=vmem, size = 0x200, scoped, tag = 'scratch operand']
  #allocation7 [shape = 'f32[1,16]{1,0:T(1,128)}', space=vmem, size = 0x200, scoped, tag = 'scratch operand']
  %s0 = inlined_call_operand.vmem [shape: bf16[2,32,256], index: 0, kind: input, shape index: {}]
  %s1 = inlined_call_operand.vmem [shape: bf16[2,32,256], index: 1, kind: input, shape index: {}]
  %s2 = inlined_call_operand.vmem [shape: f32[2,16,1], index: 2, kind: input, shape index: {}]
  %s3 = inlined_call_operand.vmem [shape: f32[16,16], index: 3, kind: input, shape index: {}]
  %s4 = inlined_call_operand.vmem [shape: f32[2,2,16,16], index: 4, kind: output, shape index: {}]
  %s5 = sld [smem:[#allocation0]]
  $region139: #{dual_attention_forward.6} parent=0
    _
  %s7 = ssub.s32 1, %s5
  %s8 = scalar_select 0, %s7, %s5
  $region1: #{dual_attention_forward.6} parent=0
    #allocation8 [shape = 'u8[16384]{0}', space=vmem, size = 0x4000, scoped, tag = 'input window, operand 0']
    #allocation9 [shape = 'u8[16384]{0}', space=vmem, size = 0x4000, scoped, tag = 'input window, operand 1']
    loop: start=0, step=1, limit=6
    $region2: #{dual_attention_forward.6} parent=1 // loop_pre_header
      _
    $region3: #{dual_attention_forward.6} parent=1 // loop_header
      %s10 = sphi 0, %s14
      %p11 = scmp.ge.s32.totalorder %s10, 6
      %s17 = sphi 0, %s29
      %s18 = sphi 0, %s25
      %s19 = sphi 0, %s17
      %s20 = sphi 0, %s18
      %s21 = sphi 0, %s19
      %s22 = sphi 0, %s20
      %s34 = sphi 0, %s36
      %s37 = sphi 0, %s34
      %s38 = sphi 0, %s37
      %s54 = sphi 0, %s38
      %s62 = sphi 0, %s64
      %s65 = sphi 0, %s62
      %s66 = sphi 0, %s65
      %s82 = sphi 0, %s66
      %s86 = sphi 0, %s86
      %s88 = sphi 0, %s86
      %s89 = sphi 0, %s88
      %s103 = sphi 0, %s89
      %s107 = sphi 0, %s107
      %s109 = sphi 0, %s107
      %s110 = sphi 0, %s109
      %s124 = sphi 0, %s110
      %s130 = sphi 0, %s132
      %s133 = sphi 0, %s130
      %s134 = sphi 0, %s133
      %s150 = sphi 0, %s134
    $region4: #{dual_attention_forward.6} parent=1 // loop_header_branch
      %13 = sbr.rel (%p11) target = $region8
    $region5: #{dual_attention_forward.6} parent=1 // loop_body
      %s15 = ssub.s32 %s10, 1
      %s16 = ssub.s32 %s10, 2
      %s23 = sadd.s32 1, %s18
      %p24 = scmp.ge.s32.totalorder %s23, 2
      %s25 = scalar_select %p24, 0, %s23
      %s26 = sadd.s32 1, %s17
      %s27 = scalar_select %p24, %s26, %s17
      %p28 = scmp.ge.s32.totalorder %s27, 2
      %s29 = scalar_select %p28, 0, %s27
      %s30 = ssub.s32 %s17, %s29
      %s31 = ssub.s32 %s18, %s25
      %s32 = sor.u32 %s30, %s31
      %p33 = scmp.eq.s32.totalorder %s32, 0
      %s35 = sadd.s32 %s34, 1
      %s36 = scalar_select %p33, %s34, %s35
      %p39 = pneg %p33
      %p40 = scmp.eq.s32.totalorder %s10, 3
      %p41 = por %p39, %p40
      %p42 = scmp.ne.s32.totalorder %s34, %s37
      %p43 = scmp.eq.s32.totalorder %s10, 0
      %p44 = por %p42, %p43
      %p45 = scmp.ne.s32.totalorder %s34, %s37
      %p46 = scmp.eq.s32.totalorder %s15, 3
      %p47 = por %p45, %p46
      %p48 = scmp.ne.s32.totalorder %s37, %s38
      %p49 = scmp.eq.s32.totalorder %s15, 0
      %p50 = por %p48, %p49
      %p51 = scmp.ne.s32.totalorder %s37, %s38
      %p52 = scmp.eq.s32.totalorder %s16, 3
      %p53 = por %p51, %p52
      %p55 = scmp.ne.s32.totalorder %s38, %s54
      %p56 = scmp.eq.s32.totalorder %s16, 0
      %p57 = por %p55, %p56
      %s58 = ssub.s32 %s17, %s29
      %s59 = ssub.s32 %s18, %s25
      %s60 = sor.u32 %s58, %s59
      %p61 = scmp.eq.s32.totalorder %s60, 0
      %s63 = sadd.s32 %s62, 1
      %s64 = scalar_select %p61, %s62, %s63
      %p67 = pneg %p61
      %p68 = scmp.eq.s32.totalorder %s10, 3
      %p69 = por %p67, %p68
      %p70 = scmp.ne.s32.totalorder %s62, %s65
      %p71 = scmp.eq.s32.totalorder %s10, 0
      %p72 = por %p70, %p71
      %p73 = scmp.ne.s32.totalorder %s62, %s65
      %p74 = scmp.eq.s32.totalorder %s15, 3
      %p75 = por %p73, %p74
      %p76 = scmp.ne.s32.totalorder %s65, %s66
      %p77 = scmp.eq.s32.totalorder %s15, 0
      %p78 = por %p76, %p77
      %p79 = scmp.ne.s32.totalorder %s65, %s66
      %p80 = scmp.eq.s32.totalorder %s16, 3
      %p81 = por %p79, %p80
      %p83 = scmp.ne.s32.totalorder %s66, %s82
      %p84 = scmp.eq.s32.totalorder %s16, 0
      %p85 = por %p83, %p84
      %s87 = sadd.s32 %s86, 1
      %p90 = scmp.eq.s32.totalorder %s10, 3
      %p91 = scmp.ne.s32.totalorder %s86, %s88
      %p92 = scmp.eq.s32.totalorder %s10, 0
      %p93 = por %p91, %p92
      %p94 = scmp.ne.s32.totalorder %s86, %s88
      %p95 = scmp.eq.s32.totalorder %s15, 3
      %p96 = por %p94, %p95
      %p97 = scmp.ne.s32.totalorder %s88, %s89
      %p98 = scmp.eq.s32.totalorder %s15, 0
      %p99 = por %p97, %p98
      %p100 = scmp.ne.s32.totalorder %s88, %s89
      %p101 = scmp.eq.s32.totalorder %s16, 3
      %p102 = por %p100, %p101
      %p104 = scmp.ne.s32.totalorder %s89, %s103
      %p105 = scmp.eq.s32.totalorder %s16, 0
      %p106 = por %p104, %p105
      %s108 = sadd.s32 %s107, 1
      %p111 = scmp.eq.s32.totalorder %s10, 3
      %p112 = scmp.ne.s32.totalorder %s107, %s109
      %p113 = scmp.eq.s32.totalorder %s10, 0
      %p114 = por %p112, %p113
      %p115 = scmp.ne.s32.totalorder %s107, %s109
      %p116 = scmp.eq.s32.totalorder %s15, 3
      %p117 = por %p115, %p116
      %p118 = scmp.ne.s32.totalorder %s109, %s110
      %p119 = scmp.eq.s32.totalorder %s15, 0
      %p120 = por %p118, %p119
      %p121 = scmp.ne.s32.totalorder %s109, %s110
      %p122 = scmp.eq.s32.totalorder %s16, 3
      %p123 = por %p121, %p122
      %p125 = scmp.ne.s32.totalorder %s110, %s124
      %p126 = scmp.eq.s32.totalorder %s16, 0
      %p127 = por %p125, %p126
      %s128 = ssub.s32 %s17, %s29
      %p129 = scmp.eq.s32.totalorder %s128, 0
      %s131 = sadd.s32 %s130, 1
      %s132 = scalar_select %p129, %s130, %s131
      %p135 = pneg %p129
      %p136 = scmp.eq.s32.totalorder %s10, 3
      %p137 = por %p135, %p136
      %p138 = scmp.ne.s32.totalorder %s130, %s133
      %p139 = scmp.eq.s32.totalorder %s10, 0
      %p140 = por %p138, %p139
      %p141 = scmp.ne.s32.totalorder %s130, %s133
      %p142 = scmp.eq.s32.totalorder %s15, 3
      %p143 = por %p141, %p142
      %p144 = scmp.ne.s32.totalorder %s133, %s134
      %p145 = scmp.eq.s32.totalorder %s15, 0
      %p146 = por %p144, %p145
      %p147 = scmp.ne.s32.totalorder %s133, %s134
      %p148 = scmp.eq.s32.totalorder %s16, 3
      %p149 = por %p147, %p148
      %p151 = scmp.ne.s32.totalorder %s134, %s150
      %p152 = scmp.eq.s32.totalorder %s16, 0
      %p153 = por %p151, %p152
      %p154 = scmp.le.s32.totalorder 1, %s10
      %p155 = scmp.lt.s32.totalorder %s10, 5
      %p156 = pnand %p154, %p155
      %p157 = pneg %p156
      // Predicated region
      $region9: #{dual_attention_forward.6} parent=5 // pred_check
        _
      $region10: #{dual_attention_forward.6} parent=5 // pred_check_branch
        %159 = sbr.rel (%p156) target = $region12
      $region11: #{dual_attention_forward.6} parent=5 // pred_region
        %s160 = ssub.s32 %s10, 1
        // Predicated region
        $region13: #{dual_attention_forward.6} parent=11 // pred_check
          %p161 = pneg %p99
        $region14: #{dual_attention_forward.6} parent=11 // pred_check_branch
          %163 = sbr.rel (%p161) target = $region16
        $region15: #{dual_attention_forward.6} parent=11 // pred_region
          _
        $region16: #{dual_attention_forward.6} parent=11 // pred_fallthru
          _
        // Predicated region
        $region17: #{dual_attention_forward.6} parent=11 // pred_check
          %p164 = pneg %p120
        $region18: #{dual_attention_forward.6} parent=11 // pred_check_branch
          %166 = sbr.rel (%p164) target = $region20
        $region19: #{dual_attention_forward.6} parent=11 // pred_region
          _
        $region20: #{dual_attention_forward.6} parent=11 // pred_fallthru
          _
      $region12: #{dual_attention_forward.6} parent=5 // pred_fallthru
        _
      %p167 = scmp.lt.s32.totalorder %s10, 4
      // Predicated region
      $region21: #{dual_attention_forward.6} parent=5 // pred_check
        %p168 = pneg %p167
      $region22: #{dual_attention_forward.6} parent=5 // pred_check_branch
        %170 = sbr.rel (%p168) target = $region24
      $region23: #{dual_attention_forward.6} parent=5 // pred_region
        // Predicated region
        $region25: #{dual_attention_forward.6} parent=23 // pred_check
          %p171 = pneg %p44
        $region26: #{dual_attention_forward.6} parent=23 // pred_check_branch
          %173 = sbr.rel (%p171) target = $region28
        $region27: #{dual_attention_forward.6} parent=23 // pred_region
          %s174 = sand.u32 %s34, 1
          %s175 = sand.u32 %s34, 1
          %s176 = smul.addr %s175, 16
          %s177 = scalar_lea.vmem [#allocation8], %s176
          %s178 = smul.addr %s17, 8
          %s179 = sadd.s32 %s18, %s178
          %s180 = smul.addr %s179, 4
          %s181 = scalar_lea.vmem %s0, %s180
          // Predicated region
          $region29: #{dual_attention_forward.6} parent=27 // pred_check
            _
          $region30: #{dual_attention_forward.6} parent=27 // pred_check_branch
            %183 = sbr.rel (0) target = $region32
          $region31: #{dual_attention_forward.6} parent=27 // pred_region
            // Predicated region
            $region33: #{dual_attention_forward.6} parent=31 // pred_check
              _
            $region34: #{dual_attention_forward.6} parent=31 // pred_check_branch
              %185 = sbr.rel target = $region36
            $region35: #{dual_attention_forward.6} parent=31 // pred_region
              // Predicated region
              $region48: #{dual_attention_forward.6} parent=35 // pred_check
                _
              $region49: #{dual_attention_forward.6} parent=35 // pred_check_branch
                %207 = sbr.rel (0) target = $region51
              $region50: #{dual_attention_forward.6} parent=35 // pred_region
                loop: start=0, step=1, limit=1
                $region52: #{dual_attention_forward.6} parent=50 // loop_pre_header
                  _
                $region53: #{dual_attention_forward.6} parent=50 // loop_header
                  %s209 = sphi 0, %s213
                  %p210 = scmp.ge.s32.totalorder %s209, 1
                  %s214 = sphi %s181, %s181
                  %s215 = sphi %s177, %s177
                $region54: #{dual_attention_forward.6} parent=50 // loop_header_branch
                  %212 = sbr.rel (%p210) target = $region58
                $region55: #{dual_attention_forward.6} parent=50 // loop_body
                  _
                $region56: #{dual_attention_forward.6} parent=50 // loop_footer
                  %s213 = sadd.s32 1, %s209
                $region57: #{dual_attention_forward.6} parent=50 // loop_footer_branch
                  %208 = sbr.rel target = $region53
                $region58: #{dual_attention_forward.6} parent=50 // loop_exit
                  _
                %s217 = ssub.s32 16, 1
                loop: start=0, step=1, limit=1
                $region59: #{dual_attention_forward.6} parent=50 // loop_pre_header
                  _
                $region60: #{dual_attention_forward.6} parent=50 // loop_header
                  %s219 = sphi 0, %s223
                  %p220 = scmp.ge.s32.totalorder %s219, 1
                  %s224 = sphi %s181, %s181
                  %s225 = sphi %s177, %s177
                $region61: #{dual_attention_forward.6} parent=50 // loop_header_branch
                  %222 = sbr.rel (%p220) target = $region65
                $region62: #{dual_attention_forward.6} parent=50 // loop_body
                  %v226 = vld [vmem:[%s224] sm:%s217]
                  %227 = vst [vmem:[%s225] sm:%s217] %v226
                  %v228 = vld [vmem:[%s224 + $0x8] sm:%s217]
                  %229 = vst [vmem:[%s225 + $0x4] sm:%s217] %v228
                  %v230 = vld [vmem:[%s224 + $0x10] sm:%s217]
                  %231 = vst [vmem:[%s225 + $0x8] sm:%s217] %v230
                  %v232 = vld [vmem:[%s224 + $0x18] sm:%s217]
                  %233 = vst [vmem:[%s225 + $0xc] sm:%s217] %v232
                $region63: #{dual_attention_forward.6} parent=50 // loop_footer
                  %s223 = sadd.s32 1, %s219
                $region64: #{dual_attention_forward.6} parent=50 // loop_footer_branch
                  %218 = sbr.rel target = $region60
                $region65: #{dual_attention_forward.6} parent=50 // loop_exit
                  _
              $region51: #{dual_attention_forward.6} parent=35 // pred_fallthru
                _
            $region36: #{dual_attention_forward.6} parent=31 // pred_fallthru
              _
            // Predicated region
            $region37: #{dual_attention_forward.6} parent=31 // pred_check
              _
            $region38: #{dual_attention_forward.6} parent=31 // pred_check_branch
              %187 = sbr.rel (0) target = $region40
            $region39: #{dual_attention_forward.6} parent=31 // pred_region
              %s189 = ssub.s32 16, 1
              loop: start=0, step=1, limit=1
              $region41: #{dual_attention_forward.6} parent=39 // loop_pre_header
                _
              $region42: #{dual_attention_forward.6} parent=39 // loop_header
                %s191 = sphi 0, %s195
                %p192 = scmp.ge.s32.totalorder %s191, 1
                %s196 = sphi %s181, %s181
                %s197 = sphi %s177, %s177
              $region43: #{dual_attention_forward.6} parent=39 // loop_header_branch
                %194 = sbr.rel (%p192) target = $region47
              $region44: #{dual_attention_forward.6} parent=39 // loop_body
                %v198 = vld [vmem:[%s196] sm:%s189]
                %199 = vst [vmem:[%s197] sm:%s189] %v198
                %v200 = vld [vmem:[%s196 + $0x8] sm:%s189]
                %201 = vst [vmem:[%s197 + $0x4] sm:%s189] %v200
                %v202 = vld [vmem:[%s196 + $0x10] sm:%s189]
                %203 = vst [vmem:[%s197 + $0x8] sm:%s189] %v202
                %v204 = vld [vmem:[%s196 + $0x18] sm:%s189]
                %205 = vst [vmem:[%s197 + $0xc] sm:%s189] %v204
              $region45: #{dual_attention_forward.6} parent=39 // loop_footer
                %s195 = sadd.s32 1, %s191
              $region46: #{dual_attention_forward.6} parent=39 // loop_footer_branch
                %190 = sbr.rel target = $region42
              $region47: #{dual_attention_forward.6} parent=39 // loop_exit
                _
            $region40: #{dual_attention_forward.6} parent=31 // pred_fallthru
              _
          $region32: #{dual_attention_forward.6} parent=27 // pred_fallthru
            _
          %234 = vnop
        $region28: #{dual_attention_forward.6} parent=23 // pred_fallthru
          _
        // Predicated region
        $region66: #{dual_attention_forward.6} parent=23 // pred_check
          %p235 = pneg %p72
        $region67: #{dual_attention_forward.6} parent=23 // pred_check_branch
          %237 = sbr.rel (%p235) target = $region69
        $region68: #{dual_attention_forward.6} parent=23 // pred_region
          %s238 = sand.u32 %s62, 1
          %s239 = sand.u32 %s62, 1
          %s240 = smul.addr %s239, 16
          %s241 = scalar_lea.vmem [#allocation9], %s240
          %s242 = smul.addr %s17, 8
          %s243 = sadd.s32 %s18, %s242
          %s244 = smul.addr %s243, 4
          %s245 = scalar_lea.vmem %s1, %s244
          // Predicated region
          $region70: #{dual_attention_forward.6} parent=68 // pred_check
            _
          $region71: #{dual_attention_forward.6} parent=68 // pred_check_branch
            %247 = sbr.rel (0) target = $region73
          $region72: #{dual_attention_forward.6} parent=68 // pred_region
            // Predicated region
            $region74: #{dual_attention_forward.6} parent=72 // pred_check
              _
            $region75: #{dual_attention_forward.6} parent=72 // pred_check_branch
              %249 = sbr.rel target = $region77
            $region76: #{dual_attention_forward.6} parent=72 // pred_region
              // Predicated region
              $region89: #{dual_attention_forward.6} parent=76 // pred_check
                _
              $region90: #{dual_attention_forward.6} parent=76 // pred_check_branch
                %271 = sbr.rel (0) target = $region92
              $region91: #{dual_attention_forward.6} parent=76 // pred_region
                loop: start=0, step=1, limit=1
                $region93: #{dual_attention_forward.6} parent=91 // loop_pre_header
                  _
                $region94: #{dual_attention_forward.6} parent=91 // loop_header
                  %s273 = sphi 0, %s277
                  %p274 = scmp.ge.s32.totalorder %s273, 1
                  %s278 = sphi %s245, %s245
                  %s279 = sphi %s241, %s241
                $region95: #{dual_attention_forward.6} parent=91 // loop_header_branch
                  %276 = sbr.rel (%p274) target = $region99
                $region96: #{dual_attention_forward.6} parent=91 // loop_body
                  _
                $region97: #{dual_attention_forward.6} parent=91 // loop_footer
                  %s277 = sadd.s32 1, %s273
                $region98: #{dual_attention_forward.6} parent=91 // loop_footer_branch
                  %272 = sbr.rel target = $region94
                $region99: #{dual_attention_forward.6} parent=91 // loop_exit
                  _
                %s281 = ssub.s32 16, 1
                loop: start=0, step=1, limit=1
                $region100: #{dual_attention_forward.6} parent=91 // loop_pre_header
                  _
                $region101: #{dual_attention_forward.6} parent=91 // loop_header
                  %s283 = sphi 0, %s287
                  %p284 = scmp.ge.s32.totalorder %s283, 1
                  %s288 = sphi %s245, %s245
                  %s289 = sphi %s241, %s241
                $region102: #{dual_attention_forward.6} parent=91 // loop_header_branch
                  %286 = sbr.rel (%p284) target = $region106
                $region103: #{dual_attention_forward.6} parent=91 // loop_body
                  %v290 = vld [vmem:[%s288] sm:%s281]
                  %291 = vst [vmem:[%s289] sm:%s281] %v290
                  %v292 = vld [vmem:[%s288 + $0x8] sm:%s281]
                  %293 = vst [vmem:[%s289 + $0x4] sm:%s281] %v292
                  %v294 = vld [vmem:[%s288 + $0x10] sm:%s281]
                  %295 = vst [vmem:[%s289 + $0x8] sm:%s281] %v294
                  %v296 = vld [vmem:[%s288 + $0x18] sm:%s281]
                  %297 = vst [vmem:[%s289 + $0xc] sm:%s281] %v296
                $region104: #{dual_attention_forward.6} parent=91 // loop_footer
                  %s287 = sadd.s32 1, %s283
                $region105: #{dual_attention_forward.6} parent=91 // loop_footer_branch
                  %282 = sbr.rel target = $region101
                $region106: #{dual_attention_forward.6} parent=91 // loop_exit
                  _
              $region92: #{dual_attention_forward.6} parent=76 // pred_fallthru
                _
            $region77: #{dual_attention_forward.6} parent=72 // pred_fallthru
              _
            // Predicated region
            $region78: #{dual_attention_forward.6} parent=72 // pred_check
              _
            $region79: #{dual_attention_forward.6} parent=72 // pred_check_branch
              %251 = sbr.rel (0) target = $region81
            $region80: #{dual_attention_forward.6} parent=72 // pred_region
              %s253 = ssub.s32 16, 1
              loop: start=0, step=1, limit=1
              $region82: #{dual_attention_forward.6} parent=80 // loop_pre_header
                _
              $region83: #{dual_attention_forward.6} parent=80 // loop_header
                %s255 = sphi 0, %s259
                %p256 = scmp.ge.s32.totalorder %s255, 1
                %s260 = sphi %s245, %s245
                %s261 = sphi %s241, %s241
              $region84: #{dual_attention_forward.6} parent=80 // loop_header_branch
                %258 = sbr.rel (%p256) target = $region88
              $region85: #{dual_attention_forward.6} parent=80 // loop_body
                %v262 = vld [vmem:[%s260] sm:%s253]
                %263 = vst [vmem:[%s261] sm:%s253] %v262
                %v264 = vld [vmem:[%s260 + $0x8] sm:%s253]
                %265 = vst [vmem:[%s261 + $0x4] sm:%s253] %v264
                %v266 = vld [vmem:[%s260 + $0x10] sm:%s253]
                %267 = vst [vmem:[%s261 + $0x8] sm:%s253] %v266
                %v268 = vld [vmem:[%s260 + $0x18] sm:%s253]
                %269 = vst [vmem:[%s261 + $0xc] sm:%s253] %v268
              $region86: #{dual_attention_forward.6} parent=80 // loop_footer
                %s259 = sadd.s32 1, %s255
              $region87: #{dual_attention_forward.6} parent=80 // loop_footer_branch
                %254 = sbr.rel target = $region83
              $region88: #{dual_attention_forward.6} parent=80 // loop_exit
                _
            $region81: #{dual_attention_forward.6} parent=72 // pred_fallthru
              _
          $region73: #{dual_attention_forward.6} parent=68 // pred_fallthru
            _
          %298 = vnop
        $region69: #{dual_attention_forward.6} parent=23 // pred_fallthru
          _
      $region24: #{dual_attention_forward.6} parent=5 // pred_fallthru
        _
      %p299 = scmp.le.s32.totalorder 1, %s10
      %p300 = scmp.lt.s32.totalorder %s10, 5
      %p301 = pnand %p299, %p300
      %p302 = pneg %p301
      // Predicated region
      $region107: #{dual_attention_forward.6} parent=5 // pred_check
        _
      $region108: #{dual_attention_forward.6} parent=5 // pred_check_branch
        %304 = sbr.rel (%p301) target = $region110
      $region109: #{dual_attention_forward.6} parent=5 // pred_region
        %s305 = ssub.s32 %s10, 1
        %s306 = sand.u32 %s37, 1
        %s307 = sand.u32 %s37, 1
        %s308 = smul.addr %s307, 16
        %s309 = scalar_lea.vmem [#allocation8], %s308
        // Predicated region
        $region111: #{dual_attention_forward.6} parent=109 // pred_check
          %p310 = pneg %p50
        $region112: #{dual_attention_forward.6} parent=109 // pred_check_branch
          %312 = sbr.rel (%p310) target = $region114
        $region113: #{dual_attention_forward.6} parent=109 // pred_region
          _
        $region114: #{dual_attention_forward.6} parent=109 // pred_fallthru
          _
        %s313 = sand.u32 %s65, 1
        %s314 = sand.u32 %s65, 1
        %s315 = smul.addr %s314, 16
        %s316 = scalar_lea.vmem [#allocation9], %s315
        // Predicated region
        $region115: #{dual_attention_forward.6} parent=109 // pred_check
          %p317 = pneg %p78
        $region116: #{dual_attention_forward.6} parent=109 // pred_check_branch
          %319 = sbr.rel (%p317) target = $region118
        $region117: #{dual_attention_forward.6} parent=109 // pred_region
          _
        $region118: #{dual_attention_forward.6} parent=109 // pred_fallthru
          _
        %s320 = sand.u32 %s37, 1
        %s321 = sand.u32 %s37, 1
        %s322 = smul.addr %s321, 16
        %s323 = scalar_lea.vmem [#allocation8], %s322
        %p324 = pneg %p50
        %p325 = pneg %p47
        %s326 = sand.u32 %s65, 1
        %s327 = sand.u32 %s65, 1
        %s328 = smul.addr %s327, 16
        %s329 = scalar_lea.vmem [#allocation9], %s328
        %p330 = pneg %p78
        %p331 = pneg %p75
        %p332 = pneg %p99
        %p333 = pneg %p96
        %p334 = pneg %p120
        %p335 = pneg %p117
        %p336 = pneg %p146
        %p337 = pneg %p143
        %p338 = scmp.lt.s32.totalorder %s19, 1
        %s339 = scalar_select %p338, %s19, 1
        %s340 = smul.addr %s339, 4
        %s341 = smul.addr %s340, 8
        %s342 = scalar_lea.vmem %s4, %s341
        %p343 = scmp.lt.s32.totalorder %s19, 1
        %s344 = scalar_select %p343, %s19, 1
        %s345 = smul.addr %s344, 4
        %s346 = smul.addr %s345, 8
        %s347 = scalar_lea.vmem %s4, %s346
        %p349 = scmp.eq.s32.totalorder %s20, 0
        // Predicated region
        $region119: #{dual_attention_forward.6} parent=109 // pred_check
          %p350 = pneg %p349
        $region120: #{dual_attention_forward.6} parent=109 // pred_check_branch
          %352 = sbr.rel (%p350) target = $region122
        $region121: #{dual_attention_forward.6} parent=109 // pred_region
          %vm353 = vcmask 130048
          %354 = vst.msk [vmem:[#allocation2] sm:$0xff] %vm353, 0.0
          %355 = vst.msk [vmem:[#allocation2 + $0x8] sm:$0xff] %vm353, 0.0
          %356 = vst.msk [vmem:[#allocation3] sm:$0xff] %vm353, 0.0
          %357 = vst.msk [vmem:[#allocation3 + $0x8] sm:$0xff] %vm353, 0.0
          %vm358 = vcmask 7168
          %359 = vst.msk [vmem:[#allocation4] sm:$0xff] %vm358, 0.0
          %360 = vst.msk [vmem:[#allocation4 + $0x8] sm:$0xff] %vm358, 0.0
          %361 = vst.msk [vmem:[#allocation5] sm:$0xff] %vm358, 0.0
          %362 = vst.msk [vmem:[#allocation5 + $0x8] sm:$0xff] %vm358, 0.0
          %vm363 = vcmask 122880
          %364 = vst.msk [vmem:[#allocation6] sm:$0x1] %vm363, 0.0
          %365 = vst.msk [vmem:[#allocation7] sm:$0x1] %vm363, 0.0
        $region122: #{dual_attention_forward.6} parent=109 // pred_fallthru
          _
        %v366 = vld [vmem:[%s309] sm:$0xf]
        %v367 = vld [vmem:[%s309 + $0x4] sm:$0xf]
        %v368 = vld [vmem:[%s309 + $0x8] sm:$0xf]
        %v369 = vld [vmem:[%s309 + $0xc] sm:$0xf]
        %v370 = vld [vmem:[%s316] sm:$0xf]
        %v371 = vld [vmem:[%s316 + $0x4] sm:$0xf]
        %v372 = vld [vmem:[%s316 + $0x8] sm:$0xf]
        %v373 = vld [vmem:[%s316 + $0xc] sm:$0xf]
        %v374 = vld [vmem:[#allocation2] sm:$0xff]
        %v375 = vld [vmem:[#allocation2 + $0x8] sm:$0xff]
        %v378 = vunpack.c.l.b16 %v366
        %v379 = vunpack.c.l.b16 %v367
        %v380 = vpack.c.b16 %v379, %v378
        %v384 = vunpack.c.l.b16 %v372
        %v385 = vunpack.c.l.b16 %v373
        %v386 = vpack.c.b16 %v385, %v384
        %388 = vmatpush.bf16.xpose.msra.mxu0 0
        %389 = vmatpush.bf16.xpose.msra.mxu0 0
        %390 = vmatpush.bf16.xpose.msra.mxu0 0
        %391 = vmatpush.bf16.xpose.msra.mxu0 0
        %392 = vmatpush.bf16.xpose.msra.mxu0 0
        %393 = vmatpush.bf16.xpose.msra.mxu0 0
        %394 = vmatpush.bf16.xpose.msra.mxu0 0
        %395 = vmatpush.bf16.xpose.msra.mxu0 %v386
        %396 = vmatmul.bf16.gmra.mxu0 %v380
        %v397 = vpop.f32.mrf.mxu0
        %v398 = vadd.f32 0.0, %v397
        %v399 = vpop.f32.mrf.mxu0
        %v400 = vadd.f32 0.0, %v399
        %401 = vdwg.mxu0
        %v402 = vadd.f32 %v374, %v398
        %v403 = vadd.f32 %v375, %v400
        %vm404 = vcmask 130048
        %405 = vst.msk [vmem:[#allocation2] sm:$0xff] %vm404, %v402
        %406 = vst.msk [vmem:[#allocation2 + $0x8] sm:$0xff] %vm404, %v403
        %v407 = vld [vmem:[#allocation3] sm:$0xff]
        %v408 = vld [vmem:[#allocation3 + $0x8] sm:$0xff]
        %v411 = vunpack.c.l.b16 %v370
        %v412 = vunpack.c.l.b16 %v371
        %v413 = vpack.c.b16 %v412, %v411
        %v417 = vunpack.c.l.b16 %v368
        %v418 = vunpack.c.l.b16 %v369
        %v419 = vpack.c.b16 %v418, %v417
        %421 = vmatpush.bf16.xpose.msra.mxu0 0
        %422 = vmatpush.bf16.xpose.msra.mxu0 0
        %423 = vmatpush.bf16.xpose.msra.mxu0 0
        %424 = vmatpush.bf16.xpose.msra.mxu0 0
        %425 = vmatpush.bf16.xpose.msra.mxu0 0
        %426 = vmatpush.bf16.xpose.msra.mxu0 0
        %427 = vmatpush.bf16.xpose.msra.mxu0 0
        %428 = vmatpush.bf16.xpose.msra.mxu0 %v419
        %429 = vmatmul.bf16.gmra.mxu0 %v413
        %v430 = vpop.f32.mrf.mxu0
        %v431 = vadd.f32 0.0, %v430
        %v432 = vpop.f32.mrf.mxu0
        %v433 = vadd.f32 0.0, %v432
        %434 = vdwg.mxu0
        %v435 = vadd.f32 %v407, %v431
        %v436 = vadd.f32 %v408, %v433
        %437 = vst.msk [vmem:[#allocation3] sm:$0xff] %vm404, %v435
        %438 = vst.msk [vmem:[#allocation3 + $0x8] sm:$0xff] %vm404, %v436
        %v439 = vld [vmem:[#allocation4] sm:$0xff]
        %v440 = vld [vmem:[#allocation4 + $0x8] sm:$0xff]
        %v441 = vunpack.c.l.bf16 %v366
        %v442 = vunpack.c.l.bf16 %v367
        %v443 = vmul.f32 %v441, %v441
        %v444 = vmul.f32 %v442, %v442
        %445 = vadd.xlane.f32.xlu0 %v443
        %v446 = vpop.xlane.xlu0 %445
        %447 = vadd.xlane.f32.xlu0 %v444
        %v448 = vpop.xlane.xlu0 %447
        %v449 = vadd.f32 %v439, %v446
        %v450 = vadd.f32 %v440, %v448
        %vm451 = vcmask 7168
        %452 = vst.msk [vmem:[#allocation4] sm:$0xff] %vm451, %v449
        %453 = vst.msk [vmem:[#allocation4 + $0x8] sm:$0xff] %vm451, %v450
        %v454 = vld [vmem:[#allocation5] sm:$0xff]
        %v455 = vld [vmem:[#allocation5 + $0x8] sm:$0xff]
        %v456 = vunpack.c.l.bf16 %v370
        %v457 = vunpack.c.l.bf16 %v371
        %v458 = vmul.f32 %v456, %v456
        %v459 = vmul.f32 %v457, %v457
        %460 = vadd.xlane.f32.xlu0 %v458
        %v461 = vpop.xlane.xlu0 %460
        %462 = vadd.xlane.f32.xlu0 %v459
        %v463 = vpop.xlane.xlu0 %462
        %v464 = vadd.f32 %v454, %v461
        %v465 = vadd.f32 %v455, %v463
        %466 = vst.msk [vmem:[#allocation5] sm:$0xff] %vm451, %v464
        %467 = vst.msk [vmem:[#allocation5 + $0x8] sm:$0xff] %vm451, %v465
        %v468 = vld [vmem:[#allocation6] sm:$0x1]
        %v469 = vunpack.c.l.bf16 %v368
        %v470 = vunpack.c.l.bf16 %v369
        %v471 = vmul.f32 %v469, %v469
        %v472 = vmul.f32 %v470, %v470
        %473 = vmatpush.xpose.msra.mxu0 0.0
        %474 = vmatpush.xpose.msra.mxu0 0.0
        %475 = vmatpush.xpose.msra.mxu0 0.0
        %476 = vmatpush.xpose.msra.mxu0 0.0
        %477 = vmatpush.xpose.msra.mxu0 0.0
        %478 = vmatpush.xpose.msra.mxu0 0.0
        %479 = vmatpush.xpose.msra.mxu0 0.0
        %480 = vmatpush.xpose.msra.mxu0 0.0
        %481 = vmatpush.xpose.msra.mxu0 0.0
        %482 = vmatpush.xpose.msra.mxu0 0.0
        %483 = vmatpush.xpose.msra.mxu0 0.0
        %484 = vmatpush.xpose.msra.mxu0 0.0
        %485 = vmatpush.xpose.msra.mxu0 0.0
        %486 = vmatpush.xpose.msra.mxu0 0.0
        %487 = vmatpush.xpose.msra.mxu0 %v472
        %488 = vmatpush.xpose.msra.mxu0 %v471
        %489 = vmatmul.f32.gmra.mxu0 1.0
        %v490 = vpop.f32.mrf.mxu0
        %v491 = vadd.f32 0.0, %v490
        %492 = vdwg.mxu0
        %v493 = vadd.f32 %v468, %v491
        %vm494 = vcmask 122880
        %495 = vst.msk [vmem:[#allocation6] sm:$0x1] %vm494, %v493
        %v496 = vld [vmem:[#allocation7] sm:$0x1]
        %v497 = vunpack.c.l.bf16 %v372
        %v498 = vunpack.c.l.bf16 %v373
        %v499 = vmul.f32 %v497, %v497
        %v500 = vmul.f32 %v498, %v498
        %501 = vmatpush.xpose.msra.mxu0 0.0
        %502 = vmatpush.xpose.msra.mxu0 0.0
        %503 = vmatpush.xpose.msra.mxu0 0.0
        %504 = vmatpush.xpose.msra.mxu0 0.0
        %505 = vmatpush.xpose.msra.mxu0 0.0
        %506 = vmatpush.xpose.msra.mxu0 0.0
        %507 = vmatpush.xpose.msra.mxu0 0.0
        %508 = vmatpush.xpose.msra.mxu0 0.0
        %509 = vmatpush.xpose.msra.mxu0 0.0
        %510 = vmatpush.xpose.msra.mxu0 0.0
        %511 = vmatpush.xpose.msra.mxu0 0.0
        %512 = vmatpush.xpose.msra.mxu0 0.0
        %513 = vmatpush.xpose.msra.mxu0 0.0
        %514 = vmatpush.xpose.msra.mxu0 0.0
        %515 = vmatpush.xpose.msra.mxu0 %v500
        %516 = vmatpush.xpose.msra.mxu0 %v499
        %517 = vmatmul.f32.gmra.mxu0 1.0
        %v518 = vpop.f32.mrf.mxu0
        %v519 = vadd.f32 0.0, %v518
        %520 = vdwg.mxu0
        %v521 = vadd.f32 %v496, %v519
        %522 = vst.msk [vmem:[#allocation7] sm:$0x1] %vm494, %v521
        %p523 = scmp.eq.s32.totalorder %s20, 1
        // Predicated region
        $region123: #{dual_attention_forward.6} parent=109 // pred_check
          %p524 = pneg %p523
        $region124: #{dual_attention_forward.6} parent=109 // pred_check_branch
          %526 = sbr.rel (%p524) target = $region126
        $region125: #{dual_attention_forward.6} parent=109 // pred_region
          %v527 = vld [vmem:[#allocation2] sm:$0xff]
          %v528 = vld [vmem:[#allocation2 + $0x8] sm:$0xff]
          %v529 = vld [vmem:[#allocation4] sm:$0xff]
          %v530 = vld [vmem:[#allocation4 + $0x8] sm:$0xff]
          %v531 = vmax.f32 %v529, 1e-24
          %v532 = vmax.f32 %v530, 1e-24
          %v533 = vrsqrt.pop %v531
          %v534 = vmul.f32 %v533, %v531
          %v535 = vmul.f32 %v534, %v533
          %v536 = vmul.f32 0.5, %v535
          %v537 = vsub.f32 1.5, %v536
          %v538 = vmul.f32 %v533, %v537
          %vm539 = vweird.f32 %v531
          %vm540 = vweird.f32 %v533
          %vm541 = vmor %vm539, %vm540
          %v542 = vsel %vm541, %v533, %v538
          %v543 = vrsqrt.pop %v532
          %v544 = vmul.f32 %v543, %v532
          %v545 = vmul.f32 %v544, %v543
          %v546 = vmul.f32 0.5, %v545
          %v547 = vsub.f32 1.5, %v546
          %v548 = vmul.f32 %v543, %v547
          %vm549 = vweird.f32 %v532
          %vm550 = vweird.f32 %v543
          %vm551 = vmor %vm549, %vm550
          %v552 = vsel %vm551, %v543, %v548
          %v553 = vld [vmem:[#allocation7] sm:$0x1]
          %v554 = vmax.f32 %v553, 1e-24
          %v555 = vrsqrt.pop %v554
          %v556 = vmul.f32 %v555, %v554
          %v557 = vmul.f32 %v556, %v555
          %v558 = vmul.f32 0.5, %v557
          %v559 = vsub.f32 1.5, %v558
          %v560 = vmul.f32 %v555, %v559
          %vm561 = vweird.f32 %v554
          %vm562 = vweird.f32 %v555
          %vm563 = vmor %vm561, %vm562
          %v564 = vsel %vm563, %v555, %v560
          %v565 = vld [vmem:[%s2] sm:$0xff]
          %v566 = vld [vmem:[%s2 + $0x8] sm:$0xff]
          %v567 = vmul.f32 %v542, %v565
          %v568 = vmul.f32 %v552, %v566
          %570 = vset.pattern.permute.xlu0 0
          %571 = vperm.xlu0 %570, %v567
          %v572 = vpop.permute.xlu0 %571
          %575 = vset.pattern.permute.xlu0 0
          %576 = vperm.xlu0 %575, %v568
          %v577 = vpop.permute.xlu0 %576
          %v579 = vmul.f32 %v527, %v572
          %v580 = vmul.f32 %v528, %v577
          %v582 = vperm.slane %v564, 0
          %v584 = vmul.f32 %v579, %v582
          %v585 = vmul.f32 %v580, %v582
          %v586 = vld [vmem:[%s3] sm:$0xff]
          %v587 = vld [vmem:[%s3 + $0x8] sm:$0xff]
          %v588 = vadd.f32 %v584, %v586
          %v589 = vadd.f32 %v585, %v587
          %v590 = vsel %vm404, %v588, -inf
          %591 = vmax.xlane.f32.xlu0 %v590
          %v592 = vpop.xlane.xlu0 %591
          %v593 = vsel %vm404, %v589, -inf
          %594 = vmax.xlane.f32.xlu0 %v593
          %v595 = vpop.xlane.xlu0 %594
          %v596 = vsub.f32 %v588, %v592
          %v597 = vsub.f32 %v589, %v595
          %v598 = vmul.f32 %v596, 1.442695
          %v599 = vpow.pop %v598
          %v600 = vmul.f32 %v597, 1.442695
          %v601 = vpow.pop %v600
          %v602 = vsel %vm404, %v599, 0.0
          %603 = vadd.xlane.f32.xlu0 %v602
          %v604 = vpop.xlane.xlu0 %603
          %v605 = vsel %vm404, %v601, 0.0
          %606 = vadd.xlane.f32.xlu0 %v605
          %v607 = vpop.xlane.xlu0 %606
          %v608 = vrcp.pop %v604
          %v609 = vrcp.pop %v607
          %v610 = vmul.f32 %v599, %v608
          %v611 = vmul.f32 %v601, %v609
          %612 = vst.msk [vmem:[%s347] sm:$0xff] %vm404, %v610
          %613 = vst.msk [vmem:[%s347 + $0x8] sm:$0xff] %vm404, %v611
          %v614 = vld [vmem:[#allocation3] sm:$0xff]
          %v615 = vld [vmem:[#allocation3 + $0x8] sm:$0xff]
          %v616 = vld [vmem:[#allocation5] sm:$0xff]
          %v617 = vld [vmem:[#allocation5 + $0x8] sm:$0xff]
          %v618 = vmax.f32 %v616, 1e-24
          %v619 = vmax.f32 %v617, 1e-24
          %v620 = vrsqrt.pop %v618
          %v621 = vmul.f32 %v620, %v618
          %v622 = vmul.f32 %v621, %v620
          %v623 = vmul.f32 0.5, %v622
          %v624 = vsub.f32 1.5, %v623
          %v625 = vmul.f32 %v620, %v624
          %vm626 = vweird.f32 %v618
          %vm627 = vweird.f32 %v620
          %vm628 = vmor %vm626, %vm627
          %v629 = vsel %vm628, %v620, %v625
          %v630 = vrsqrt.pop %v619
          %v631 = vmul.f32 %v630, %v619
          %v632 = vmul.f32 %v631, %v630
          %v633 = vmul.f32 0.5, %v632
          %v634 = vsub.f32 1.5, %v633
          %v635 = vmul.f32 %v630, %v634
          %vm636 = vweird.f32 %v619
          %vm637 = vweird.f32 %v630
          %vm638 = vmor %vm636, %vm637
          %v639 = vsel %vm638, %v630, %v635
          %v640 = vld [vmem:[#allocation6] sm:$0x1]
          %v641 = vmax.f32 %v640, 1e-24
          %v642 = vrsqrt.pop %v641
          %v643 = vmul.f32 %v642, %v641
          %v644 = vmul.f32 %v643, %v642
          %v645 = vmul.f32 0.5, %v644
          %v646 = vsub.f32 1.5, %v645
          %v647 = vmul.f32 %v642, %v646
          %vm648 = vweird.f32 %v641
          %vm649 = vweird.f32 %v642
          %vm650 = vmor %vm648, %vm649
          %v651 = vsel %vm650, %v642, %v647
          %s652 = scalar_lea.vmem %s2, 16
          %v653 = vld [vmem:[%s652] sm:$0xff]
          %v654 = vld [vmem:[%s652 + $0x8] sm:$0xff]
          %v655 = vmul.f32 %v629, %v653
          %v656 = vmul.f32 %v639, %v654
          %658 = vset.pattern.permute.xlu0 0
          %659 = vperm.xlu0 %658, %v655
          %v660 = vpop.permute.xlu0 %659
          %663 = vset.pattern.permute.xlu0 0
          %664 = vperm.xlu0 %663, %v656
          %v665 = vpop.permute.xlu0 %664
          %v667 = vmul.f32 %v614, %v660
          %v668 = vmul.f32 %v615, %v665
          %v670 = vperm.slane %v651, 0
          %v672 = vmul.f32 %v667, %v670
          %v673 = vmul.f32 %v668, %v670
          %v674 = vld [vmem:[%s3] sm:$0xff]
          %v675 = vld [vmem:[%s3 + $0x8] sm:$0xff]
          %v676 = vadd.f32 %v672, %v674
          %v677 = vadd.f32 %v673, %v675
          %v678 = vsel %vm404, %v676, -inf
          %679 = vmax.xlane.f32.xlu0 %v678
          %v680 = vpop.xlane.xlu0 %679
          %v681 = vsel %vm404, %v677, -inf
          %682 = vmax.xlane.f32.xlu0 %v681
          %v683 = vpop.xlane.xlu0 %682
          %v684 = vsub.f32 %v676, %v680
          %v685 = vsub.f32 %v677, %v683
          %v686 = vmul.f32 %v684, 1.442695
          %v687 = vpow.pop %v686
          %v688 = vmul.f32 %v685, 1.442695
          %v689 = vpow.pop %v688
          %v690 = vsel %vm404, %v687, 0.0
          %691 = vadd.xlane.f32.xlu0 %v690
          %v692 = vpop.xlane.xlu0 %691
          %v693 = vsel %vm404, %v689, 0.0
          %694 = vadd.xlane.f32.xlu0 %v693
          %v695 = vpop.xlane.xlu0 %694
          %v696 = vrcp.pop %v692
          %v697 = vrcp.pop %v695
          %v698 = vmul.f32 %v687, %v696
          %v699 = vmul.f32 %v689, %v697
          %s700 = scalar_lea.vmem %s347, 16
          %701 = vst.msk [vmem:[%s700] sm:$0xff] %vm404, %v698
          %702 = vst.msk [vmem:[%s700 + $0x8] sm:$0xff] %vm404, %v699
        $region126: #{dual_attention_forward.6} parent=109 // pred_fallthru
          _
        %p703 = scmp.lt.s32.totalorder %s19, 1
        %s704 = scalar_select %p703, %s19, 1
        %s705 = smul.addr %s704, 4
        %s706 = smul.addr %s705, 8
        %s707 = scalar_lea.vmem %s4, %s706
        // Predicated region
        $region127: #{dual_attention_forward.6} parent=109 // pred_check
          %p708 = pneg %p143
        $region128: #{dual_attention_forward.6} parent=109 // pred_check_branch
          %710 = sbr.rel (%p708) target = $region130
        $region129: #{dual_attention_forward.6} parent=109 // pred_region
          _
        $region130: #{dual_attention_forward.6} parent=109 // pred_fallthru
          _
      $region110: #{dual_attention_forward.6} parent=5 // pred_fallthru
        _
      %p711 = scmp.le.s32.totalorder 2, %s10
      // Predicated region
      $region131: #{dual_attention_forward.6} parent=5 // pred_check
        %p712 = pneg %p711
      $region132: #{dual_attention_forward.6} parent=5 // pred_check_branch
        %714 = sbr.rel (%p712) target = $region134
      $region133: #{dual_attention_forward.6} parent=5 // pred_region
        %s715 = ssub.s32 %s10, 2
        // Predicated region
        $region135: #{dual_attention_forward.6} parent=133 // pred_check
          %p716 = pneg %p149
        $region136: #{dual_attention_forward.6} parent=133 // pred_check_branch
          %718 = sbr.rel (%p716) target = $region138
        $region137: #{dual_attention_forward.6} parent=133 // pred_region
          %p719 = scmp.lt.s32.totalorder %s21, 1
          %s720 = scalar_select %p719, %s21, 1
          %s721 = smul.addr %s720, 4
          %s722 = smul.addr %s721, 8
          %s723 = scalar_lea.vmem %s4, %s722
        $region138: #{dual_attention_forward.6} parent=133 // pred_fallthru
          _
      $region134: #{dual_attention_forward.6} parent=5 // pred_fallthru
        _
    $region6: #{dual_attention_forward.6} parent=1 // loop_footer
      %s14 = sadd.s32 1, %s10
    $region7: #{dual_attention_forward.6} parent=1 // loop_footer_branch
      %9 = sbr.rel target = $region3
    $region8: #{dual_attention_forward.6} parent=1 // loop_exit
      _

// kernel: dual_attention_forward.5
$region0: #{dual_attention_forward.5}
  #allocation0 [shape = 'u32[]', space=smem, size = 0x4, offset = 0x4, fixed_abs, tag = 'smem constant byte address 0x4 - core index']
  #allocation1 [shape = 'u32[72,128]{1,0:T(1,128)}', space=vmem, size = 0x9000, scoped, tag = 'internal scratch']
  %s0 = inlined_call_operand.vmem [shape: f32[2,16,256], index: 0, kind: input, shape index: {}]
  %s1 = inlined_call_operand.vmem [shape: bf16[48,16], index: 1, kind: input, shape index: {}]
  %s2 = inlined_call_operand.vmem [shape: f32[48,1], index: 2, kind: input, shape index: {}]
  %s3 = inlined_call_operand.vmem [shape: f32[48,9], index: 3, kind: input, shape index: {}]
  %s4 = inlined_call_operand.vmem [shape: f32[48,1], index: 4, kind: input, shape index: {}]
  %s5 = inlined_call_operand.vmem [shape: f32[9,256], index: 5, kind: input, shape index: {}]
  %s6 = inlined_call_operand.vmem [shape: bf16[2,32,256], index: 6, kind: output, shape index: {0}]
  %s7 = inlined_call_operand.vmem [shape: bf16[2,16,256], index: 7, kind: output, shape index: {1}]
  %8 = xla_tuple %s6, %s7
  %s9 = sld [smem:[#allocation0]]
  $region65: #{dual_attention_forward.5} parent=0
    _
  %s11 = ssub.s32 1, %s9
  %s12 = scalar_select 0, %s11, %s9
  loop: start=0, step=1, limit=4
  $region2: #{dual_attention_forward.5} parent=0 // loop_pre_header
    _
  $region3: #{dual_attention_forward.5} parent=0 // loop_header
    %s14 = sphi 0, %s18
    %p15 = scmp.ge.s32.totalorder %s14, 4
    %s24 = sphi 0, %s26
    %s27 = sphi 0, %s24
    %s28 = sphi 0, %s27
    %s44 = sphi 0, %s28
    %s48 = sphi 0, %s48
    %s50 = sphi 0, %s48
    %s51 = sphi 0, %s50
    %s65 = sphi 0, %s51
    %s69 = sphi 0, %s69
    %s71 = sphi 0, %s69
    %s72 = sphi 0, %s71
    %s86 = sphi 0, %s72
    %s90 = sphi 0, %s90
    %s92 = sphi 0, %s90
    %s93 = sphi 0, %s92
    %s107 = sphi 0, %s93
    %s111 = sphi 0, %s111
    %s113 = sphi 0, %s111
    %s114 = sphi 0, %s113
    %s128 = sphi 0, %s114
    %s132 = sphi 0, %s132
    %s134 = sphi 0, %s132
    %s135 = sphi 0, %s134
    %s149 = sphi 0, %s135
    %s155 = sphi 0, %s157
    %s158 = sphi 0, %s155
    %s159 = sphi 0, %s158
    %s175 = sphi 0, %s159
    %s181 = sphi 0, %s183
    %s184 = sphi 0, %s181
    %s185 = sphi 0, %s184
    %s201 = sphi 0, %s185
  $region4: #{dual_attention_forward.5} parent=0 // loop_header_branch
    %17 = sbr.rel (%p15) target = $region8
  $region5: #{dual_attention_forward.5} parent=0 // loop_body
    %s19 = ssub.s32 %s14, 1
    %s20 = ssub.s32 %s14, 2
    %s21 = sadd.s32 %s14, 1
    %s22 = ssub.s32 %s14, %s21
    %p23 = scmp.eq.s32.totalorder %s22, 0
    %s25 = sadd.s32 %s24, 1
    %s26 = scalar_select %p23, %s24, %s25
    %p29 = pneg %p23
    %p30 = scmp.eq.s32.totalorder %s14, 1
    %p31 = por %p29, %p30
    %p32 = scmp.ne.s32.totalorder %s24, %s27
    %p33 = scmp.eq.s32.totalorder %s14, 0
    %p34 = por %p32, %p33
    %p35 = scmp.ne.s32.totalorder %s24, %s27
    %p36 = scmp.eq.s32.totalorder %s19, 1
    %p37 = por %p35, %p36
    %p38 = scmp.ne.s32.totalorder %s27, %s28
    %p39 = scmp.eq.s32.totalorder %s19, 0
    %p40 = por %p38, %p39
    %p41 = scmp.ne.s32.totalorder %s27, %s28
    %p42 = scmp.eq.s32.totalorder %s20, 1
    %p43 = por %p41, %p42
    %p45 = scmp.ne.s32.totalorder %s28, %s44
    %p46 = scmp.eq.s32.totalorder %s20, 0
    %p47 = por %p45, %p46
    %s49 = sadd.s32 %s48, 1
    %p52 = scmp.eq.s32.totalorder %s14, 1
    %p53 = scmp.ne.s32.totalorder %s48, %s50
    %p54 = scmp.eq.s32.totalorder %s14, 0
    %p55 = por %p53, %p54
    %p56 = scmp.ne.s32.totalorder %s48, %s50
    %p57 = scmp.eq.s32.totalorder %s19, 1
    %p58 = por %p56, %p57
    %p59 = scmp.ne.s32.totalorder %s50, %s51
    %p60 = scmp.eq.s32.totalorder %s19, 0
    %p61 = por %p59, %p60
    %p62 = scmp.ne.s32.totalorder %s50, %s51
    %p63 = scmp.eq.s32.totalorder %s20, 1
    %p64 = por %p62, %p63
    %p66 = scmp.ne.s32.totalorder %s51, %s65
    %p67 = scmp.eq.s32.totalorder %s20, 0
    %p68 = por %p66, %p67
    %s70 = sadd.s32 %s69, 1
    %p73 = scmp.eq.s32.totalorder %s14, 1
    %p74 = scmp.ne.s32.totalorder %s69, %s71
    %p75 = scmp.eq.s32.totalorder %s14, 0
    %p76 = por %p74, %p75
    %p77 = scmp.ne.s32.totalorder %s69, %s71
    %p78 = scmp.eq.s32.totalorder %s19, 1
    %p79 = por %p77, %p78
    %p80 = scmp.ne.s32.totalorder %s71, %s72
    %p81 = scmp.eq.s32.totalorder %s19, 0
    %p82 = por %p80, %p81
    %p83 = scmp.ne.s32.totalorder %s71, %s72
    %p84 = scmp.eq.s32.totalorder %s20, 1
    %p85 = por %p83, %p84
    %p87 = scmp.ne.s32.totalorder %s72, %s86
    %p88 = scmp.eq.s32.totalorder %s20, 0
    %p89 = por %p87, %p88
    %s91 = sadd.s32 %s90, 1
    %p94 = scmp.eq.s32.totalorder %s14, 1
    %p95 = scmp.ne.s32.totalorder %s90, %s92
    %p96 = scmp.eq.s32.totalorder %s14, 0
    %p97 = por %p95, %p96
    %p98 = scmp.ne.s32.totalorder %s90, %s92
    %p99 = scmp.eq.s32.totalorder %s19, 1
    %p100 = por %p98, %p99
    %p101 = scmp.ne.s32.totalorder %s92, %s93
    %p102 = scmp.eq.s32.totalorder %s19, 0
    %p103 = por %p101, %p102
    %p104 = scmp.ne.s32.totalorder %s92, %s93
    %p105 = scmp.eq.s32.totalorder %s20, 1
    %p106 = por %p104, %p105
    %p108 = scmp.ne.s32.totalorder %s93, %s107
    %p109 = scmp.eq.s32.totalorder %s20, 0
    %p110 = por %p108, %p109
    %s112 = sadd.s32 %s111, 1
    %p115 = scmp.eq.s32.totalorder %s14, 1
    %p116 = scmp.ne.s32.totalorder %s111, %s113
    %p117 = scmp.eq.s32.totalorder %s14, 0
    %p118 = por %p116, %p117
    %p119 = scmp.ne.s32.totalorder %s111, %s113
    %p120 = scmp.eq.s32.totalorder %s19, 1
    %p121 = por %p119, %p120
    %p122 = scmp.ne.s32.totalorder %s113, %s114
    %p123 = scmp.eq.s32.totalorder %s19, 0
    %p124 = por %p122, %p123
    %p125 = scmp.ne.s32.totalorder %s113, %s114
    %p126 = scmp.eq.s32.totalorder %s20, 1
    %p127 = por %p125, %p126
    %p129 = scmp.ne.s32.totalorder %s114, %s128
    %p130 = scmp.eq.s32.totalorder %s20, 0
    %p131 = por %p129, %p130
    %s133 = sadd.s32 %s132, 1
    %p136 = scmp.eq.s32.totalorder %s14, 1
    %p137 = scmp.ne.s32.totalorder %s132, %s134
    %p138 = scmp.eq.s32.totalorder %s14, 0
    %p139 = por %p137, %p138
    %p140 = scmp.ne.s32.totalorder %s132, %s134
    %p141 = scmp.eq.s32.totalorder %s19, 1
    %p142 = por %p140, %p141
    %p143 = scmp.ne.s32.totalorder %s134, %s135
    %p144 = scmp.eq.s32.totalorder %s19, 0
    %p145 = por %p143, %p144
    %p146 = scmp.ne.s32.totalorder %s134, %s135
    %p147 = scmp.eq.s32.totalorder %s20, 1
    %p148 = por %p146, %p147
    %p150 = scmp.ne.s32.totalorder %s135, %s149
    %p151 = scmp.eq.s32.totalorder %s20, 0
    %p152 = por %p150, %p151
    %s153 = ssub.s32 %s14, %s21
    %p154 = scmp.eq.s32.totalorder %s153, 0
    %s156 = sadd.s32 %s155, 1
    %s157 = scalar_select %p154, %s155, %s156
    %p160 = pneg %p154
    %p161 = scmp.eq.s32.totalorder %s14, 1
    %p162 = por %p160, %p161
    %p163 = scmp.ne.s32.totalorder %s155, %s158
    %p164 = scmp.eq.s32.totalorder %s14, 0
    %p165 = por %p163, %p164
    %p166 = scmp.ne.s32.totalorder %s155, %s158
    %p167 = scmp.eq.s32.totalorder %s19, 1
    %p168 = por %p166, %p167
    %p169 = scmp.ne.s32.totalorder %s158, %s159
    %p170 = scmp.eq.s32.totalorder %s19, 0
    %p171 = por %p169, %p170
    %p172 = scmp.ne.s32.totalorder %s158, %s159
    %p173 = scmp.eq.s32.totalorder %s20, 1
    %p174 = por %p172, %p173
    %p176 = scmp.ne.s32.totalorder %s159, %s175
    %p177 = scmp.eq.s32.totalorder %s20, 0
    %p178 = por %p176, %p177
    %s179 = ssub.s32 %s14, %s21
    %p180 = scmp.eq.s32.totalorder %s179, 0
    %s182 = sadd.s32 %s181, 1
    %s183 = scalar_select %p180, %s181, %s182
    %p186 = pneg %p180
    %p187 = scmp.eq.s32.totalorder %s14, 1
    %p188 = por %p186, %p187
    %p189 = scmp.ne.s32.totalorder %s181, %s184
    %p190 = scmp.eq.s32.totalorder %s14, 0
    %p191 = por %p189, %p190
    %p192 = scmp.ne.s32.totalorder %s181, %s184
    %p193 = scmp.eq.s32.totalorder %s19, 1
    %p194 = por %p192, %p193
    %p195 = scmp.ne.s32.totalorder %s184, %s185
    %p196 = scmp.eq.s32.totalorder %s19, 0
    %p197 = por %p195, %p196
    %p198 = scmp.ne.s32.totalorder %s184, %s185
    %p199 = scmp.eq.s32.totalorder %s20, 1
    %p200 = por %p198, %p199
    %p202 = scmp.ne.s32.totalorder %s185, %s201
    %p203 = scmp.eq.s32.totalorder %s20, 0
    %p204 = por %p202, %p203
    %p205 = scmp.le.s32.totalorder 1, %s14
    %p206 = scmp.lt.s32.totalorder %s14, 3
    %p207 = pnand %p205, %p206
    %p208 = pneg %p207
    // Predicated region
    $region9: #{dual_attention_forward.5} parent=5 // pred_check
      _
    $region10: #{dual_attention_forward.5} parent=5 // pred_check_branch
      %210 = sbr.rel (%p207) target = $region12
    $region11: #{dual_attention_forward.5} parent=5 // pred_region
      %s211 = ssub.s32 %s14, 1
      // Predicated region
      $region13: #{dual_attention_forward.5} parent=11 // pred_check
        %p212 = pneg %p61
      $region14: #{dual_attention_forward.5} parent=11 // pred_check_branch
        %214 = sbr.rel (%p212) target = $region16
      $region15: #{dual_attention_forward.5} parent=11 // pred_region
        _
      $region16: #{dual_attention_forward.5} parent=11 // pred_fallthru
        _
      // Predicated region
      $region17: #{dual_attention_forward.5} parent=11 // pred_check
        %p215 = pneg %p82
      $region18: #{dual_attention_forward.5} parent=11 // pred_check_branch
        %217 = sbr.rel (%p215) target = $region20
      $region19: #{dual_attention_forward.5} parent=11 // pred_region
        _
      $region20: #{dual_attention_forward.5} parent=11 // pred_fallthru
        _
      // Predicated region
      $region21: #{dual_attention_forward.5} parent=11 // pred_check
        %p218 = pneg %p103
      $region22: #{dual_attention_forward.5} parent=11 // pred_check_branch
        %220 = sbr.rel (%p218) target = $region24
      $region23: #{dual_attention_forward.5} parent=11 // pred_region
        _
      $region24: #{dual_attention_forward.5} parent=11 // pred_fallthru
        _
      // Predicated region
      $region25: #{dual_attention_forward.5} parent=11 // pred_check
        %p221 = pneg %p124
      $region26: #{dual_attention_forward.5} parent=11 // pred_check_branch
        %223 = sbr.rel (%p221) target = $region28
      $region27: #{dual_attention_forward.5} parent=11 // pred_region
        _
      $region28: #{dual_attention_forward.5} parent=11 // pred_fallthru
        _
      // Predicated region
      $region29: #{dual_attention_forward.5} parent=11 // pred_check
        %p224 = pneg %p145
      $region30: #{dual_attention_forward.5} parent=11 // pred_check_branch
        %226 = sbr.rel (%p224) target = $region32
      $region31: #{dual_attention_forward.5} parent=11 // pred_region
        _
      $region32: #{dual_attention_forward.5} parent=11 // pred_fallthru
        _
    $region12: #{dual_attention_forward.5} parent=5 // pred_fallthru
      _
    %p227 = scmp.lt.s32.totalorder %s14, 2
    // Predicated region
    $region33: #{dual_attention_forward.5} parent=5 // pred_check
      %p228 = pneg %p227
    $region34: #{dual_attention_forward.5} parent=5 // pred_check_branch
      %230 = sbr.rel (%p228) target = $region36
    $region35: #{dual_attention_forward.5} parent=5 // pred_region
      // Predicated region
      $region37: #{dual_attention_forward.5} parent=35 // pred_check
        %p231 = pneg %p34
      $region38: #{dual_attention_forward.5} parent=35 // pred_check_branch
        %233 = sbr.rel (%p231) target = $region40
      $region39: #{dual_attention_forward.5} parent=35 // pred_region
        %p234 = scmp.lt.s32.totalorder %s14, 1
        %s235 = scalar_select %p234, %s14, 1
        %s236 = smul.addr %s235, 4
        %s237 = smul.addr %s236, 8
        %s238 = scalar_lea.vmem %s0, %s237
      $region40: #{dual_attention_forward.5} parent=35 // pred_fallthru
        _
    $region36: #{dual_attention_forward.5} parent=5 // pred_fallthru
      _
    %p239 = scmp.le.s32.totalorder 1, %s14
    %p240 = scmp.lt.s32.totalorder %s14, 3
    %p241 = pnand %p239, %p240
    %p242 = pneg %p241
    // Predicated region
    $region41: #{dual_attention_forward.5} parent=5 // pred_check
      _
    $region42: #{dual_attention_forward.5} parent=5 // pred_check_branch
      %244 = sbr.rel (%p241) target = $region44
    $region43: #{dual_attention_forward.5} parent=5 // pred_region
      %s245 = ssub.s32 %s14, 1
      %p246 = scmp.lt.s32.totalorder %s19, 1
      %s247 = scalar_select %p246, %s19, 1
      %s248 = smul.addr %s247, 4
      %s249 = smul.addr %s248, 8
      %s250 = scalar_lea.vmem %s0, %s249
      %p251 = pneg %p40
      %p252 = pneg %p37
      %p253 = pneg %p61
      %p254 = pneg %p58
      %p255 = pneg %p82
      %p256 = pneg %p79
      %p257 = pneg %p103
      %p258 = pneg %p100
      %p259 = pneg %p124
      %p260 = pneg %p121
      %p261 = pneg %p145
      %p262 = pneg %p142
      %p263 = pneg %p171
      %p264 = pneg %p168
      %p265 = scmp.lt.s32.totalorder %s19, 1
      %s266 = scalar_select %p265, %s19, 1
      %s267 = smul.addr %s266, 8
      %s268 = smul.addr %s267, 4
      %s269 = scalar_lea.vmem %s6, %s268
      %p270 = pneg %p197
      %p271 = pneg %p194
      %p272 = scmp.lt.s32.totalorder %s19, 1
      %s273 = scalar_select %p272, %s19, 1
      %s274 = smul.addr %s273, 4
      %s275 = smul.addr %s274, 4
      %s276 = scalar_lea.vmem %s7, %s275
      %p277 = scmp.lt.s32.totalorder %s19, 1
      %s278 = scalar_select %p277, %s19, 1
      %s279 = smul.addr %s278, 4
      %s280 = smul.addr %s279, 8
      %s281 = scalar_lea.vmem %s0, %s280
      %p282 = scmp.lt.s32.totalorder %s19, 1
      %s283 = scalar_select %p282, %s19, 1
      %s284 = smul.addr %s283, 8
      %s285 = smul.addr %s284, 4
      %s286 = scalar_lea.vmem %s6, %s285
      %p287 = scmp.lt.s32.totalorder %s19, 1
      %s288 = scalar_select %p287, %s19, 1
      %s289 = smul.addr %s288, 4
      %s290 = smul.addr %s289, 4
      %s291 = scalar_lea.vmem %s7, %s290
      %v293 = vld [vmem:[%s1] sm:$0xf]
      %v294 = vld [vmem:[%s1 + $0x4] sm:$0xf]
      %v295 = vld [vmem:[%s1 + $0x8] sm:$0xf]
      %v296 = vld [vmem:[%s1 + $0xc] sm:$0xf]
      %v297 = vld [vmem:[%s1 + $0x10] sm:$0xf]
      %v298 = vld [vmem:[%s1 + $0x14] sm:$0xf]
      %v299 = vld [vmem:[%s281] sm:$0xff]
      %v300 = vld [vmem:[%s281 + $0x8] sm:$0xff]
      %v301 = vld [vmem:[%s281 + $0x10] sm:$0xff]
      %v302 = vld [vmem:[%s281 + $0x18] sm:$0xff]
      %v303 = vpack.c.bf16 %v301, %v299
      %v304 = vpack.c.bf16 %v302, %v300
      %v305 = vld [vmem:[%s2] sm:$0xff]
      %v306 = vld [vmem:[%s2 + $0x8] sm:$0xff]
      %v307 = vld [vmem:[%s2 + $0x10] sm:$0xff]
      %v308 = vld [vmem:[%s2 + $0x18] sm:$0xff]
      %v309 = vld [vmem:[%s2 + $0x20] sm:$0xff]
      %v310 = vld [vmem:[%s2 + $0x28] sm:$0xff]
      %312 = vset.pattern.permute.xlu0 0
      %313 = vperm.xlu0 %312, %v305
      %v314 = vpop.permute.xlu0 %313
      %317 = vset.pattern.permute.xlu0 0
      %318 = vperm.xlu0 %317, %v306
      %v319 = vpop.permute.xlu0 %318
      %322 = vset.pattern.permute.xlu0 0
      %323 = vperm.xlu0 %322, %v307
      %v324 = vpop.permute.xlu0 %323
      %327 = vset.pattern.permute.xlu0 0
      %328 = vperm.xlu0 %327, %v308
      %v329 = vpop.permute.xlu0 %328
      %332 = vset.pattern.permute.xlu0 0
      %333 = vperm.xlu0 %332, %v309
      %v334 = vpop.permute.xlu0 %333
      %337 = vset.pattern.permute.xlu0 0
      %338 = vperm.xlu0 %337, %v310
      %v339 = vpop.permute.xlu0 %338
      %v347 = vunpack.c.l.b16 %v293
      %v348 = vunpack.c.l.b16 %v294
      %v349 = vunpack.c.l.b16 %v295
      %v350 = vunpack.c.l.b16 %v296
      %v351 = vunpack.c.l.b16 %v297
      %v352 = vunpack.c.l.b16 %v298
      %v353 = vpack.c.b16 %v348, %v347
      %v354 = vpack.c.b16 %v350, %v349
      %v355 = vpack.c.b16 %v352, %v351
      %vm356 = vcmask 130048
      %v358 = vsel %vm356, %v353, 0
      %v361 = vsel %vm356, %v354, 0
      %v364 = vsel %vm356, %v355, 0
      %366 = vmatpush.bf16.msra.mxu0 0
      %367 = vmatpush.bf16.msra.mxu0 0
      %368 = vmatpush.bf16.msra.mxu0 0
      %369 = vmatpush.bf16.msra.mxu0 0
      %370 = vmatpush.bf16.msra.mxu0 0
      %371 = vmatpush.bf16.msra.mxu0 0
      %372 = vmatpush.bf16.msra.mxu0 0
      %373 = vmatpush.bf16.msra.mxu0 %v303
      %374 = vmatmul.bf16.gmra.mxu0 %v358
      %v375 = vpop.f32.mrf.mxu0
      %v376 = vadd.f32 %v314, %v375
      %v377 = vpop.f32.mrf.mxu0
      %v378 = vadd.f32 %v319, %v377
      %379 = vmatmul.bf16.gmra.mxu0 %v361
      %v380 = vpop.f32.mrf.mxu0
      %v381 = vadd.f32 %v324, %v380
      %v382 = vpop.f32.mrf.mxu0
      %v383 = vadd.f32 %v329, %v382
      %384 = vmatmul.bf16.gmra.mxu0 %v364
      %v385 = vpop.f32.mrf.mxu0
      %v386 = vadd.f32 %v334, %v385
      %v387 = vpop.f32.mrf.mxu0
      %v388 = vadd.f32 %v339, %v387
      %389 = vdwg.mxu0
      %390 = vmatpush.bf16.msra.mxu0 0
      %391 = vmatpush.bf16.msra.mxu0 0
      %392 = vmatpush.bf16.msra.mxu0 0
      %393 = vmatpush.bf16.msra.mxu0 0
      %394 = vmatpush.bf16.msra.mxu0 0
      %395 = vmatpush.bf16.msra.mxu0 0
      %396 = vmatpush.bf16.msra.mxu0 0
      %397 = vmatpush.bf16.msra.mxu0 %v304
      %398 = vmatmul.bf16.gmra.mxu0 %v358
      %v399 = vpop.f32.mrf.mxu0
      %v400 = vadd.f32 %v314, %v399
      %v401 = vpop.f32.mrf.mxu0
      %v402 = vadd.f32 %v319, %v401
      %403 = vmatmul.bf16.gmra.mxu0 %v361
      %v404 = vpop.f32.mrf.mxu0
      %v405 = vadd.f32 %v324, %v404
      %v406 = vpop.f32.mrf.mxu0
      %v407 = vadd.f32 %v329, %v406
      %408 = vmatmul.bf16.gmra.mxu0 %v364
      %v409 = vpop.f32.mrf.mxu0
      %v410 = vadd.f32 %v334, %v409
      %v411 = vpop.f32.mrf.mxu0
      %v412 = vadd.f32 %v339, %v411
      %413 = vdwg.mxu0
      %v414 = vld [vmem:[%s3] sm:$0xff]
      %v415 = vld [vmem:[%s3 + $0x8] sm:$0xff]
      %v416 = vld [vmem:[%s3 + $0x10] sm:$0xff]
      %v417 = vld [vmem:[%s3 + $0x18] sm:$0xff]
      %v418 = vld [vmem:[%s3 + $0x20] sm:$0xff]
      %v419 = vld [vmem:[%s3 + $0x28] sm:$0xff]
      %420 = vrot.lane.b32.xlu0 %v376, 17
      %v421 = vpop.permute.xlu0 %420
      %422 = vrot.lane.b32.xlu0 %v378, 17
      %v423 = vpop.permute.xlu0 %422
      %424 = vrot.lane.b32.xlu0 %v381, 17
      %v425 = vpop.permute.xlu0 %424
      %426 = vrot.lane.b32.xlu0 %v383, 17
      %v427 = vpop.permute.xlu0 %426
      %428 = vrot.lane.b32.xlu0 %v386, 17
      %v429 = vpop.permute.xlu0 %428
      %430 = vrot.lane.b32.xlu0 %v388, 17
      %v431 = vpop.permute.xlu0 %430
      %432 = vrot.lane.b32.xlu0 %v400, 17
      %v433 = vpop.permute.xlu0 %432
      %434 = vrot.lane.b32.xlu0 %v402, 17
      %v435 = vpop.permute.xlu0 %434
      %436 = vrot.lane.b32.xlu0 %v405, 17
      %v437 = vpop.permute.xlu0 %436
      %438 = vrot.lane.b32.xlu0 %v407, 17
      %v439 = vpop.permute.xlu0 %438
      %440 = vrot.lane.b32.xlu0 %v410, 17
      %v441 = vpop.permute.xlu0 %440
      %442 = vrot.lane.b32.xlu0 %v412, 17
      %v443 = vpop.permute.xlu0 %442
      %v444 = vlaneseq
      %v445 = vand.u32 %v444, 127
      %vm446 = vcmp.lt.s32.totalorder %v445, 17
      %v447 = vsel %vm446, %v421, %v433
      %v448 = vsel %vm446, %v423, %v435
      %v449 = vsel %vm446, %v425, %v437
      %v450 = vsel %vm446, %v427, %v439
      %v451 = vsel %vm446, %v429, %v441
      %v452 = vsel %vm446, %v431, %v443
      %v453 = vsel %vm446, %v433, %v421
      %v454 = vsel %vm446, %v435, %v423
      %v455 = vsel %vm446, %v437, %v425
      %v456 = vsel %vm446, %v439, %v427
      %v457 = vsel %vm446, %v441, %v429
      %v458 = vsel %vm446, %v443, %v431
      %v459 = vld [vmem:[%s5] ss:$8 sm:$0x3]
      %v461 = vperm.slane %v459, 0
      %v462 = vperm.slane %v459, 1
      %v465 = vmul.f32 %v453, %v461
      %v466 = vmul.f32 %v447, %v462
      %v467 = vmul.f32 %v454, %v461
      %v468 = vmul.f32 %v448, %v462
      %v469 = vmul.f32 %v455, %v461
      %v470 = vmul.f32 %v449, %v462
      %v471 = vmul.f32 %v456, %v461
      %v472 = vmul.f32 %v450, %v462
      %v473 = vmul.f32 %v457, %v461
      %v474 = vmul.f32 %v451, %v462
      %v475 = vmul.f32 %v458, %v461
      %v476 = vmul.f32 %v452, %v462
      %478 = vset.pattern.permute.xlu0 0
      %479 = vperm.xlu0 %478, %v414
      %v480 = vpop.permute.xlu0 %479
      %483 = vset.pattern.permute.xlu0 0
      %484 = vperm.xlu0 %483, %v415
      %v485 = vpop.permute.xlu0 %484
      %488 = vset.pattern.permute.xlu0 0
      %489 = vperm.xlu0 %488, %v416
      %v490 = vpop.permute.xlu0 %489
      %493 = vset.pattern.permute.xlu0 0
      %494 = vperm.xlu0 %493, %v417
      %v495 = vpop.permute.xlu0 %494
      %498 = vset.pattern.permute.xlu0 0
      %499 = vperm.xlu0 %498, %v418
      %v500 = vpop.permute.xlu0 %499
      %503 = vset.pattern.permute.xlu0 0
      %504 = vperm.xlu0 %503, %v419
      %v505 = vpop.permute.xlu0 %504
      %v507 = vmul.f32 %v480, %v465
      %v508 = vmul.f32 %v480, %v466
      %v509 = vmul.f32 %v485, %v467
      %v510 = vmul.f32 %v485, %v468
      %v511 = vmul.f32 %v490, %v469
      %v512 = vmul.f32 %v490, %v470
      %v513 = vmul.f32 %v495, %v471
      %v514 = vmul.f32 %v495, %v472
      %v515 = vmul.f32 %v500, %v473
      %v516 = vmul.f32 %v500, %v474
      %v517 = vmul.f32 %v505, %v475
      %v518 = vmul.f32 %v505, %v476
      %v519 = vadd.f32 %v507, 0.0
      %v520 = vadd.f32 %v508, 0.0
      %v521 = vadd.f32 %v509, 0.0
      %v522 = vadd.f32 %v510, 0.0
      %v523 = vadd.f32 %v511, 0.0
      %v524 = vadd.f32 %v512, 0.0
      %v525 = vadd.f32 %v513, 0.0
      %v526 = vadd.f32 %v514, 0.0
      %v527 = vadd.f32 %v515, 0.0
      %v528 = vadd.f32 %v516, 0.0
      %v529 = vadd.f32 %v517, 0.0
      %v530 = vadd.f32 %v518, 0.0
      %531 = vrot.lane.b32.xlu0 %v376, 16
      %v532 = vpop.permute.xlu0 %531
      %533 = vrot.lane.b32.xlu0 %v378, 16
      %v534 = vpop.permute.xlu0 %533
      %535 = vrot.lane.b32.xlu0 %v381, 16
      %v536 = vpop.permute.xlu0 %535
      %537 = vrot.lane.b32.xlu0 %v383, 16
      %v538 = vpop.permute.xlu0 %537
      %539 = vrot.lane.b32.xlu0 %v386, 16
      %v540 = vpop.permute.xlu0 %539
      %541 = vrot.lane.b32.xlu0 %v388, 16
      %v542 = vpop.permute.xlu0 %541
      %543 = vrot.lane.b32.xlu0 %v400, 16
      %v544 = vpop.permute.xlu0 %543
      %545 = vrot.lane.b32.xlu0 %v402, 16
      %v546 = vpop.permute.xlu0 %545
      %547 = vrot.lane.b32.xlu0 %v405, 16
      %v548 = vpop.permute.xlu0 %547
      %549 = vrot.lane.b32.xlu0 %v407, 16
      %v550 = vpop.permute.xlu0 %549
      %551 = vrot.lane.b32.xlu0 %v410, 16
      %v552 = vpop.permute.xlu0 %551
      %553 = vrot.lane.b32.xlu0 %v412, 16
      %v554 = vpop.permute.xlu0 %553
      %vm555 = vcmp.lt.s32.totalorder %v445, 16
      %v556 = vsel %vm555, %v532, %v544
      %v557 = vsel %vm555, %v534, %v546
      %v558 = vsel %vm555, %v536, %v548
      %v559 = vsel %vm555, %v538, %v550
      %v560 = vsel %vm555, %v540, %v552
      %v561 = vsel %vm555, %v542, %v554
      %v562 = vsel %vm555, %v544, %v532
      %v563 = vsel %vm555, %v546, %v534
      %v564 = vsel %vm555, %v548, %v536
      %v565 = vsel %vm555, %v550, %v538
      %v566 = vsel %vm555, %v552, %v540
      %v567 = vsel %vm555, %v554, %v542
      %s568 = scalar_lea.vmem %s5, 1
      %v569 = vld [vmem:[%s568] ss:$8 sm:$0x3]
      %v571 = vperm.slane %v569, 0
      %v572 = vperm.slane %v569, 1
      %v575 = vmul.f32 %v562, %v571
      %v576 = vmul.f32 %v556, %v572
      %v577 = vmul.f32 %v563, %v571
      %v578 = vmul.f32 %v557, %v572
      %v579 = vmul.f32 %v564, %v571
      %v580 = vmul.f32 %v558, %v572
      %v581 = vmul.f32 %v565, %v571
      %v582 = vmul.f32 %v559, %v572
      %v583 = vmul.f32 %v566, %v571
      %v584 = vmul.f32 %v560, %v572
      %v585 = vmul.f32 %v567, %v571
      %v586 = vmul.f32 %v561, %v572
      %587 = vset.pattern.permute.xlu0 1
      %588 = vperm.xlu0 %587, %v414
      %v589 = vpop.permute.xlu0 %588
      %591 = vset.pattern.permute.xlu0 1
      %592 = vperm.xlu0 %591, %v415
      %v593 = vpop.permute.xlu0 %592
      %595 = vset.pattern.permute.xlu0 1
      %596 = vperm.xlu0 %595, %v416
      %v597 = vpop.permute.xlu0 %596
      %599 = vset.pattern.permute.xlu0 1
      %600 = vperm.xlu0 %599, %v417
      %v601 = vpop.permute.xlu0 %600
      %603 = vset.pattern.permute.xlu0 1
      %604 = vperm.xlu0 %603, %v418
      %v605 = vpop.permute.xlu0 %604
      %607 = vset.pattern.permute.xlu0 1
      %608 = vperm.xlu0 %607, %v419
      %v609 = vpop.permute.xlu0 %608
      %v611 = vmul.f32 %v589, %v575
      %v612 = vmul.f32 %v589, %v576
      %v613 = vmul.f32 %v593, %v577
      %v614 = vmul.f32 %v593, %v578
      %v615 = vmul.f32 %v597, %v579
      %v616 = vmul.f32 %v597, %v580
      %v617 = vmul.f32 %v601, %v581
      %v618 = vmul.f32 %v601, %v582
      %v619 = vmul.f32 %v605, %v583
      %v620 = vmul.f32 %v605, %v584
      %v621 = vmul.f32 %v609, %v585
      %v622 = vmul.f32 %v609, %v586
      %v623 = vadd.f32 %v519, %v611
      %v624 = vadd.f32 %v520, %v612
      %v625 = vadd.f32 %v521, %v613
      %v626 = vadd.f32 %v522, %v614
      %v627 = vadd.f32 %v523, %v615
      %v628 = vadd.f32 %v524, %v616
      %v629 = vadd.f32 %v525, %v617
      %v630 = vadd.f32 %v526, %v618
      %v631 = vadd.f32 %v527, %v619
      %v632 = vadd.f32 %v528, %v620
      %v633 = vadd.f32 %v529, %v621
      %v634 = vadd.f32 %v530, %v622
      %635 = vrot.lane.b32.xlu0 %v376, 15
      %v636 = vpop.permute.xlu0 %635
      %637 = vrot.lane.b32.xlu0 %v378, 15
      %v638 = vpop.permute.xlu0 %637
      %639 = vrot.lane.b32.xlu0 %v381, 15
      %v640 = vpop.permute.xlu0 %639
      %641 = vrot.lane.b32.xlu0 %v383, 15
      %v642 = vpop.permute.xlu0 %641
      %643 = vrot.lane.b32.xlu0 %v386, 15
      %v644 = vpop.permute.xlu0 %643
      %645 = vrot.lane.b32.xlu0 %v388, 15
      %v646 = vpop.permute.xlu0 %645
      %647 = vrot.lane.b32.xlu0 %v400, 15
      %v648 = vpop.permute.xlu0 %647
      %649 = vrot.lane.b32.xlu0 %v402, 15
      %v650 = vpop.permute.xlu0 %649
      %651 = vrot.lane.b32.xlu0 %v405, 15
      %v652 = vpop.permute.xlu0 %651
      %653 = vrot.lane.b32.xlu0 %v407, 15
      %v654 = vpop.permute.xlu0 %653
      %655 = vrot.lane.b32.xlu0 %v410, 15
      %v656 = vpop.permute.xlu0 %655
      %657 = vrot.lane.b32.xlu0 %v412, 15
      %v658 = vpop.permute.xlu0 %657
      %vm659 = vcmp.lt.s32.totalorder %v445, 15
      %v660 = vsel %vm659, %v636, %v648
      %v661 = vsel %vm659, %v638, %v650
      %v662 = vsel %vm659, %v640, %v652
      %v663 = vsel %vm659, %v642, %v654
      %v664 = vsel %vm659, %v644, %v656
      %v665 = vsel %vm659, %v646, %v658
      %v666 = vsel %vm659, %v648, %v636
      %v667 = vsel %vm659, %v650, %v638
      %v668 = vsel %vm659, %v652, %v640
      %v669 = vsel %vm659, %v654, %v642
      %v670 = vsel %vm659, %v656, %v644
      %v671 = vsel %vm659, %v658, %v646
      %s672 = scalar_lea.vmem %s5, 2
      %v673 = vld [vmem:[%s672] ss:$8 sm:$0x3]
      %v675 = vperm.slane %v673, 0
      %v676 = vperm.slane %v673, 1
      %v679 = vmul.f32 %v666, %v675
      %v680 = vmul.f32 %v660, %v676
      %v681 = vmul.f32 %v667, %v675
      %v682 = vmul.f32 %v661, %v676
      %v683 = vmul.f32 %v668, %v675
      %v684 = vmul.f32 %v662, %v676
      %v685 = vmul.f32 %v669, %v675
      %v686 = vmul.f32 %v663, %v676
      %v687 = vmul.f32 %v670, %v675
      %v688 = vmul.f32 %v664, %v676
      %v689 = vmul.f32 %v671, %v675
      %v690 = vmul.f32 %v665, %v676
      %691 = vset.pattern.permute.xlu0 2
      %692 = vperm.xlu0 %691, %v414
      %v693 = vpop.permute.xlu0 %692
      %695 = vset.pattern.permute.xlu0 2
      %696 = vperm.xlu0 %695, %v415
      %v697 = vpop.permute.xlu0 %696
      %699 = vset.pattern.permute.xlu0 2
      %700 = vperm.xlu0 %699, %v416
      %v701 = vpop.permute.xlu0 %700
      %703 = vset.pattern.permute.xlu0 2
      %704 = vperm.xlu0 %703, %v417
      %v705 = vpop.permute.xlu0 %704
      %707 = vset.pattern.permute.xlu0 2
      %708 = vperm.xlu0 %707, %v418
      %v709 = vpop.permute.xlu0 %708
      %711 = vset.pattern.permute.xlu0 2
      %712 = vperm.xlu0 %711, %v419
      %v713 = vpop.permute.xlu0 %712
      %v715 = vmul.f32 %v693, %v679
      %v716 = vmul.f32 %v693, %v680
      %v717 = vmul.f32 %v697, %v681
      %v718 = vmul.f32 %v697, %v682
      %v719 = vmul.f32 %v701, %v683
      %v720 = vmul.f32 %v701, %v684
      %v721 = vmul.f32 %v705, %v685
      %v722 = vmul.f32 %v705, %v686
      %v723 = vmul.f32 %v709, %v687
      %v724 = vmul.f32 %v709, %v688
      %v725 = vmul.f32 %v713, %v689
      %v726 = vmul.f32 %v713, %v690
      %v727 = vadd.f32 %v623, %v715
      %v728 = vadd.f32 %v624, %v716
      %v729 = vadd.f32 %v625, %v717
      %v730 = vadd.f32 %v626, %v718
      %v731 = vadd.f32 %v627, %v719
      %v732 = vadd.f32 %v628, %v720
      %v733 = vadd.f32 %v629, %v721
      %v734 = vadd.f32 %v630, %v722
      %v735 = vadd.f32 %v631, %v723
      %v736 = vadd.f32 %v632, %v724
      %v737 = vadd.f32 %v633, %v725
      %v738 = vadd.f32 %v634, %v726
      %739 = vrot.lane.b32.xlu0 %v376, 1
      %v740 = vpop.permute.xlu0 %739
      %741 = vrot.lane.b32.xlu0 %v378, 1
      %v742 = vpop.permute.xlu0 %741
      %743 = vrot.lane.b32.xlu0 %v381, 1
      %v744 = vpop.permute.xlu0 %743
      %745 = vrot.lane.b32.xlu0 %v383, 1
      %v746 = vpop.permute.xlu0 %745
      %747 = vrot.lane.b32.xlu0 %v386, 1
      %v748 = vpop.permute.xlu0 %747
      %749 = vrot.lane.b32.xlu0 %v388, 1
      %v750 = vpop.permute.xlu0 %749
      %751 = vrot.lane.b32.xlu0 %v400, 1
      %v752 = vpop.permute.xlu0 %751
      %753 = vrot.lane.b32.xlu0 %v402, 1
      %v754 = vpop.permute.xlu0 %753
      %755 = vrot.lane.b32.xlu0 %v405, 1
      %v756 = vpop.permute.xlu0 %755
      %757 = vrot.lane.b32.xlu0 %v407, 1
      %v758 = vpop.permute.xlu0 %757
      %759 = vrot.lane.b32.xlu0 %v410, 1
      %v760 = vpop.permute.xlu0 %759
      %761 = vrot.lane.b32.xlu0 %v412, 1
      %v762 = vpop.permute.xlu0 %761
      %vm763 = vcmp.lt.s32.totalorder %v445, 1
      %v764 = vsel %vm763, %v740, %v752
      %v765 = vsel %vm763, %v742, %v754
      %v766 = vsel %vm763, %v744, %v756
      %v767 = vsel %vm763, %v746, %v758
      %v768 = vsel %vm763, %v748, %v760
      %v769 = vsel %vm763, %v750, %v762
      %v770 = vsel %vm763, %v752, %v740
      %v771 = vsel %vm763, %v754, %v742
      %v772 = vsel %vm763, %v756, %v744
      %v773 = vsel %vm763, %v758, %v746
      %v774 = vsel %vm763, %v760, %v748
      %v775 = vsel %vm763, %v762, %v750
      %s776 = scalar_lea.vmem %s5, 3
      %v777 = vld [vmem:[%s776] ss:$8 sm:$0x3]
      %v779 = vperm.slane %v777, 0
      %v780 = vperm.slane %v777, 1
      %v783 = vmul.f32 %v770, %v779
      %v784 = vmul.f32 %v764, %v780
      %v785 = vmul.f32 %v771, %v779
      %v786 = vmul.f32 %v765, %v780
      %v787 = vmul.f32 %v772, %v779
      %v788 = vmul.f32 %v766, %v780
      %v789 = vmul.f32 %v773, %v779
      %v790 = vmul.f32 %v767, %v780
      %v791 = vmul.f32 %v774, %v779
      %v792 = vmul.f32 %v768, %v780
      %v793 = vmul.f32 %v775, %v779
      %v794 = vmul.f32 %v769, %v780
      %795 = vset.pattern.permute.xlu0 3
      %796 = vperm.xlu0 %795, %v414
      %v797 = vpop.permute.xlu0 %796
      %799 = vset.pattern.permute.xlu0 3
      %800 = vperm.xlu0 %799, %v415
      %v801 = vpop.permute.xlu0 %800
      %803 = vset.pattern.permute.xlu0 3
      %804 = vperm.xlu0 %803, %v416
      %v805 = vpop.permute.xlu0 %804
      %807 = vset.pattern.permute.xlu0 3
      %808 = vperm.xlu0 %807, %v417
      %v809 = vpop.permute.xlu0 %808
      %811 = vset.pattern.permute.xlu0 3
      %812 = vperm.xlu0 %811, %v418
      %v813 = vpop.permute.xlu0 %812
      %815 = vset.pattern.permute.xlu0 3
      %816 = vperm.xlu0 %815, %v419
      %v817 = vpop.permute.xlu0 %816
      %v819 = vmul.f32 %v797, %v783
      %v820 = vmul.f32 %v797, %v784
      %v821 = vmul.f32 %v801, %v785
      %v822 = vmul.f32 %v801, %v786
      %v823 = vmul.f32 %v805, %v787
      %v824 = vmul.f32 %v805, %v788
      %v825 = vmul.f32 %v809, %v789
      %v826 = vmul.f32 %v809, %v790
      %v827 = vmul.f32 %v813, %v791
      %v828 = vmul.f32 %v813, %v792
      %v829 = vmul.f32 %v817, %v793
      %v830 = vmul.f32 %v817, %v794
      %v831 = vadd.f32 %v727, %v819
      %v832 = vadd.f32 %v728, %v820
      %v833 = vadd.f32 %v729, %v821
      %v834 = vadd.f32 %v730, %v822
      %v835 = vadd.f32 %v731, %v823
      %v836 = vadd.f32 %v732, %v824
      %v837 = vadd.f32 %v733, %v825
      %v838 = vadd.f32 %v734, %v826
      %v839 = vadd.f32 %v735, %v827
      %v840 = vadd.f32 %v736, %v828
      %v841 = vadd.f32 %v737, %v829
      %v842 = vadd.f32 %v738, %v830
      %843 = vset.pattern.permute.xlu0 4
      %844 = vperm.xlu0 %843, %v414
      %v845 = vpop.permute.xlu0 %844
      %847 = vset.pattern.permute.xlu0 4
      %848 = vperm.xlu0 %847, %v415
      %v849 = vpop.permute.xlu0 %848
      %851 = vset.pattern.permute.xlu0 4
      %852 = vperm.xlu0 %851, %v416
      %v853 = vpop.permute.xlu0 %852
      %855 = vset.pattern.permute.xlu0 4
      %856 = vperm.xlu0 %855, %v417
      %v857 = vpop.permute.xlu0 %856
      %859 = vset.pattern.permute.xlu0 4
      %860 = vperm.xlu0 %859, %v418
      %v861 = vpop.permute.xlu0 %860
      %863 = vset.pattern.permute.xlu0 4
      %864 = vperm.xlu0 %863, %v419
      %v865 = vpop.permute.xlu0 %864
      %v867 = vmul.f32 %v845, %v376
      %v868 = vmul.f32 %v845, %v400
      %v869 = vmul.f32 %v849, %v378
      %v870 = vmul.f32 %v849, %v402
      %v871 = vmul.f32 %v853, %v381
      %v872 = vmul.f32 %v853, %v405
      %v873 = vmul.f32 %v857, %v383
      %v874 = vmul.f32 %v857, %v407
      %v875 = vmul.f32 %v861, %v386
      %v876 = vmul.f32 %v861, %v410
      %v877 = vmul.f32 %v865, %v388
      %v878 = vmul.f32 %v865, %v412
      %v879 = vadd.f32 %v831, %v867
      %v880 = vadd.f32 %v832, %v868
      %v881 = vadd.f32 %v833, %v869
      %v882 = vadd.f32 %v834, %v870
      %v883 = vadd.f32 %v835, %v871
      %v884 = vadd.f32 %v836, %v872
      %v885 = vadd.f32 %v837, %v873
      %v886 = vadd.f32 %v838, %v874
      %v887 = vadd.f32 %v839, %v875
      %v888 = vadd.f32 %v840, %v876
      %v889 = vadd.f32 %v841, %v877
      %v890 = vadd.f32 %v842, %v878
      %891 = vrot.lane.b32.xlu0 %v376, 127
      %v892 = vpop.permute.xlu0 %891
      %893 = vrot.lane.b32.xlu0 %v378, 127
      %v894 = vpop.permute.xlu0 %893
      %895 = vrot.lane.b32.xlu0 %v381, 127
      %v896 = vpop.permute.xlu0 %895
      %897 = vrot.lane.b32.xlu0 %v383, 127
      %v898 = vpop.permute.xlu0 %897
      %899 = vrot.lane.b32.xlu0 %v386, 127
      %v900 = vpop.permute.xlu0 %899
      %901 = vrot.lane.b32.xlu0 %v388, 127
      %v902 = vpop.permute.xlu0 %901
      %903 = vrot.lane.b32.xlu0 %v400, 127
      %v904 = vpop.permute.xlu0 %903
      %905 = vrot.lane.b32.xlu0 %v402, 127
      %v906 = vpop.permute.xlu0 %905
      %907 = vrot.lane.b32.xlu0 %v405, 127
      %v908 = vpop.permute.xlu0 %907
      %909 = vrot.lane.b32.xlu0 %v407, 127
      %v910 = vpop.permute.xlu0 %909
      %911 = vrot.lane.b32.xlu0 %v410, 127
      %v912 = vpop.permute.xlu0 %911
      %913 = vrot.lane.b32.xlu0 %v412, 127
      %v914 = vpop.permute.xlu0 %913
      %vm915 = vcmp.lt.s32.totalorder %v445, 127
      %v916 = vsel %vm915, %v892, %v904
      %v917 = vsel %vm915, %v894, %v906
      %v918 = vsel %vm915, %v896, %v908
      %v919 = vsel %vm915, %v898, %v910
      %v920 = vsel %vm915, %v900, %v912
      %v921 = vsel %vm915, %v902, %v914
      %v922 = vsel %vm915, %v904, %v892
      %v923 = vsel %vm915, %v906, %v894
      %v924 = vsel %vm915, %v908, %v896
      %v925 = vsel %vm915, %v910, %v898
      %v926 = vsel %vm915, %v912, %v900
      %v927 = vsel %vm915, %v914, %v902
      %s928 = scalar_lea.vmem %s5, 5
      %v929 = vld [vmem:[%s928] ss:$8 sm:$0x3]
      %v931 = vperm.slane %v929, 0
      %v932 = vperm.slane %v929, 1
      %v935 = vmul.f32 %v916, %v931
      %v936 = vmul.f32 %v922, %v932
      %v937 = vmul.f32 %v917, %v931
      %v938 = vmul.f32 %v923, %v932
      %v939 = vmul.f32 %v918, %v931
      %v940 = vmul.f32 %v924, %v932
      %v941 = vmul.f32 %v919, %v931
      %v942 = vmul.f32 %v925, %v932
      %v943 = vmul.f32 %v920, %v931
      %v944 = vmul.f32 %v926, %v932
      %v945 = vmul.f32 %v921, %v931
      %v946 = vmul.f32 %v927, %v932
      %947 = vset.pattern.permute.xlu0 5
      %948 = vperm.xlu0 %947, %v414
      %v949 = vpop.permute.xlu0 %948
      %951 = vset.pattern.permute.xlu0 5
      %952 = vperm.xlu0 %951, %v415
      %v953 = vpop.permute.xlu0 %952
      %955 = vset.pattern.permute.xlu0 5
      %956 = vperm.xlu0 %955, %v416
      %v957 = vpop.permute.xlu0 %956
      %959 = vset.pattern.permute.xlu0 5
      %960 = vperm.xlu0 %959, %v417
      %v961 = vpop.permute.xlu0 %960
      %963 = vset.pattern.permute.xlu0 5
      %964 = vperm.xlu0 %963, %v418
      %v965 = vpop.permute.xlu0 %964
      %967 = vset.pattern.permute.xlu0 5
      %968 = vperm.xlu0 %967, %v419
      %v969 = vpop.permute.xlu0 %968
      %v971 = vmul.f32 %v949, %v935
      %v972 = vmul.f32 %v949, %v936
      %v973 = vmul.f32 %v953, %v937
      %v974 = vmul.f32 %v953, %v938
      %v975 = vmul.f32 %v957, %v939
      %v976 = vmul.f32 %v957, %v940
      %v977 = vmul.f32 %v961, %v941
      %v978 = vmul.f32 %v961, %v942
      %v979 = vmul.f32 %v965, %v943
      %v980 = vmul.f32 %v965, %v944
      %v981 = vmul.f32 %v969, %v945
      %v982 = vmul.f32 %v969, %v946
      %v983 = vadd.f32 %v879, %v971
      %v984 = vadd.f32 %v880, %v972
      %v985 = vadd.f32 %v881, %v973
      %v986 = vadd.f32 %v882, %v974
      %v987 = vadd.f32 %v883, %v975
      %v988 = vadd.f32 %v884, %v976
      %v989 = vadd.f32 %v885, %v977
      %v990 = vadd.f32 %v886, %v978
      %v991 = vadd.f32 %v887, %v979
      %v992 = vadd.f32 %v888, %v980
      %v993 = vadd.f32 %v889, %v981
      %v994 = vadd.f32 %v890, %v982
      %995 = vrot.lane.b32.xlu0 %v376, 113
      %v996 = vpop.permute.xlu0 %995
      %997 = vrot.lane.b32.xlu0 %v378, 113
      %v998 = vpop.permute.xlu0 %997
      %999 = vrot.lane.b32.xlu0 %v381, 113
      %v1000 = vpop.permute.xlu0 %999
      %1001 = vrot.lane.b32.xlu0 %v383, 113
      %v1002 = vpop.permute.xlu0 %1001
      %1003 = vrot.lane.b32.xlu0 %v386, 113
      %v1004 = vpop.permute.xlu0 %1003
      %1005 = vrot.lane.b32.xlu0 %v388, 113
      %v1006 = vpop.permute.xlu0 %1005
      %1007 = vrot.lane.b32.xlu0 %v400, 113
      %v1008 = vpop.permute.xlu0 %1007
      %1009 = vrot.lane.b32.xlu0 %v402, 113
      %v1010 = vpop.permute.xlu0 %1009
      %1011 = vrot.lane.b32.xlu0 %v405, 113
      %v1012 = vpop.permute.xlu0 %1011
      %1013 = vrot.lane.b32.xlu0 %v407, 113
      %v1014 = vpop.permute.xlu0 %1013
      %1015 = vrot.lane.b32.xlu0 %v410, 113
      %v1016 = vpop.permute.xlu0 %1015
      %1017 = vrot.lane.b32.xlu0 %v412, 113
      %v1018 = vpop.permute.xlu0 %1017
      %vm1019 = vcmp.lt.s32.totalorder %v445, 113
      %v1020 = vsel %vm1019, %v996, %v1008
      %v1021 = vsel %vm1019, %v998, %v1010
      %v1022 = vsel %vm1019, %v1000, %v1012
      %v1023 = vsel %vm1019, %v1002, %v1014
      %v1024 = vsel %vm1019, %v1004, %v1016
      %v1025 = vsel %vm1019, %v1006, %v1018
      %v1026 = vsel %vm1019, %v1008, %v996
      %v1027 = vsel %vm1019, %v1010, %v998
      %v1028 = vsel %vm1019, %v1012, %v1000
      %v1029 = vsel %vm1019, %v1014, %v1002
      %v1030 = vsel %vm1019, %v1016, %v1004
      %v1031 = vsel %vm1019, %v1018, %v1006
      %s1032 = scalar_lea.vmem %s5, 6
      %v1033 = vld [vmem:[%s1032] ss:$8 sm:$0x3]
      %v1035 = vperm.slane %v1033, 0
      %v1036 = vperm.slane %v1033, 1
      %v1039 = vmul.f32 %v1020, %v1035
      %v1040 = vmul.f32 %v1026, %v1036
      %v1041 = vmul.f32 %v1021, %v1035
      %v1042 = vmul.f32 %v1027, %v1036
      %v1043 = vmul.f32 %v1022, %v1035
      %v1044 = vmul.f32 %v1028, %v1036
      %v1045 = vmul.f32 %v1023, %v1035
      %v1046 = vmul.f32 %v1029, %v1036
      %v1047 = vmul.f32 %v1024, %v1035
      %v1048 = vmul.f32 %v1030, %v1036
      %v1049 = vmul.f32 %v1025, %v1035
      %v1050 = vmul.f32 %v1031, %v1036
      %1051 = vset.pattern.permute.xlu0 6
      %1052 = vperm.xlu0 %1051, %v414
      %v1053 = vpop.permute.xlu0 %1052
      %1055 = vset.pattern.permute.xlu0 6
      %1056 = vperm.xlu0 %1055, %v415
      %v1057 = vpop.permute.xlu0 %1056
      %1059 = vset.pattern.permute.xlu0 6
      %1060 = vperm.xlu0 %1059, %v416
      %v1061 = vpop.permute.xlu0 %1060
      %1063 = vset.pattern.permute.xlu0 6
      %1064 = vperm.xlu0 %1063, %v417
      %v1065 = vpop.permute.xlu0 %1064
      %1067 = vset.pattern.permute.xlu0 6
      %1068 = vperm.xlu0 %1067, %v418
      %v1069 = vpop.permute.xlu0 %1068
      %1071 = vset.pattern.permute.xlu0 6
      %1072 = vperm.xlu0 %1071, %v419
      %v1073 = vpop.permute.xlu0 %1072
      %v1075 = vmul.f32 %v1053, %v1039
      %v1076 = vmul.f32 %v1053, %v1040
      %v1077 = vmul.f32 %v1057, %v1041
      %v1078 = vmul.f32 %v1057, %v1042
      %v1079 = vmul.f32 %v1061, %v1043
      %v1080 = vmul.f32 %v1061, %v1044
      %v1081 = vmul.f32 %v1065, %v1045
      %v1082 = vmul.f32 %v1065, %v1046
      %v1083 = vmul.f32 %v1069, %v1047
      %v1084 = vmul.f32 %v1069, %v1048
      %v1085 = vmul.f32 %v1073, %v1049
      %v1086 = vmul.f32 %v1073, %v1050
      %v1087 = vadd.f32 %v983, %v1075
      %v1088 = vadd.f32 %v984, %v1076
      %v1089 = vadd.f32 %v985, %v1077
      %v1090 = vadd.f32 %v986, %v1078
      %v1091 = vadd.f32 %v987, %v1079
      %v1092 = vadd.f32 %v988, %v1080
      %v1093 = vadd.f32 %v989, %v1081
      %v1094 = vadd.f32 %v990, %v1082
      %v1095 = vadd.f32 %v991, %v1083
      %v1096 = vadd.f32 %v992, %v1084
      %v1097 = vadd.f32 %v993, %v1085
      %v1098 = vadd.f32 %v994, %v1086
      %1099 = vrot.lane.b32.xlu0 %v376, 112
      %v1100 = vpop.permute.xlu0 %1099
      %1101 = vrot.lane.b32.xlu0 %v378, 112
      %v1102 = vpop.permute.xlu0 %1101
      %1103 = vrot.lane.b32.xlu0 %v381, 112
      %v1104 = vpop.permute.xlu0 %1103
      %1105 = vrot.lane.b32.xlu0 %v383, 112
      %v1106 = vpop.permute.xlu0 %1105
      %1107 = vrot.lane.b32.xlu0 %v386, 112
      %v1108 = vpop.permute.xlu0 %1107
      %1109 = vrot.lane.b32.xlu0 %v388, 112
      %v1110 = vpop.permute.xlu0 %1109
      %1111 = vrot.lane.b32.xlu0 %v400, 112
      %v1112 = vpop.permute.xlu0 %1111
      %1113 = vrot.lane.b32.xlu0 %v402, 112
      %v1114 = vpop.permute.xlu0 %1113
      %1115 = vrot.lane.b32.xlu0 %v405, 112
      %v1116 = vpop.permute.xlu0 %1115
      %1117 = vrot.lane.b32.xlu0 %v407, 112
      %v1118 = vpop.permute.xlu0 %1117
      %1119 = vrot.lane.b32.xlu0 %v410, 112
      %v1120 = vpop.permute.xlu0 %1119
      %1121 = vrot.lane.b32.xlu0 %v412, 112
      %v1122 = vpop.permute.xlu0 %1121
      %vm1123 = vcmp.lt.s32.totalorder %v445, 112
      %v1124 = vsel %vm1123, %v1100, %v1112
      %v1125 = vsel %vm1123, %v1102, %v1114
      %v1126 = vsel %vm1123, %v1104, %v1116
      %v1127 = vsel %vm1123, %v1106, %v1118
      %v1128 = vsel %vm1123, %v1108, %v1120
      %v1129 = vsel %vm1123, %v1110, %v1122
      %v1130 = vsel %vm1123, %v1112, %v1100
      %v1131 = vsel %vm1123, %v1114, %v1102
      %v1132 = vsel %vm1123, %v1116, %v1104
      %v1133 = vsel %vm1123, %v1118, %v1106
      %v1134 = vsel %vm1123, %v1120, %v1108
      %v1135 = vsel %vm1123, %v1122, %v1110
      %s1136 = scalar_lea.vmem %s5, 7
      %v1137 = vld [vmem:[%s1136] ss:$8 sm:$0x3]
      %v1139 = vperm.slane %v1137, 0
      %v1140 = vperm.slane %v1137, 1
      %v1143 = vmul.f32 %v1124, %v1139
      %v1144 = vmul.f32 %v1130, %v1140
      %v1145 = vmul.f32 %v1125, %v1139
      %v1146 = vmul.f32 %v1131, %v1140
      %v1147 = vmul.f32 %v1126, %v1139
      %v1148 = vmul.f32 %v1132, %v1140
      %v1149 = vmul.f32 %v1127, %v1139
      %v1150 = vmul.f32 %v1133, %v1140
      %v1151 = vmul.f32 %v1128, %v1139
      %v1152 = vmul.f32 %v1134, %v1140
      %v1153 = vmul.f32 %v1129, %v1139
      %v1154 = vmul.f32 %v1135, %v1140
      %1155 = vset.pattern.permute.xlu0 7
      %1156 = vperm.xlu0 %1155, %v414
      %v1157 = vpop.permute.xlu0 %1156
      %1159 = vset.pattern.permute.xlu0 7
      %1160 = vperm.xlu0 %1159, %v415
      %v1161 = vpop.permute.xlu0 %1160
      %1163 = vset.pattern.permute.xlu0 7
      %1164 = vperm.xlu0 %1163, %v416
      %v1165 = vpop.permute.xlu0 %1164
      %1167 = vset.pattern.permute.xlu0 7
      %1168 = vperm.xlu0 %1167, %v417
      %v1169 = vpop.permute.xlu0 %1168
      %1171 = vset.pattern.permute.xlu0 7
      %1172 = vperm.xlu0 %1171, %v418
      %v1173 = vpop.permute.xlu0 %1172
      %1175 = vset.pattern.permute.xlu0 7
      %1176 = vperm.xlu0 %1175, %v419
      %v1177 = vpop.permute.xlu0 %1176
      %v1179 = vmul.f32 %v1157, %v1143
      %v1180 = vmul.f32 %v1157, %v1144
      %v1181 = vmul.f32 %v1161, %v1145
      %v1182 = vmul.f32 %v1161, %v1146
      %v1183 = vmul.f32 %v1165, %v1147
      %v1184 = vmul.f32 %v1165, %v1148
      %v1185 = vmul.f32 %v1169, %v1149
      %v1186 = vmul.f32 %v1169, %v1150
      %v1187 = vmul.f32 %v1173, %v1151
      %v1188 = vmul.f32 %v1173, %v1152
      %v1189 = vmul.f32 %v1177, %v1153
      %v1190 = vmul.f32 %v1177, %v1154
      %v1191 = vadd.f32 %v1087, %v1179
      %v1192 = vadd.f32 %v1088, %v1180
      %v1193 = vadd.f32 %v1089, %v1181
      %v1194 = vadd.f32 %v1090, %v1182
      %v1195 = vadd.f32 %v1091, %v1183
      %v1196 = vadd.f32 %v1092, %v1184
      %v1197 = vadd.f32 %v1093, %v1185
      %v1198 = vadd.f32 %v1094, %v1186
      %v1199 = vadd.f32 %v1095, %v1187
      %v1200 = vadd.f32 %v1096, %v1188
      %v1201 = vadd.f32 %v1097, %v1189
      %v1202 = vadd.f32 %v1098, %v1190
      %1203 = vrot.lane.b32.xlu0 %v376, 111
      %v1204 = vpop.permute.xlu0 %1203
      %1205 = vrot.lane.b32.xlu0 %v378, 111
      %v1206 = vpop.permute.xlu0 %1205
      %1207 = vrot.lane.b32.xlu0 %v381, 111
      %v1208 = vpop.permute.xlu0 %1207
      %1209 = vrot.lane.b32.xlu0 %v383, 111
      %v1210 = vpop.permute.xlu0 %1209
      %1211 = vrot.lane.b32.xlu0 %v386, 111
      %v1212 = vpop.permute.xlu0 %1211
      %1213 = vrot.lane.b32.xlu0 %v388, 111
      %v1214 = vpop.permute.xlu0 %1213
      %1215 = vrot.lane.b32.xlu0 %v400, 111
      %v1216 = vpop.permute.xlu0 %1215
      %1217 = vrot.lane.b32.xlu0 %v402, 111
      %v1218 = vpop.permute.xlu0 %1217
      %1219 = vrot.lane.b32.xlu0 %v405, 111
      %v1220 = vpop.permute.xlu0 %1219
      %1221 = vrot.lane.b32.xlu0 %v407, 111
      %v1222 = vpop.permute.xlu0 %1221
      %1223 = vrot.lane.b32.xlu0 %v410, 111
      %v1224 = vpop.permute.xlu0 %1223
      %1225 = vrot.lane.b32.xlu0 %v412, 111
      %v1226 = vpop.permute.xlu0 %1225
      %vm1227 = vcmp.lt.s32.totalorder %v445, 111
      %v1228 = vsel %vm1227, %v1204, %v1216
      %v1229 = vsel %vm1227, %v1206, %v1218
      %v1230 = vsel %vm1227, %v1208, %v1220
      %v1231 = vsel %vm1227, %v1210, %v1222
      %v1232 = vsel %vm1227, %v1212, %v1224
      %v1233 = vsel %vm1227, %v1214, %v1226
      %v1234 = vsel %vm1227, %v1216, %v1204
      %v1235 = vsel %vm1227, %v1218, %v1206
      %v1236 = vsel %vm1227, %v1220, %v1208
      %v1237 = vsel %vm1227, %v1222, %v1210
      %v1238 = vsel %vm1227, %v1224, %v1212
      %v1239 = vsel %vm1227, %v1226, %v1214
      %s1240 = scalar_lea.vmem %s5, 16
      %v1241 = vld [vmem:[%s1240] ss:$8 sm:$0x3]
      %v1243 = vperm.slane %v1241, 0
      %v1244 = vperm.slane %v1241, 1
      %v1247 = vmul.f32 %v1228, %v1243
      %v1248 = vmul.f32 %v1234, %v1244
      %v1249 = vmul.f32 %v1229, %v1243
      %v1250 = vmul.f32 %v1235, %v1244
      %v1251 = vmul.f32 %v1230, %v1243
      %v1252 = vmul.f32 %v1236, %v1244
      %v1253 = vmul.f32 %v1231, %v1243
      %v1254 = vmul.f32 %v1237, %v1244
      %v1255 = vmul.f32 %v1232, %v1243
      %v1256 = vmul.f32 %v1238, %v1244
      %v1257 = vmul.f32 %v1233, %v1243
      %v1258 = vmul.f32 %v1239, %v1244
      %1259 = vset.pattern.permute.xlu0 8
      %1260 = vperm.xlu0 %1259, %v414
      %v1261 = vpop.permute.xlu0 %1260
      %1263 = vset.pattern.permute.xlu0 8
      %1264 = vperm.xlu0 %1263, %v415
      %v1265 = vpop.permute.xlu0 %1264
      %1267 = vset.pattern.permute.xlu0 8
      %1268 = vperm.xlu0 %1267, %v416
      %v1269 = vpop.permute.xlu0 %1268
      %1271 = vset.pattern.permute.xlu0 8
      %1272 = vperm.xlu0 %1271, %v417
      %v1273 = vpop.permute.xlu0 %1272
      %1275 = vset.pattern.permute.xlu0 8
      %1276 = vperm.xlu0 %1275, %v418
      %v1277 = vpop.permute.xlu0 %1276
      %1279 = vset.pattern.permute.xlu0 8
      %1280 = vperm.xlu0 %1279, %v419
      %v1281 = vpop.permute.xlu0 %1280
      %v1283 = vmul.f32 %v1261, %v1247
      %v1284 = vmul.f32 %v1261, %v1248
      %v1285 = vmul.f32 %v1265, %v1249
      %v1286 = vmul.f32 %v1265, %v1250
      %v1287 = vmul.f32 %v1269, %v1251
      %v1288 = vmul.f32 %v1269, %v1252
      %v1289 = vmul.f32 %v1273, %v1253
      %v1290 = vmul.f32 %v1273, %v1254
      %v1291 = vmul.f32 %v1277, %v1255
      %v1292 = vmul.f32 %v1277, %v1256
      %v1293 = vmul.f32 %v1281, %v1257
      %v1294 = vmul.f32 %v1281, %v1258
      %v1295 = vadd.f32 %v1191, %v1283
      %v1296 = vadd.f32 %v1192, %v1284
      %v1297 = vadd.f32 %v1193, %v1285
      %v1298 = vadd.f32 %v1194, %v1286
      %v1299 = vadd.f32 %v1195, %v1287
      %v1300 = vadd.f32 %v1196, %v1288
      %v1301 = vadd.f32 %v1197, %v1289
      %v1302 = vadd.f32 %v1198, %v1290
      %v1303 = vadd.f32 %v1199, %v1291
      %v1304 = vadd.f32 %v1200, %v1292
      %v1305 = vadd.f32 %v1201, %v1293
      %v1306 = vadd.f32 %v1202, %v1294
      %v1307 = vld [vmem:[%s4] sm:$0xff]
      %v1308 = vld [vmem:[%s4 + $0x8] sm:$0xff]
      %v1309 = vld [vmem:[%s4 + $0x10] sm:$0xff]
      %v1310 = vld [vmem:[%s4 + $0x18] sm:$0xff]
      %v1311 = vld [vmem:[%s4 + $0x20] sm:$0xff]
      %v1312 = vld [vmem:[%s4 + $0x28] sm:$0xff]
      %1314 = vset.pattern.permute.xlu0 0
      %1315 = vperm.xlu0 %1314, %v1307
      %v1316 = vpop.permute.xlu0 %1315
      %1319 = vset.pattern.permute.xlu0 0
      %1320 = vperm.xlu0 %1319, %v1308
      %v1321 = vpop.permute.xlu0 %1320
      %1324 = vset.pattern.permute.xlu0 0
      %1325 = vperm.xlu0 %1324, %v1309
      %v1326 = vpop.permute.xlu0 %1325
      %1329 = vset.pattern.permute.xlu0 0
      %1330 = vperm.xlu0 %1329, %v1310
      %v1331 = vpop.permute.xlu0 %1330
      %1334 = vset.pattern.permute.xlu0 0
      %1335 = vperm.xlu0 %1334, %v1311
      %v1336 = vpop.permute.xlu0 %1335
      %1339 = vset.pattern.permute.xlu0 0
      %1340 = vperm.xlu0 %1339, %v1312
      %v1341 = vpop.permute.xlu0 %1340
      %v1343 = vadd.f32 %v1295, %v1316
      %v1344 = vadd.f32 %v1296, %v1316
      %v1345 = vadd.f32 %v1297, %v1321
      %v1346 = vadd.f32 %v1298, %v1321
      %v1347 = vadd.f32 %v1299, %v1326
      %v1348 = vadd.f32 %v1300, %v1326
      %v1349 = vadd.f32 %v1301, %v1331
      %v1350 = vadd.f32 %v1302, %v1331
      %v1351 = vadd.f32 %v1303, %v1336
      %v1352 = vadd.f32 %v1304, %v1336
      %v1353 = vadd.f32 %v1305, %v1341
      %v1354 = vadd.f32 %v1306, %v1341
      %v1355 = vpack.c.bf16 %v1344, %v1343
      %v1356 = vpack.c.bf16 %v1346, %v1345
      %v1357 = vpack.c.bf16 %v1348, %v1347
      %v1358 = vpack.c.bf16 %v1350, %v1349
      %1359 = vst [vmem:[%s286] sm:$0xff] %v1355
      %1360 = vst [vmem:[%s286 + $0x8] sm:$0xff] %v1356
      %1361 = vst [vmem:[%s286 + $0x10] sm:$0xff] %v1357
      %1362 = vst [vmem:[%s286 + $0x18] sm:$0xff] %v1358
      %v1363 = vpack.c.bf16 %v1352, %v1351
      %v1364 = vpack.c.bf16 %v1354, %v1353
      %1365 = vst [vmem:[%s291] sm:$0xff] %v1363
      %1366 = vst [vmem:[%s291 + $0x8] sm:$0xff] %v1364
      %p1367 = scmp.lt.s32.totalorder %s19, 1
      %s1368 = scalar_select %p1367, %s19, 1
      %s1369 = smul.addr %s1368, 8
      %s1370 = smul.addr %s1369, 4
      %s1371 = scalar_lea.vmem %s6, %s1370
      %p1372 = scmp.lt.s32.totalorder %s19, 1
      %s1373 = scalar_select %p1372, %s19, 1
      %s1374 = smul.addr %s1373, 4
      %s1375 = smul.addr %s1374, 4
      %s1376 = scalar_lea.vmem %s7, %s1375
      // Predicated region
      $region45: #{dual_attention_forward.5} parent=43 // pred_check
        %p1377 = pneg %p168
      $region46: #{dual_attention_forward.5} parent=43 // pred_check_branch
        %1379 = sbr.rel (%p1377) target = $region48
      $region47: #{dual_attention_forward.5} parent=43 // pred_region
        _
      $region48: #{dual_attention_forward.5} parent=43 // pred_fallthru
        _
      // Predicated region
      $region49: #{dual_attention_forward.5} parent=43 // pred_check
        %p1380 = pneg %p194
      $region50: #{dual_attention_forward.5} parent=43 // pred_check_branch
        %1382 = sbr.rel (%p1380) target = $region52
      $region51: #{dual_attention_forward.5} parent=43 // pred_region
        _
      $region52: #{dual_attention_forward.5} parent=43 // pred_fallthru
        _
    $region44: #{dual_attention_forward.5} parent=5 // pred_fallthru
      _
    %p1383 = scmp.le.s32.totalorder 2, %s14
    // Predicated region
    $region53: #{dual_attention_forward.5} parent=5 // pred_check
      %p1384 = pneg %p1383
    $region54: #{dual_attention_forward.5} parent=5 // pred_check_branch
      %1386 = sbr.rel (%p1384) target = $region56
    $region55: #{dual_attention_forward.5} parent=5 // pred_region
      %s1387 = ssub.s32 %s14, 2
      // Predicated region
      $region57: #{dual_attention_forward.5} parent=55 // pred_check
        %p1388 = pneg %p174
      $region58: #{dual_attention_forward.5} parent=55 // pred_check_branch
        %1390 = sbr.rel (%p1388) target = $region60
      $region59: #{dual_attention_forward.5} parent=55 // pred_region
        %p1391 = scmp.lt.s32.totalorder %s20, 1
        %s1392 = scalar_select %p1391, %s20, 1
        %s1393 = smul.addr %s1392, 8
        %s1394 = smul.addr %s1393, 4
        %s1395 = scalar_lea.vmem %s6, %s1394
      $region60: #{dual_attention_forward.5} parent=55 // pred_fallthru
        _
      // Predicated region
      $region61: #{dual_attention_forward.5} parent=55 // pred_check
        %p1396 = pneg %p200
      $region62: #{dual_attention_forward.5} parent=55 // pred_check_branch
        %1398 = sbr.rel (%p1396) target = $region64
      $region63: #{dual_attention_forward.5} parent=55 // pred_region
        %p1399 = scmp.lt.s32.totalorder %s20, 1
        %s1400 = scalar_select %p1399, %s20, 1
        %s1401 = smul.addr %s1400, 4
        %s1402 = smul.addr %s1401, 4
        %s1403 = scalar_lea.vmem %s7, %s1402
      $region64: #{dual_attention_forward.5} parent=55 // pred_fallthru
        _
    $region56: #{dual_attention_forward.5} parent=5 // pred_fallthru
      _
  $region6: #{dual_attention_forward.5} parent=0 // loop_footer
    %s18 = sadd.s32 1, %s14
  $region7: #{dual_attention_forward.5} parent=0 // loop_footer_branch
    %13 = sbr.rel target = $region3
  $region8: #{dual_attention_forward.5} parent=0 // loop_exit
    _

</llo_original>
